<compile_context>
chip_gen: v6e
topology: v6e:2x2x1
jax: 0.10.0
libtpu: 0.0.40
codegen_flags: <defaults>
</compile_context>

<pallas_src>
import math
import functools

import jax
import jax.numpy as jnp
import numpy as np
from jax.experimental import pallas as pl
from jax.experimental.pallas import tpu as pltpu


# --------------------------------------------------------------------------------------
# Pallas kernel: one full TransformerEncoderLayer (norm_first=True) for one batch tile
# --------------------------------------------------------------------------------------
def _layer_norm(v, w, b, eps=1e-5):
    mu = jnp.mean(v, axis=-1, keepdims=True)
    var = jnp.mean((v - mu) ** 2, axis=-1, keepdims=True)
    return (v - mu) * jax.lax.rsqrt(var + eps) * w + b


def encoder_layer_kernel(x_ref,
                         n1w, n1b, wqkv, bqkv, wo, bo,
                         n2w, n2b, w1, b1, w2, b2,
                         o_ref, *, num_heads):
    f32 = jnp.float32
    bf16 = jnp.bfloat16

    x = x_ref[...]                                   # (Bt, S, D) float32
    Bt, S, D = x.shape
    H = num_heads
    Dh = D // H
    M = Bt * S

    x2 = x.reshape(M, D)                             # fat M dim for all dense matmuls

    # ---- self-attention sub-block (pre-norm):  x = x + SA(LN1(x)) ----
    h = _layer_norm(x2, n1w[...], n1b[...])          # (M, D) f32
    # fused QKV projection; the 1/sqrt(Dh) scale is already folded into the Q columns
    qkv = (jnp.dot(h.astype(bf16), wqkv[...], preferred_element_type=f32)
           + bqkv[...]).astype(bf16)                 # (M, 3D) bf16

    # per-(batch, head) attention: intrinsically (S,Dh)/(S,S) shaped matmuls.
    # Static lane/sublane slices, 2-D dots only (robust Mosaic lowering).
    # TODO(synk): replace with flash-style KV tiling for long sequences.
    row_ctx = []
    for b in range(Bt):                              # static unroll (small Bt*H)
        r = b * S
        head_ctx = []
        for hd in range(H):
            c = hd * Dh
            qh = qkv[r:r + S, c:c + Dh]              # (S, Dh) bf16 (pre-scaled)
            kh = qkv[r:r + S, D + c:D + c + Dh]
            vh = qkv[r:r + S, 2 * D + c:2 * D + c + Dh]
            # q @ k.T without materializing the transpose
            s = jax.lax.dot_general(qh, kh, (((1,), (1,)), ((), ())),
                                    preferred_element_type=f32)   # (S, S) f32
            s = s - jnp.max(s, axis=-1, keepdims=True)
            p = jnp.exp(s)
            denom = jnp.sum(p, axis=-1, keepdims=True)
            ctx = jnp.dot(p.astype(bf16), vh, preferred_element_type=f32)
            ctx = ctx * pl.reciprocal(denom, approx=False)        # exact softmax norm
            head_ctx.append(ctx.astype(bf16))
        row_ctx.append(jnp.concatenate(head_ctx, axis=-1))        # (S, D) lane-concat
    merged = jnp.concatenate(row_ctx, axis=0) if Bt > 1 else row_ctx[0]   # (M, D) bf16

    # single fat out-projection: K = D (not Dh)
    sa = jnp.dot(merged, wo[...], preferred_element_type=f32) + bo[...]
    x2 = x2 + sa

    # ---- feed-forward sub-block (pre-norm):  x = x + FF(LN2(x)) ----
    h2 = _layer_norm(x2, n2w[...], n2b[...])
    f = jnp.dot(h2.astype(bf16), w1[...], preferred_element_type=f32) + b1[...]  # (M, 2D)
    # exact (erf-based) GELU, matching torch activation='gelu' (approximate='none')
    f = 0.5 * f * (1.0 + jax.lax.erf(f * (1.0 / math.sqrt(2.0))))
    y = jnp.dot(f.astype(bf16), w2[...], preferred_element_type=f32) + b2[...]   # (M, D)
    o_ref[...] = (x2 + y).reshape(Bt, S, D)


# --------------------------------------------------------------------------------------
# Wrapper: one pallas_call per layer, grid over batch tiles
# --------------------------------------------------------------------------------------
_PARAM_ORDER = ("n1w", "n1b", "wqkv", "bqkv", "wo", "bo",
                "n2w", "n2b", "w1", "b1", "w2", "b2")


def _pick_batch_tile(B, S, D, H, vmem_budget=24 * 1024 * 1024, max_unroll=32):
    """Largest divisor of B whose per-step working set fits the budget and keeps the
    static attention unroll (Bt * H) small."""
    best = 1
    for bt in range(1, B + 1):
        if B % bt or bt * H > max_unroll:
            continue
        act_bytes = 8 * bt * S * D * 4        # x / ln / qkv / ffn activations (rough, f32)
        score_bytes = 3 * S * S * 4           # one head's scores live at a time
        if act_bytes + score_bytes <= vmem_budget:
            best = bt
    return best


def _build_layer_call(B, S, D, Bt, num_heads, weights, dtype, weight_buffering):
    def const_spec(w):
        idx = lambda b, _n=w.ndim: (0,) * _n
        if weight_buffering is None:
            return pl.BlockSpec(w.shape, idx)
        # grid-invariant weights: single-buffer to halve their VMEM footprint
        return pl.BlockSpec(w.shape, idx, pipeline_mode=weight_buffering)

    in_specs = [pl.BlockSpec((Bt, S, D), lambda b: (b, 0, 0))]
    in_specs += [const_spec(w) for w in weights]
    out_spec = pl.BlockSpec((Bt, S, D), lambda b: (b, 0, 0))

    return pl.pallas_call(
        functools.partial(encoder_layer_kernel, num_heads=num_heads),
        out_shape=jax.ShapeDtypeStruct((B, S, D), dtype),
        grid_spec=pltpu.PrefetchScalarGridSpec(
            num_scalar_prefetch=0,
            grid=(B // Bt,),
            in_specs=in_specs,
            out_specs=out_spec,
        ),
        compiler_params=pltpu.CompilerParams(
            dimension_semantics=("parallel",),
            vmem_limit_bytes=48 * 1024 * 1024,   # fits v7x's 64 MiB; above v5e/v6e defaults
        ),
    )


def transformer_encoder_layer(x, params, num_heads, batch_tile=None):
    B, S, D = x.shape
    Bt = batch_tile if batch_tile is not None else _pick_batch_tile(B, S, D, num_heads)
    assert B % Bt == 0
    weights = [params[name] for name in _PARAM_ORDER]

    try:
        buffered = pl.Buffered(1)
        return _build_layer_call(B, S, D, Bt, num_heads, weights, x.dtype,
                                 buffered)(x, *weights)
    except Exception:   # older jax / Buffered(1) unsupported: default double-buffering
        return _build_layer_call(B, S, D, Bt, num_heads, weights, x.dtype,
                                 None)(x, *weights)


def transformer_encoder(x, layer_params, num_heads):
    # TODO(synk): fuse layers via a leading L grid axis to avoid per-layer HBM round-trips.
    for params in layer_params:
        x = transformer_encoder_layer(x, params, num_heads)
    return x


# --------------------------------------------------------------------------------------
# Deterministic parameter init in torch nn.TransformerEncoderLayer layout
# --------------------------------------------------------------------------------------
def init_params(key, dim, depth):
    layers = []
    std = 0.02
    for _ in range(depth):
        key, *ks = jax.random.split(key, 13)
        k = iter(ks)
        layers.append(dict(
            ln1_w=1.0 + 0.1 * jax.random.normal(next(k), (dim,), jnp.float32),
            ln1_b=0.1 * jax.random.normal(next(k), (dim,), jnp.float32),
            in_proj_w=std * jax.random.normal(next(k), (3 * dim, dim), jnp.float32),
            in_proj_b=std * jax.random.normal(next(k), (3 * dim,), jnp.float32),
            out_proj_w=std * jax.random.normal(next(k), (dim, dim), jnp.float32),
            out_proj_b=std * jax.random.normal(next(k), (dim,), jnp.float32),
            ln2_w=1.0 + 0.1 * jax.random.normal(next(k), (dim,), jnp.float32),
            ln2_b=0.1 * jax.random.normal(next(k), (dim,), jnp.float32),
            lin1_w=std * jax.random.normal(next(k), (2 * dim, dim), jnp.float32),
            lin1_b=std * jax.random.normal(next(k), (2 * dim,), jnp.float32),
            lin2_w=std * jax.random.normal(next(k), (dim, 2 * dim), jnp.float32),
            lin2_b=std * jax.random.normal(next(k), (dim,), jnp.float32),
        ))
    return layers


def prep_layer_params(p, num_heads):
    """Host-side re-layout: fused (D,3D) QKV weight with the softmax scale folded into
    the Q columns, bf16 matmul operands, f32 biases / LN params."""
    D = p["out_proj_w"].shape[0]
    Dh = D // num_heads
    scale = 1.0 / math.sqrt(Dh)
    bf16 = jnp.bfloat16

    wqkv = p["in_proj_w"].T.astype(jnp.float32)          # (D, 3D), columns = [q | k | v]
    bqkv = p["in_proj_b"].astype(jnp.float32)            # (3D,)
    col_scale = jnp.concatenate([jnp.full((D,), scale, jnp.float32),
                                 jnp.ones((2 * D,), jnp.float32)])
    wqkv = (wqkv * col_scale[None, :]).astype(bf16)
    bqkv = (bqkv * col_scale).reshape(1, 3 * D)

    return dict(
        n1w=p["ln1_w"].reshape(1, D), n1b=p["ln1_b"].reshape(1, D),
        wqkv=wqkv, bqkv=bqkv,
        wo=p["out_proj_w"].T.astype(bf16), bo=p["out_proj_b"].reshape(1, D),
        n2w=p["ln2_w"].reshape(1, D), n2b=p["ln2_b"].reshape(1, D),
        w1=p["lin1_w"].T.astype(bf16), b1=p["lin1_b"].reshape(1, -1),
        w2=p["lin2_w"].T.astype(bf16), b2=p["lin2_b"].reshape(1, -1),
    )


# --------------------------------------------------------------------------------------
# Pure-JAX f32 reference (same math as torch TransformerEncoderLayer, norm_first, eval)
# --------------------------------------------------------------------------------------
def reference_forward(x, layer_params, num_heads):
    def ln(v, w, b):
        mu = v.mean(-1, keepdims=True)
        var = ((v - mu) ** 2).mean(-1, keepdims=True)
        return (v - mu) / jnp.sqrt(var + 1e-5) * w + b

    B, S, D = x.shape
    Dh = D // num_heads
    for p in layer_params:
        h = ln(x, p["ln1_w"], p["ln1_b"])
        qkv = h @ p["in_proj_w"].T + p["in_proj_b"]
        q, k, v = qkv[..., :D], qkv[..., D:2 * D], qkv[..., 2 * D:]
        q = q.reshape(B, S, num_heads, Dh).transpose(0, 2, 1, 3)
        k = k.reshape(B, S, num_heads, Dh).transpose(0, 2, 1, 3)
        v = v.reshape(B, S, num_heads, Dh).transpose(0, 2, 1, 3)
        s = jnp.einsum("bhqd,bhkd->bhqk", q, k) / math.sqrt(Dh)
        a = jax.nn.softmax(s, axis=-1)
        o = jnp.einsum("bhqk,bhkd->bhqd", a, v).transpose(0, 2, 1, 3).reshape(B, S, D)
        x = x + (o @ p["out_proj_w"].T + p["out_proj_b"])
        h2 = ln(x, p["ln2_w"], p["ln2_b"])
        f = h2 @ p["lin1_w"].T + p["lin1_b"]
        f = 0.5 * f * (1.0 + jax.lax.erf(f / math.sqrt(2.0)))
        x = x + (f @ p["lin2_w"].T + p["lin2_b"])
    return x


# --------------------------------------------------------------------------------------
if __name__ == "__main__":
    # Small shapes; D is a multiple of 128 so vregs / output stores are lane-dense.
    B, S, DIM, HEADS, DEPTH = 2, 16, 128, 4, 2

    key = jax.random.PRNGKey(0)
    key, xk = jax.random.split(key)
    x = jax.random.normal(xk, (B, S, DIM), jnp.float32)

    torch_layout_params = init_params(key, DIM, DEPTH)
    kernel_params = [prep_layer_params(p, HEADS) for p in torch_layout_params]

    out = transformer_encoder(x, kernel_params, HEADS)
    out = jax.block_until_ready(out)

    ref = reference_forward(x, torch_layout_params, HEADS)
    # bf16 matmul operands with f32 accumulation -> use a bf16-aware tolerance.
    np.testing.assert_allclose(np.asarray(out), np.asarray(ref), rtol=2e-2, atol=2e-2)

    print("KERNEL_OK")
</pallas_src>

<mosaic_0001>
module attributes {stable_mosaic.version = 11 : i64} {
  func.func @encoder_layer_kernel(%arg0: i32, %arg1: memref<2x16x128xf32, #tpu.memory_space<vmem>>, %arg2: memref<1x128xf32, #tpu.memory_space<vmem>>, %arg3: memref<1x128xf32, #tpu.memory_space<vmem>>, %arg4: memref<128x384xbf16, #tpu.memory_space<vmem>>, %arg5: memref<1x384xf32, #tpu.memory_space<vmem>>, %arg6: memref<128x128xbf16, #tpu.memory_space<vmem>>, %arg7: memref<1x128xf32, #tpu.memory_space<vmem>>, %arg8: memref<1x128xf32, #tpu.memory_space<vmem>>, %arg9: memref<1x128xf32, #tpu.memory_space<vmem>>, %arg10: memref<128x256xbf16, #tpu.memory_space<vmem>>, %arg11: memref<1x256xf32, #tpu.memory_space<vmem>>, %arg12: memref<256x128xbf16, #tpu.memory_space<vmem>>, %arg13: memref<1x128xf32, #tpu.memory_space<vmem>>, %arg14: memref<2x16x128xf32, #tpu.memory_space<vmem>>) attributes {dimension_semantics = [#tpu.dimension_semantics<parallel>], iteration_bounds = array<i64: 1>, scalar_prefetch = 0 : i64, scratch_operands = 0 : i64, tpu.core_type = #tpu.core_type<tc>, window_params = [{transform_indices = @transform_0, window_bounds = array<i64: 2, 16, 128>}, {pipeline_mode = #tpu.pipeline_mode<synchronous>, transform_indices = @transform_1, window_bounds = array<i64: 1, 128>}, {pipeline_mode = #tpu.pipeline_mode<synchronous>, transform_indices = @transform_2, window_bounds = array<i64: 1, 128>}, {pipeline_mode = #tpu.pipeline_mode<synchronous>, transform_indices = @transform_3, window_bounds = array<i64: 128, 384>}, {pipeline_mode = #tpu.pipeline_mode<synchronous>, transform_indices = @transform_4, window_bounds = array<i64: 1, 384>}, {pipeline_mode = #tpu.pipeline_mode<synchronous>, transform_indices = @transform_5, window_bounds = array<i64: 128, 128>}, {pipeline_mode = #tpu.pipeline_mode<synchronous>, transform_indices = @transform_6, window_bounds = array<i64: 1, 128>}, {pipeline_mode = #tpu.pipeline_mode<synchronous>, transform_indices = @transform_7, window_bounds = array<i64: 1, 128>}, {pipeline_mode = #tpu.pipeline_mode<synchronous>, transform_indices = @transform_8, window_bounds = array<i64: 1, 128>}, {pipeline_mode = #tpu.pipeline_mode<synchronous>, transform_indices = @transform_9, window_bounds = array<i64: 128, 256>}, {pipeline_mode = #tpu.pipeline_mode<synchronous>, transform_indices = @transform_10, window_bounds = array<i64: 1, 256>}, {pipeline_mode = #tpu.pipeline_mode<synchronous>, transform_indices = @transform_11, window_bounds = array<i64: 256, 128>}, {pipeline_mode = #tpu.pipeline_mode<synchronous>, transform_indices = @transform_12, window_bounds = array<i64: 1, 128>}, {transform_indices = @transform_13, window_bounds = array<i64: 2, 16, 128>}]} {
    %c0 = arith.constant 0 : index
    %c0_0 = arith.constant 0 : index
    %c0_1 = arith.constant 0 : index
    %0 = vector.load %arg1[%c0, %c0_0, %c0_1] : memref<2x16x128xf32, #tpu.memory_space<vmem>>, vector<2x16x128xf32>
    %1 = vector.shape_cast %0 : vector<2x16x128xf32> to vector<32x128xf32>
    %c0_2 = arith.constant 0 : index
    %c0_3 = arith.constant 0 : index
    %2 = vector.load %arg2[%c0_2, %c0_3] : memref<1x128xf32, #tpu.memory_space<vmem>>, vector<1x128xf32>
    %c0_4 = arith.constant 0 : index
    %c0_5 = arith.constant 0 : index
    %3 = vector.load %arg3[%c0_4, %c0_5] : memref<1x128xf32, #tpu.memory_space<vmem>>, vector<1x128xf32>
    %cst = arith.constant dense<0.000000e+00> : vector<32xf32>
    %4 = vector.multi_reduction <add>, %1, %cst [1] : vector<32x128xf32> to vector<32xf32>
    %5 = vector.shape_cast %4 : vector<32xf32> to vector<32x1xf32>
    %cst_6 = arith.constant 1.280000e+02 : f32
    %6 = vector.broadcast %cst_6 : f32 to vector<32x1xf32>
    %7 = arith.divf %5, %6 : vector<32x1xf32>
    %8 = vector.broadcast %7 : vector<32x1xf32> to vector<32x128xf32>
    %9 = arith.subf %1, %8 : vector<32x128xf32>
    %10 = arith.mulf %9, %9 : vector<32x128xf32>
    %cst_7 = arith.constant dense<0.000000e+00> : vector<32xf32>
    %11 = vector.multi_reduction <add>, %10, %cst_7 [1] : vector<32x128xf32> to vector<32xf32>
    %12 = vector.shape_cast %11 : vector<32xf32> to vector<32x1xf32>
    %cst_8 = arith.constant 1.280000e+02 : f32
    %13 = vector.broadcast %cst_8 : f32 to vector<32x1xf32>
    %14 = arith.divf %12, %13 : vector<32x1xf32>
    %15 = vector.broadcast %7 : vector<32x1xf32> to vector<32x128xf32>
    %16 = arith.subf %1, %15 : vector<32x128xf32>
    %cst_9 = arith.constant 9.99999974E-6 : f32
    %17 = vector.broadcast %cst_9 : f32 to vector<32x1xf32>
    %18 = arith.addf %14, %17 : vector<32x1xf32>
    %19 = math.rsqrt %18 : vector<32x1xf32>
    %20 = vector.broadcast %19 : vector<32x1xf32> to vector<32x128xf32>
    %21 = arith.mulf %16, %20 : vector<32x128xf32>
    %22 = vector.broadcast %2 : vector<1x128xf32> to vector<32x128xf32>
    %23 = arith.mulf %21, %22 : vector<32x128xf32>
    %24 = vector.broadcast %3 : vector<1x128xf32> to vector<32x128xf32>
    %25 = arith.addf %23, %24 : vector<32x128xf32>
    %26 = arith.truncf %25 : vector<32x128xf32> to vector<32x128xbf16>
    %c0_10 = arith.constant 0 : index
    %c0_11 = arith.constant 0 : index
    %27 = vector.load %arg4[%c0_10, %c0_11] : memref<128x384xbf16, #tpu.memory_space<vmem>>, vector<128x384xbf16>
    %cst_12 = arith.constant dense<0.000000e+00> : vector<32x384xf32>
    %28 = tpu.matmul %26, %27, %cst_12 {dimension_numbers = #tpu.dot_dimension_numbers<[1], [0], [0], [1], [0, 0, 1, 1], [], []>} : vector<32x128xbf16>, vector<128x384xbf16>, vector<32x384xf32> -> vector<32x384xf32>
    %c0_13 = arith.constant 0 : index
    %c0_14 = arith.constant 0 : index
    %29 = vector.load %arg5[%c0_13, %c0_14] : memref<1x384xf32, #tpu.memory_space<vmem>>, vector<1x384xf32>
    %30 = vector.broadcast %29 : vector<1x384xf32> to vector<32x384xf32>
    %31 = arith.addf %28, %30 : vector<32x384xf32>
    %32 = arith.truncf %31 : vector<32x384xf32> to vector<32x384xbf16>
    %33 = vector.extract_strided_slice %32 {offsets = [0, 0], sizes = [16, 32], strides = [1, 1]} : vector<32x384xbf16> to vector<16x32xbf16>
    %34 = vector.extract_strided_slice %32 {offsets = [0, 128], sizes = [16, 32], strides = [1, 1]} : vector<32x384xbf16> to vector<16x32xbf16>
    %35 = vector.extract_strided_slice %32 {offsets = [0, 256], sizes = [16, 32], strides = [1, 1]} : vector<32x384xbf16> to vector<16x32xbf16>
    %cst_15 = arith.constant dense<0.000000e+00> : vector<16x16xf32>
    %36 = tpu.matmul %33, %34, %cst_15 {dimension_numbers = #tpu.dot_dimension_numbers<[1], [1], [0], [0], [0, 0, 1, 0], [], []>} : vector<16x32xbf16>, vector<16x32xbf16>, vector<16x16xf32> -> vector<16x16xf32>
    %cst_16 = arith.constant dense<0xFF800000> : vector<16xf32>
    %37 = vector.multi_reduction <maximumf>, %36, %cst_16 [1] : vector<16x16xf32> to vector<16xf32>
    %38 = vector.shape_cast %37 : vector<16xf32> to vector<16x1xf32>
    %39 = vector.broadcast %38 : vector<16x1xf32> to vector<16x16xf32>
    %40 = arith.subf %36, %39 : vector<16x16xf32>
    %41 = math.exp %40 : vector<16x16xf32>
    %cst_17 = arith.constant dense<0.000000e+00> : vector<16xf32>
    %42 = vector.multi_reduction <add>, %41, %cst_17 [1] : vector<16x16xf32> to vector<16xf32>
    %43 = vector.shape_cast %42 : vector<16xf32> to vector<16x1xf32>
    %44 = arith.truncf %41 : vector<16x16xf32> to vector<16x16xbf16>
    %cst_18 = arith.constant dense<0.000000e+00> : vector<16x32xf32>
    %45 = tpu.matmul %44, %35, %cst_18 {dimension_numbers = #tpu.dot_dimension_numbers<[1], [0], [0], [1], [0, 0, 1, 1], [], []>} : vector<16x16xbf16>, vector<16x32xbf16>, vector<16x32xf32> -> vector<16x32xf32>
    %46 = tpu.reciprocal %43 : vector<16x1xf32> -> vector<16x1xf32>
    %47 = vector.broadcast %46 : vector<16x1xf32> to vector<16x32xf32>
    %48 = arith.mulf %45, %47 : vector<16x32xf32>
    %49 = arith.truncf %48 : vector<16x32xf32> to vector<16x32xbf16>
    %50 = vector.extract_strided_slice %32 {offsets = [0, 32], sizes = [16, 32], strides = [1, 1]} : vector<32x384xbf16> to vector<16x32xbf16>
    %51 = vector.extract_strided_slice %32 {offsets = [0, 160], sizes = [16, 32], strides = [1, 1]} : vector<32x384xbf16> to vector<16x32xbf16>
    %52 = vector.extract_strided_slice %32 {offsets = [0, 288], sizes = [16, 32], strides = [1, 1]} : vector<32x384xbf16> to vector<16x32xbf16>
    %cst_19 = arith.constant dense<0.000000e+00> : vector<16x16xf32>
    %53 = tpu.matmul %50, %51, %cst_19 {dimension_numbers = #tpu.dot_dimension_numbers<[1], [1], [0], [0], [0, 0, 1, 0], [], []>} : vector<16x32xbf16>, vector<16x32xbf16>, vector<16x16xf32> -> vector<16x16xf32>
    %cst_20 = arith.constant dense<0xFF800000> : vector<16xf32>
    %54 = vector.multi_reduction <maximumf>, %53, %cst_20 [1] : vector<16x16xf32> to vector<16xf32>
    %55 = vector.shape_cast %54 : vector<16xf32> to vector<16x1xf32>
    %56 = vector.broadcast %55 : vector<16x1xf32> to vector<16x16xf32>
    %57 = arith.subf %53, %56 : vector<16x16xf32>
    %58 = math.exp %57 : vector<16x16xf32>
    %cst_21 = arith.constant dense<0.000000e+00> : vector<16xf32>
    %59 = vector.multi_reduction <add>, %58, %cst_21 [1] : vector<16x16xf32> to vector<16xf32>
    %60 = vector.shape_cast %59 : vector<16xf32> to vector<16x1xf32>
    %61 = arith.truncf %58 : vector<16x16xf32> to vector<16x16xbf16>
    %cst_22 = arith.constant dense<0.000000e+00> : vector<16x32xf32>
    %62 = tpu.matmul %61, %52, %cst_22 {dimension_numbers = #tpu.dot_dimension_numbers<[1], [0], [0], [1], [0, 0, 1, 1], [], []>} : vector<16x16xbf16>, vector<16x32xbf16>, vector<16x32xf32> -> vector<16x32xf32>
    %63 = tpu.reciprocal %60 : vector<16x1xf32> -> vector<16x1xf32>
    %64 = vector.broadcast %63 : vector<16x1xf32> to vector<16x32xf32>
    %65 = arith.mulf %62, %64 : vector<16x32xf32>
    %66 = arith.truncf %65 : vector<16x32xf32> to vector<16x32xbf16>
    %67 = vector.extract_strided_slice %32 {offsets = [0, 64], sizes = [16, 32], strides = [1, 1]} : vector<32x384xbf16> to vector<16x32xbf16>
    %68 = vector.extract_strided_slice %32 {offsets = [0, 192], sizes = [16, 32], strides = [1, 1]} : vector<32x384xbf16> to vector<16x32xbf16>
    %69 = vector.extract_strided_slice %32 {offsets = [0, 320], sizes = [16, 32], strides = [1, 1]} : vector<32x384xbf16> to vector<16x32xbf16>
    %cst_23 = arith.constant dense<0.000000e+00> : vector<16x16xf32>
    %70 = tpu.matmul %67, %68, %cst_23 {dimension_numbers = #tpu.dot_dimension_numbers<[1], [1], [0], [0], [0, 0, 1, 0], [], []>} : vector<16x32xbf16>, vector<16x32xbf16>, vector<16x16xf32> -> vector<16x16xf32>
    %cst_24 = arith.constant dense<0xFF800000> : vector<16xf32>
    %71 = vector.multi_reduction <maximumf>, %70, %cst_24 [1] : vector<16x16xf32> to vector<16xf32>
    %72 = vector.shape_cast %71 : vector<16xf32> to vector<16x1xf32>
    %73 = vector.broadcast %72 : vector<16x1xf32> to vector<16x16xf32>
    %74 = arith.subf %70, %73 : vector<16x16xf32>
    %75 = math.exp %74 : vector<16x16xf32>
    %cst_25 = arith.constant dense<0.000000e+00> : vector<16xf32>
    %76 = vector.multi_reduction <add>, %75, %cst_25 [1] : vector<16x16xf32> to vector<16xf32>
    %77 = vector.shape_cast %76 : vector<16xf32> to vector<16x1xf32>
    %78 = arith.truncf %75 : vector<16x16xf32> to vector<16x16xbf16>
    %cst_26 = arith.constant dense<0.000000e+00> : vector<16x32xf32>
    %79 = tpu.matmul %78, %69, %cst_26 {dimension_numbers = #tpu.dot_dimension_numbers<[1], [0], [0], [1], [0, 0, 1, 1], [], []>} : vector<16x16xbf16>, vector<16x32xbf16>, vector<16x32xf32> -> vector<16x32xf32>
    %80 = tpu.reciprocal %77 : vector<16x1xf32> -> vector<16x1xf32>
    %81 = vector.broadcast %80 : vector<16x1xf32> to vector<16x32xf32>
    %82 = arith.mulf %79, %81 : vector<16x32xf32>
    %83 = arith.truncf %82 : vector<16x32xf32> to vector<16x32xbf16>
    %84 = vector.extract_strided_slice %32 {offsets = [0, 96], sizes = [16, 32], strides = [1, 1]} : vector<32x384xbf16> to vector<16x32xbf16>
    %85 = vector.extract_strided_slice %32 {offsets = [0, 224], sizes = [16, 32], strides = [1, 1]} : vector<32x384xbf16> to vector<16x32xbf16>
    %86 = vector.extract_strided_slice %32 {offsets = [0, 352], sizes = [16, 32], strides = [1, 1]} : vector<32x384xbf16> to vector<16x32xbf16>
    %cst_27 = arith.constant dense<0.000000e+00> : vector<16x16xf32>
    %87 = tpu.matmul %84, %85, %cst_27 {dimension_numbers = #tpu.dot_dimension_numbers<[1], [1], [0], [0], [0, 0, 1, 0], [], []>} : vector<16x32xbf16>, vector<16x32xbf16>, vector<16x16xf32> -> vector<16x16xf32>
    %cst_28 = arith.constant dense<0xFF800000> : vector<16xf32>
    %88 = vector.multi_reduction <maximumf>, %87, %cst_28 [1] : vector<16x16xf32> to vector<16xf32>
    %89 = vector.shape_cast %88 : vector<16xf32> to vector<16x1xf32>
    %90 = vector.broadcast %89 : vector<16x1xf32> to vector<16x16xf32>
    %91 = arith.subf %87, %90 : vector<16x16xf32>
    %92 = math.exp %91 : vector<16x16xf32>
    %cst_29 = arith.constant dense<0.000000e+00> : vector<16xf32>
    %93 = vector.multi_reduction <add>, %92, %cst_29 [1] : vector<16x16xf32> to vector<16xf32>
    %94 = vector.shape_cast %93 : vector<16xf32> to vector<16x1xf32>
    %95 = arith.truncf %92 : vector<16x16xf32> to vector<16x16xbf16>
    %cst_30 = arith.constant dense<0.000000e+00> : vector<16x32xf32>
    %96 = tpu.matmul %95, %86, %cst_30 {dimension_numbers = #tpu.dot_dimension_numbers<[1], [0], [0], [1], [0, 0, 1, 1], [], []>} : vector<16x16xbf16>, vector<16x32xbf16>, vector<16x32xf32> -> vector<16x32xf32>
    %97 = tpu.reciprocal %94 : vector<16x1xf32> -> vector<16x1xf32>
    %98 = vector.broadcast %97 : vector<16x1xf32> to vector<16x32xf32>
    %99 = arith.mulf %96, %98 : vector<16x32xf32>
    %100 = arith.truncf %99 : vector<16x32xf32> to vector<16x32xbf16>
    %101 = tpu.concatenate %49, %66, %83, %100 in 1 : vector<16x32xbf16>, vector<16x32xbf16>, vector<16x32xbf16>, vector<16x32xbf16> -> vector<16x128xbf16>
    %102 = vector.extract_strided_slice %32 {offsets = [16, 0], sizes = [16, 32], strides = [1, 1]} : vector<32x384xbf16> to vector<16x32xbf16>
    %103 = vector.extract_strided_slice %32 {offsets = [16, 128], sizes = [16, 32], strides = [1, 1]} : vector<32x384xbf16> to vector<16x32xbf16>
    %104 = vector.extract_strided_slice %32 {offsets = [16, 256], sizes = [16, 32], strides = [1, 1]} : vector<32x384xbf16> to vector<16x32xbf16>
    %cst_31 = arith.constant dense<0.000000e+00> : vector<16x16xf32>
    %105 = tpu.matmul %102, %103, %cst_31 {dimension_numbers = #tpu.dot_dimension_numbers<[1], [1], [0], [0], [0, 0, 1, 0], [], []>} : vector<16x32xbf16>, vector<16x32xbf16>, vector<16x16xf32> -> vector<16x16xf32>
    %cst_32 = arith.constant dense<0xFF800000> : vector<16xf32>
    %106 = vector.multi_reduction <maximumf>, %105, %cst_32 [1] : vector<16x16xf32> to vector<16xf32>
    %107 = vector.shape_cast %106 : vector<16xf32> to vector<16x1xf32>
    %108 = vector.broadcast %107 : vector<16x1xf32> to vector<16x16xf32>
    %109 = arith.subf %105, %108 : vector<16x16xf32>
    %110 = math.exp %109 : vector<16x16xf32>
    %cst_33 = arith.constant dense<0.000000e+00> : vector<16xf32>
    %111 = vector.multi_reduction <add>, %110, %cst_33 [1] : vector<16x16xf32> to vector<16xf32>
    %112 = vector.shape_cast %111 : vector<16xf32> to vector<16x1xf32>
    %113 = arith.truncf %110 : vector<16x16xf32> to vector<16x16xbf16>
    %cst_34 = arith.constant dense<0.000000e+00> : vector<16x32xf32>
    %114 = tpu.matmul %113, %104, %cst_34 {dimension_numbers = #tpu.dot_dimension_numbers<[1], [0], [0], [1], [0, 0, 1, 1], [], []>} : vector<16x16xbf16>, vector<16x32xbf16>, vector<16x32xf32> -> vector<16x32xf32>
    %115 = tpu.reciprocal %112 : vector<16x1xf32> -> vector<16x1xf32>
    %116 = vector.broadcast %115 : vector<16x1xf32> to vector<16x32xf32>
    %117 = arith.mulf %114, %116 : vector<16x32xf32>
    %118 = arith.truncf %117 : vector<16x32xf32> to vector<16x32xbf16>
    %119 = vector.extract_strided_slice %32 {offsets = [16, 32], sizes = [16, 32], strides = [1, 1]} : vector<32x384xbf16> to vector<16x32xbf16>
    %120 = vector.extract_strided_slice %32 {offsets = [16, 160], sizes = [16, 32], strides = [1, 1]} : vector<32x384xbf16> to vector<16x32xbf16>
    %121 = vector.extract_strided_slice %32 {offsets = [16, 288], sizes = [16, 32], strides = [1, 1]} : vector<32x384xbf16> to vector<16x32xbf16>
    %cst_35 = arith.constant dense<0.000000e+00> : vector<16x16xf32>
    %122 = tpu.matmul %119, %120, %cst_35 {dimension_numbers = #tpu.dot_dimension_numbers<[1], [1], [0], [0], [0, 0, 1, 0], [], []>} : vector<16x32xbf16>, vector<16x32xbf16>, vector<16x16xf32> -> vector<16x16xf32>
    %cst_36 = arith.constant dense<0xFF800000> : vector<16xf32>
    %123 = vector.multi_reduction <maximumf>, %122, %cst_36 [1] : vector<16x16xf32> to vector<16xf32>
    %124 = vector.shape_cast %123 : vector<16xf32> to vector<16x1xf32>
    %125 = vector.broadcast %124 : vector<16x1xf32> to vector<16x16xf32>
    %126 = arith.subf %122, %125 : vector<16x16xf32>
    %127 = math.exp %126 : vector<16x16xf32>
    %cst_37 = arith.constant dense<0.000000e+00> : vector<16xf32>
    %128 = vector.multi_reduction <add>, %127, %cst_37 [1] : vector<16x16xf32> to vector<16xf32>
    %129 = vector.shape_cast %128 : vector<16xf32> to vector<16x1xf32>
    %130 = arith.truncf %127 : vector<16x16xf32> to vector<16x16xbf16>
    %cst_38 = arith.constant dense<0.000000e+00> : vector<16x32xf32>
    %131 = tpu.matmul %130, %121, %cst_38 {dimension_numbers = #tpu.dot_dimension_numbers<[1], [0], [0], [1], [0, 0, 1, 1], [], []>} : vector<16x16xbf16>, vector<16x32xbf16>, vector<16x32xf32> -> vector<16x32xf32>
    %132 = tpu.reciprocal %129 : vector<16x1xf32> -> vector<16x1xf32>
    %133 = vector.broadcast %132 : vector<16x1xf32> to vector<16x32xf32>
    %134 = arith.mulf %131, %133 : vector<16x32xf32>
    %135 = arith.truncf %134 : vector<16x32xf32> to vector<16x32xbf16>
    %136 = vector.extract_strided_slice %32 {offsets = [16, 64], sizes = [16, 32], strides = [1, 1]} : vector<32x384xbf16> to vector<16x32xbf16>
    %137 = vector.extract_strided_slice %32 {offsets = [16, 192], sizes = [16, 32], strides = [1, 1]} : vector<32x384xbf16> to vector<16x32xbf16>
    %138 = vector.extract_strided_slice %32 {offsets = [16, 320], sizes = [16, 32], strides = [1, 1]} : vector<32x384xbf16> to vector<16x32xbf16>
    %cst_39 = arith.constant dense<0.000000e+00> : vector<16x16xf32>
    %139 = tpu.matmul %136, %137, %cst_39 {dimension_numbers = #tpu.dot_dimension_numbers<[1], [1], [0], [0], [0, 0, 1, 0], [], []>} : vector<16x32xbf16>, vector<16x32xbf16>, vector<16x16xf32> -> vector<16x16xf32>
    %cst_40 = arith.constant dense<0xFF800000> : vector<16xf32>
    %140 = vector.multi_reduction <maximumf>, %139, %cst_40 [1] : vector<16x16xf32> to vector<16xf32>
    %141 = vector.shape_cast %140 : vector<16xf32> to vector<16x1xf32>
    %142 = vector.broadcast %141 : vector<16x1xf32> to vector<16x16xf32>
    %143 = arith.subf %139, %142 : vector<16x16xf32>
    %144 = math.exp %143 : vector<16x16xf32>
    %cst_41 = arith.constant dense<0.000000e+00> : vector<16xf32>
    %145 = vector.multi_reduction <add>, %144, %cst_41 [1] : vector<16x16xf32> to vector<16xf32>
    %146 = vector.shape_cast %145 : vector<16xf32> to vector<16x1xf32>
    %147 = arith.truncf %144 : vector<16x16xf32> to vector<16x16xbf16>
    %cst_42 = arith.constant dense<0.000000e+00> : vector<16x32xf32>
    %148 = tpu.matmul %147, %138, %cst_42 {dimension_numbers = #tpu.dot_dimension_numbers<[1], [0], [0], [1], [0, 0, 1, 1], [], []>} : vector<16x16xbf16>, vector<16x32xbf16>, vector<16x32xf32> -> vector<16x32xf32>
    %149 = tpu.reciprocal %146 : vector<16x1xf32> -> vector<16x1xf32>
    %150 = vector.broadcast %149 : vector<16x1xf32> to vector<16x32xf32>
    %151 = arith.mulf %148, %150 : vector<16x32xf32>
    %152 = arith.truncf %151 : vector<16x32xf32> to vector<16x32xbf16>
    %153 = vector.extract_strided_slice %32 {offsets = [16, 96], sizes = [16, 32], strides = [1, 1]} : vector<32x384xbf16> to vector<16x32xbf16>
    %154 = vector.extract_strided_slice %32 {offsets = [16, 224], sizes = [16, 32], strides = [1, 1]} : vector<32x384xbf16> to vector<16x32xbf16>
    %155 = vector.extract_strided_slice %32 {offsets = [16, 352], sizes = [16, 32], strides = [1, 1]} : vector<32x384xbf16> to vector<16x32xbf16>
    %cst_43 = arith.constant dense<0.000000e+00> : vector<16x16xf32>
    %156 = tpu.matmul %153, %154, %cst_43 {dimension_numbers = #tpu.dot_dimension_numbers<[1], [1], [0], [0], [0, 0, 1, 0], [], []>} : vector<16x32xbf16>, vector<16x32xbf16>, vector<16x16xf32> -> vector<16x16xf32>
    %cst_44 = arith.constant dense<0xFF800000> : vector<16xf32>
    %157 = vector.multi_reduction <maximumf>, %156, %cst_44 [1] : vector<16x16xf32> to vector<16xf32>
    %158 = vector.shape_cast %157 : vector<16xf32> to vector<16x1xf32>
    %159 = vector.broadcast %158 : vector<16x1xf32> to vector<16x16xf32>
    %160 = arith.subf %156, %159 : vector<16x16xf32>
    %161 = math.exp %160 : vector<16x16xf32>
    %cst_45 = arith.constant dense<0.000000e+00> : vector<16xf32>
    %162 = vector.multi_reduction <add>, %161, %cst_45 [1] : vector<16x16xf32> to vector<16xf32>
    %163 = vector.shape_cast %162 : vector<16xf32> to vector<16x1xf32>
    %164 = arith.truncf %161 : vector<16x16xf32> to vector<16x16xbf16>
    %cst_46 = arith.constant dense<0.000000e+00> : vector<16x32xf32>
    %165 = tpu.matmul %164, %155, %cst_46 {dimension_numbers = #tpu.dot_dimension_numbers<[1], [0], [0], [1], [0, 0, 1, 1], [], []>} : vector<16x16xbf16>, vector<16x32xbf16>, vector<16x32xf32> -> vector<16x32xf32>
    %166 = tpu.reciprocal %163 : vector<16x1xf32> -> vector<16x1xf32>
    %167 = vector.broadcast %166 : vector<16x1xf32> to vector<16x32xf32>
    %168 = arith.mulf %165, %167 : vector<16x32xf32>
    %169 = arith.truncf %168 : vector<16x32xf32> to vector<16x32xbf16>
    %170 = tpu.concatenate %118, %135, %152, %169 in 1 : vector<16x32xbf16>, vector<16x32xbf16>, vector<16x32xbf16>, vector<16x32xbf16> -> vector<16x128xbf16>
    %171 = tpu.concatenate %101, %170 in 0 : vector<16x128xbf16>, vector<16x128xbf16> -> vector<32x128xbf16>
    %c0_47 = arith.constant 0 : index
    %c0_48 = arith.constant 0 : index
    %172 = vector.load %arg6[%c0_47, %c0_48] : memref<128x128xbf16, #tpu.memory_space<vmem>>, vector<128x128xbf16>
    %cst_49 = arith.constant dense<0.000000e+00> : vector<32x128xf32>
    %173 = tpu.matmul %171, %172, %cst_49 {dimension_numbers = #tpu.dot_dimension_numbers<[1], [0], [0], [1], [0, 0, 1, 1], [], []>} : vector<32x128xbf16>, vector<128x128xbf16>, vector<32x128xf32> -> vector<32x128xf32>
    %c0_50 = arith.constant 0 : index
    %c0_51 = arith.constant 0 : index
    %174 = vector.load %arg7[%c0_50, %c0_51] : memref<1x128xf32, #tpu.memory_space<vmem>>, vector<1x128xf32>
    %175 = vector.broadcast %174 : vector<1x128xf32> to vector<32x128xf32>
    %176 = arith.addf %173, %175 : vector<32x128xf32>
    %177 = arith.addf %1, %176 : vector<32x128xf32>
    %c0_52 = arith.constant 0 : index
    %c0_53 = arith.constant 0 : index
    %178 = vector.load %arg8[%c0_52, %c0_53] : memref<1x128xf32, #tpu.memory_space<vmem>>, vector<1x128xf32>
    %c0_54 = arith.constant 0 : index
    %c0_55 = arith.constant 0 : index
    %179 = vector.load %arg9[%c0_54, %c0_55] : memref<1x128xf32, #tpu.memory_space<vmem>>, vector<1x128xf32>
    %cst_56 = arith.constant dense<0.000000e+00> : vector<32xf32>
    %180 = vector.multi_reduction <add>, %177, %cst_56 [1] : vector<32x128xf32> to vector<32xf32>
    %181 = vector.shape_cast %180 : vector<32xf32> to vector<32x1xf32>
    %cst_57 = arith.constant 1.280000e+02 : f32
    %182 = vector.broadcast %cst_57 : f32 to vector<32x1xf32>
    %183 = arith.divf %181, %182 : vector<32x1xf32>
    %184 = vector.broadcast %183 : vector<32x1xf32> to vector<32x128xf32>
    %185 = arith.subf %177, %184 : vector<32x128xf32>
    %186 = arith.mulf %185, %185 : vector<32x128xf32>
    %cst_58 = arith.constant dense<0.000000e+00> : vector<32xf32>
    %187 = vector.multi_reduction <add>, %186, %cst_58 [1] : vector<32x128xf32> to vector<32xf32>
    %188 = vector.shape_cast %187 : vector<32xf32> to vector<32x1xf32>
    %cst_59 = arith.constant 1.280000e+02 : f32
    %189 = vector.broadcast %cst_59 : f32 to vector<32x1xf32>
    %190 = arith.divf %188, %189 : vector<32x1xf32>
    %191 = vector.broadcast %183 : vector<32x1xf32> to vector<32x128xf32>
    %192 = arith.subf %177, %191 : vector<32x128xf32>
    %cst_60 = arith.constant 9.99999974E-6 : f32
    %193 = vector.broadcast %cst_60 : f32 to vector<32x1xf32>
    %194 = arith.addf %190, %193 : vector<32x1xf32>
    %195 = math.rsqrt %194 : vector<32x1xf32>
    %196 = vector.broadcast %195 : vector<32x1xf32> to vector<32x128xf32>
    %197 = arith.mulf %192, %196 : vector<32x128xf32>
    %198 = vector.broadcast %178 : vector<1x128xf32> to vector<32x128xf32>
    %199 = arith.mulf %197, %198 : vector<32x128xf32>
    %200 = vector.broadcast %179 : vector<1x128xf32> to vector<32x128xf32>
    %201 = arith.addf %199, %200 : vector<32x128xf32>
    %202 = arith.truncf %201 : vector<32x128xf32> to vector<32x128xbf16>
    %c0_61 = arith.constant 0 : index
    %c0_62 = arith.constant 0 : index
    %203 = vector.load %arg10[%c0_61, %c0_62] : memref<128x256xbf16, #tpu.memory_space<vmem>>, vector<128x256xbf16>
    %cst_63 = arith.constant dense<0.000000e+00> : vector<32x256xf32>
    %204 = tpu.matmul %202, %203, %cst_63 {dimension_numbers = #tpu.dot_dimension_numbers<[1], [0], [0], [1], [0, 0, 1, 1], [], []>} : vector<32x128xbf16>, vector<128x256xbf16>, vector<32x256xf32> -> vector<32x256xf32>
    %c0_64 = arith.constant 0 : index
    %c0_65 = arith.constant 0 : index
    %205 = vector.load %arg11[%c0_64, %c0_65] : memref<1x256xf32, #tpu.memory_space<vmem>>, vector<1x256xf32>
    %206 = vector.broadcast %205 : vector<1x256xf32> to vector<32x256xf32>
    %207 = arith.addf %204, %206 : vector<32x256xf32>
    %cst_66 = arith.constant 5.000000e-01 : f32
    %208 = vector.broadcast %cst_66 : f32 to vector<32x256xf32>
    %209 = arith.mulf %208, %207 : vector<32x256xf32>
    %cst_67 = arith.constant 0.707106769 : f32
    %210 = vector.broadcast %cst_67 : f32 to vector<32x256xf32>
    %211 = arith.mulf %207, %210 : vector<32x256xf32>
    %212 = math.erf %211 : vector<32x256xf32>
    %cst_68 = arith.constant 1.000000e+00 : f32
    %213 = vector.broadcast %cst_68 : f32 to vector<32x256xf32>
    %214 = arith.addf %213, %212 : vector<32x256xf32>
    %215 = arith.mulf %209, %214 : vector<32x256xf32>
    %216 = arith.truncf %215 : vector<32x256xf32> to vector<32x256xbf16>
    %c0_69 = arith.constant 0 : index
    %c0_70 = arith.constant 0 : index
    %217 = vector.load %arg12[%c0_69, %c0_70] : memref<256x128xbf16, #tpu.memory_space<vmem>>, vector<256x128xbf16>
    %cst_71 = arith.constant dense<0.000000e+00> : vector<32x128xf32>
    %218 = tpu.matmul %216, %217, %cst_71 {dimension_numbers = #tpu.dot_dimension_numbers<[1], [0], [0], [1], [0, 0, 1, 1], [], []>} : vector<32x256xbf16>, vector<256x128xbf16>, vector<32x128xf32> -> vector<32x128xf32>
    %c0_72 = arith.constant 0 : index
    %c0_73 = arith.constant 0 : index
    %219 = vector.load %arg13[%c0_72, %c0_73] : memref<1x128xf32, #tpu.memory_space<vmem>>, vector<1x128xf32>
    %220 = vector.broadcast %219 : vector<1x128xf32> to vector<32x128xf32>
    %221 = arith.addf %218, %220 : vector<32x128xf32>
    %222 = arith.addf %177, %221 : vector<32x128xf32>
    %223 = vector.shape_cast %222 : vector<32x128xf32> to vector<2x16x128xf32>
    %c0_74 = arith.constant 0 : index
    %c0_75 = arith.constant 0 : index
    %c0_76 = arith.constant 0 : index
    %224 = vector.load %arg14[%c0_74, %c0_75, %c0_76] : memref<2x16x128xf32, #tpu.memory_space<vmem>>, vector<2x16x128xf32>
    tpu.vector_store %arg14[%c0_74, %c0_75, %c0_76], %223 {strides = array<i32>} : memref<2x16x128xf32, #tpu.memory_space<vmem>>, vector<2x16x128xf32>,
    return
  }
  func.func @transform_0(%arg0: i32) -> (i32, i32, i32) {
    %c0_i32 = arith.constant 0 : i32
    %c0_i32_0 = arith.constant 0 : i32
    %c0_i32_1 = arith.constant 0 : i32
    return %arg0, %c0_i32, %c0_i32_0 : i32, i32, i32
  }
  func.func @transform_1(%arg0: i32) -> (i32, i32) {
    %c0_i32 = arith.constant 0 : i32
    %c0_i32_0 = arith.constant 0 : i32
    %c0_i32_1 = arith.constant 0 : i32
    return %c0_i32, %c0_i32_0 : i32, i32
  }
  func.func @transform_2(%arg0: i32) -> (i32, i32) {
    %c0_i32 = arith.constant 0 : i32
    %c0_i32_0 = arith.constant 0 : i32
    %c0_i32_1 = arith.constant 0 : i32
    return %c0_i32, %c0_i32_0 : i32, i32
  }
  func.func @transform_3(%arg0: i32) -> (i32, i32) {
    %c0_i32 = arith.constant 0 : i32
    %c0_i32_0 = arith.constant 0 : i32
    %c0_i32_1 = arith.constant 0 : i32
    return %c0_i32, %c0_i32_0 : i32, i32
  }
  func.func @transform_4(%arg0: i32) -> (i32, i32) {
    %c0_i32 = arith.constant 0 : i32
    %c0_i32_0 = arith.constant 0 : i32
    %c0_i32_1 = arith.constant 0 : i32
    return %c0_i32, %c0_i32_0 : i32, i32
  }
  func.func @transform_5(%arg0: i32) -> (i32, i32) {
    %c0_i32 = arith.constant 0 : i32
    %c0_i32_0 = arith.constant 0 : i32
    %c0_i32_1 = arith.constant 0 : i32
    return %c0_i32, %c0_i32_0 : i32, i32
  }
  func.func @transform_6(%arg0: i32) -> (i32, i32) {
    %c0_i32 = arith.constant 0 : i32
    %c0_i32_0 = arith.constant 0 : i32
    %c0_i32_1 = arith.constant 0 : i32
    return %c0_i32, %c0_i32_0 : i32, i32
  }
  func.func @transform_7(%arg0: i32) -> (i32, i32) {
    %c0_i32 = arith.constant 0 : i32
    %c0_i32_0 = arith.constant 0 : i32
    %c0_i32_1 = arith.constant 0 : i32
    return %c0_i32, %c0_i32_0 : i32, i32
  }
  func.func @transform_8(%arg0: i32) -> (i32, i32) {
    %c0_i32 = arith.constant 0 : i32
    %c0_i32_0 = arith.constant 0 : i32
    %c0_i32_1 = arith.constant 0 : i32
    return %c0_i32, %c0_i32_0 : i32, i32
  }
  func.func @transform_9(%arg0: i32) -> (i32, i32) {
    %c0_i32 = arith.constant 0 : i32
    %c0_i32_0 = arith.constant 0 : i32
    %c0_i32_1 = arith.constant 0 : i32
    return %c0_i32, %c0_i32_0 : i32, i32
  }
  func.func @transform_10(%arg0: i32) -> (i32, i32) {
    %c0_i32 = arith.constant 0 : i32
    %c0_i32_0 = arith.constant 0 : i32
    %c0_i32_1 = arith.constant 0 : i32
    return %c0_i32, %c0_i32_0 : i32, i32
  }
  func.func @transform_11(%arg0: i32) -> (i32, i32) {
    %c0_i32 = arith.constant 0 : i32
    %c0_i32_0 = arith.constant 0 : i32
    %c0_i32_1 = arith.constant 0 : i32
    return %c0_i32, %c0_i32_0 : i32, i32
  }
  func.func @transform_12(%arg0: i32) -> (i32, i32) {
    %c0_i32 = arith.constant 0 : i32
    %c0_i32_0 = arith.constant 0 : i32
    %c0_i32_1 = arith.constant 0 : i32
    return %c0_i32, %c0_i32_0 : i32, i32
  }
  func.func @transform_13(%arg0: i32) -> (i32, i32, i32) {
    %c0_i32 = arith.constant 0 : i32
    %c0_i32_0 = arith.constant 0 : i32
    %c0_i32_1 = arith.constant 0 : i32
    return %arg0, %c0_i32, %c0_i32_0 : i32, i32, i32
  }
}

module attributes {stable_mosaic.version = 11 : i64} {
  func.func @encoder_layer_kernel(%arg0: i32, %arg1: memref<2x16x128xf32, #tpu.memory_space<vmem>>, %arg2: memref<1x128xf32, #tpu.memory_space<vmem>>, %arg3: memref<1x128xf32, #tpu.memory_space<vmem>>, %arg4: memref<128x384xbf16, #tpu.memory_space<vmem>>, %arg5: memref<1x384xf32, #tpu.memory_space<vmem>>, %arg6: memref<128x128xbf16, #tpu.memory_space<vmem>>, %arg7: memref<1x128xf32, #tpu.memory_space<vmem>>, %arg8: memref<1x128xf32, #tpu.memory_space<vmem>>, %arg9: memref<1x128xf32, #tpu.memory_space<vmem>>, %arg10: memref<128x256xbf16, #tpu.memory_space<vmem>>, %arg11: memref<1x256xf32, #tpu.memory_space<vmem>>, %arg12: memref<256x128xbf16, #tpu.memory_space<vmem>>, %arg13: memref<1x128xf32, #tpu.memory_space<vmem>>, %arg14: memref<2x16x128xf32, #tpu.memory_space<vmem>>) attributes {dimension_semantics = [#tpu.dimension_semantics<parallel>], iteration_bounds = array<i64: 1>, scalar_prefetch = 0 : i64, scratch_operands = 0 : i64, tpu.core_type = #tpu.core_type<tc>, window_params = [{transform_indices = @transform_0, window_bounds = array<i64: 2, 16, 128>}, {pipeline_mode = #tpu.pipeline_mode<synchronous>, transform_indices = @transform_1, window_bounds = array<i64: 1, 128>}, {pipeline_mode = #tpu.pipeline_mode<synchronous>, transform_indices = @transform_2, window_bounds = array<i64: 1, 128>}, {pipeline_mode = #tpu.pipeline_mode<synchronous>, transform_indices = @transform_3, window_bounds = array<i64: 128, 384>}, {pipeline_mode = #tpu.pipeline_mode<synchronous>, transform_indices = @transform_4, window_bounds = array<i64: 1, 384>}, {pipeline_mode = #tpu.pipeline_mode<synchronous>, transform_indices = @transform_5, window_bounds = array<i64: 128, 128>}, {pipeline_mode = #tpu.pipeline_mode<synchronous>, transform_indices = @transform_6, window_bounds = array<i64: 1, 128>}, {pipeline_mode = #tpu.pipeline_mode<synchronous>, transform_indices = @transform_7, window_bounds = array<i64: 1, 128>}, {pipeline_mode = #tpu.pipeline_mode<synchronous>, transform_indices = @transform_8, window_bounds = array<i64: 1, 128>}, {pipeline_mode = #tpu.pipeline_mode<synchronous>, transform_indices = @transform_9, window_bounds = array<i64: 128, 256>}, {pipeline_mode = #tpu.pipeline_mode<synchronous>, transform_indices = @transform_10, window_bounds = array<i64: 1, 256>}, {pipeline_mode = #tpu.pipeline_mode<synchronous>, transform_indices = @transform_11, window_bounds = array<i64: 256, 128>}, {pipeline_mode = #tpu.pipeline_mode<synchronous>, transform_indices = @transform_12, window_bounds = array<i64: 1, 128>}, {transform_indices = @transform_13, window_bounds = array<i64: 2, 16, 128>}]} {
    %c0 = arith.constant 0 : index
    %c0_0 = arith.constant 0 : index
    %c0_1 = arith.constant 0 : index
    %0 = vector.load %arg1[%c0, %c0_0, %c0_1] : memref<2x16x128xf32, #tpu.memory_space<vmem>>, vector<2x16x128xf32>
    %1 = vector.shape_cast %0 : vector<2x16x128xf32> to vector<32x128xf32>
    %c0_2 = arith.constant 0 : index
    %c0_3 = arith.constant 0 : index
    %2 = vector.load %arg2[%c0_2, %c0_3] : memref<1x128xf32, #tpu.memory_space<vmem>>, vector<1x128xf32>
    %c0_4 = arith.constant 0 : index
    %c0_5 = arith.constant 0 : index
    %3 = vector.load %arg3[%c0_4, %c0_5] : memref<1x128xf32, #tpu.memory_space<vmem>>, vector<1x128xf32>
    %cst = arith.constant dense<0.000000e+00> : vector<32xf32>
    %4 = vector.multi_reduction <add>, %1, %cst [1] : vector<32x128xf32> to vector<32xf32>
    %5 = vector.shape_cast %4 : vector<32xf32> to vector<32x1xf32>
    %cst_6 = arith.constant 1.280000e+02 : f32
    %6 = vector.broadcast %cst_6 : f32 to vector<32x1xf32>
    %7 = arith.divf %5, %6 : vector<32x1xf32>
    %8 = vector.broadcast %7 : vector<32x1xf32> to vector<32x128xf32>
    %9 = arith.subf %1, %8 : vector<32x128xf32>
    %10 = arith.mulf %9, %9 : vector<32x128xf32>
    %cst_7 = arith.constant dense<0.000000e+00> : vector<32xf32>
    %11 = vector.multi_reduction <add>, %10, %cst_7 [1] : vector<32x128xf32> to vector<32xf32>
    %12 = vector.shape_cast %11 : vector<32xf32> to vector<32x1xf32>
    %cst_8 = arith.constant 1.280000e+02 : f32
    %13 = vector.broadcast %cst_8 : f32 to vector<32x1xf32>
    %14 = arith.divf %12, %13 : vector<32x1xf32>
    %15 = vector.broadcast %7 : vector<32x1xf32> to vector<32x128xf32>
    %16 = arith.subf %1, %15 : vector<32x128xf32>
    %cst_9 = arith.constant 9.99999974E-6 : f32
    %17 = vector.broadcast %cst_9 : f32 to vector<32x1xf32>
    %18 = arith.addf %14, %17 : vector<32x1xf32>
    %19 = math.rsqrt %18 : vector<32x1xf32>
    %20 = vector.broadcast %19 : vector<32x1xf32> to vector<32x128xf32>
    %21 = arith.mulf %16, %20 : vector<32x128xf32>
    %22 = vector.broadcast %2 : vector<1x128xf32> to vector<32x128xf32>
    %23 = arith.mulf %21, %22 : vector<32x128xf32>
    %24 = vector.broadcast %3 : vector<1x128xf32> to vector<32x128xf32>
    %25 = arith.addf %23, %24 : vector<32x128xf32>
    %26 = arith.truncf %25 : vector<32x128xf32> to vector<32x128xbf16>
    %c0_10 = arith.constant 0 : index
    %c0_11 = arith.constant 0 : index
    %27 = vector.load %arg4[%c0_10, %c0_11] : memref<128x384xbf16, #tpu.memory_space<vmem>>, vector<128x384xbf16>
    %cst_12 = arith.constant dense<0.000000e+00> : vector<32x384xf32>
    %28 = tpu.matmul %26, %27, %cst_12 {dimension_numbers = #tpu.dot_dimension_numbers<[1], [0], [0], [1], [0, 0, 1, 1], [], []>} : vector<32x128xbf16>, vector<128x384xbf16>, vector<32x384xf32> -> vector<32x384xf32>
    %c0_13 = arith.constant 0 : index
    %c0_14 = arith.constant 0 : index
    %29 = vector.load %arg5[%c0_13, %c0_14] : memref<1x384xf32, #tpu.memory_space<vmem>>, vector<1x384xf32>
    %30 = vector.broadcast %29 : vector<1x384xf32> to vector<32x384xf32>
    %31 = arith.addf %28, %30 : vector<32x384xf32>
    %32 = arith.truncf %31 : vector<32x384xf32> to vector<32x384xbf16>
    %33 = vector.extract_strided_slice %32 {offsets = [0, 0], sizes = [16, 32], strides = [1, 1]} : vector<32x384xbf16> to vector<16x32xbf16>
    %34 = vector.extract_strided_slice %32 {offsets = [0, 128], sizes = [16, 32], strides = [1, 1]} : vector<32x384xbf16> to vector<16x32xbf16>
    %35 = vector.extract_strided_slice %32 {offsets = [0, 256], sizes = [16, 32], strides = [1, 1]} : vector<32x384xbf16> to vector<16x32xbf16>
    %cst_15 = arith.constant dense<0.000000e+00> : vector<16x16xf32>
    %36 = tpu.matmul %33, %34, %cst_15 {dimension_numbers = #tpu.dot_dimension_numbers<[1], [1], [0], [0], [0, 0, 1, 0], [], []>} : vector<16x32xbf16>, vector<16x32xbf16>, vector<16x16xf32> -> vector<16x16xf32>
    %cst_16 = arith.constant dense<0xFF800000> : vector<16xf32>
    %37 = vector.multi_reduction <maximumf>, %36, %cst_16 [1] : vector<16x16xf32> to vector<16xf32>
    %38 = vector.shape_cast %37 : vector<16xf32> to vector<16x1xf32>
    %39 = vector.broadcast %38 : vector<16x1xf32> to vector<16x16xf32>
    %40 = arith.subf %36, %39 : vector<16x16xf32>
    %41 = math.exp %40 : vector<16x16xf32>
    %cst_17 = arith.constant dense<0.000000e+00> : vector<16xf32>
    %42 = vector.multi_reduction <add>, %41, %cst_17 [1] : vector<16x16xf32> to vector<16xf32>
    %43 = vector.shape_cast %42 : vector<16xf32> to vector<16x1xf32>
    %44 = arith.truncf %41 : vector<16x16xf32> to vector<16x16xbf16>
    %cst_18 = arith.constant dense<0.000000e+00> : vector<16x32xf32>
    %45 = tpu.matmul %44, %35, %cst_18 {dimension_numbers = #tpu.dot_dimension_numbers<[1], [0], [0], [1], [0, 0, 1, 1], [], []>} : vector<16x16xbf16>, vector<16x32xbf16>, vector<16x32xf32> -> vector<16x32xf32>
    %46 = tpu.reciprocal %43 : vector<16x1xf32> -> vector<16x1xf32>
    %47 = vector.broadcast %46 : vector<16x1xf32> to vector<16x32xf32>
    %48 = arith.mulf %45, %47 : vector<16x32xf32>
    %49 = arith.truncf %48 : vector<16x32xf32> to vector<16x32xbf16>
    %50 = vector.extract_strided_slice %32 {offsets = [0, 32], sizes = [16, 32], strides = [1, 1]} : vector<32x384xbf16> to vector<16x32xbf16>
    %51 = vector.extract_strided_slice %32 {offsets = [0, 160], sizes = [16, 32], strides = [1, 1]} : vector<32x384xbf16> to vector<16x32xbf16>
    %52 = vector.extract_strided_slice %32 {offsets = [0, 288], sizes = [16, 32], strides = [1, 1]} : vector<32x384xbf16> to vector<16x32xbf16>
    %cst_19 = arith.constant dense<0.000000e+00> : vector<16x16xf32>
    %53 = tpu.matmul %50, %51, %cst_19 {dimension_numbers = #tpu.dot_dimension_numbers<[1], [1], [0], [0], [0, 0, 1, 0], [], []>} : vector<16x32xbf16>, vector<16x32xbf16>, vector<16x16xf32> -> vector<16x16xf32>
    %cst_20 = arith.constant dense<0xFF800000> : vector<16xf32>
    %54 = vector.multi_reduction <maximumf>, %53, %cst_20 [1] : vector<16x16xf32> to vector<16xf32>
    %55 = vector.shape_cast %54 : vector<16xf32> to vector<16x1xf32>
    %56 = vector.broadcast %55 : vector<16x1xf32> to vector<16x16xf32>
    %57 = arith.subf %53, %56 : vector<16x16xf32>
    %58 = math.exp %57 : vector<16x16xf32>
    %cst_21 = arith.constant dense<0.000000e+00> : vector<16xf32>
    %59 = vector.multi_reduction <add>, %58, %cst_21 [1] : vector<16x16xf32> to vector<16xf32>
    %60 = vector.shape_cast %59 : vector<16xf32> to vector<16x1xf32>
    %61 = arith.truncf %58 : vector<16x16xf32> to vector<16x16xbf16>
    %cst_22 = arith.constant dense<0.000000e+00> : vector<16x32xf32>
    %62 = tpu.matmul %61, %52, %cst_22 {dimension_numbers = #tpu.dot_dimension_numbers<[1], [0], [0], [1], [0, 0, 1, 1], [], []>} : vector<16x16xbf16>, vector<16x32xbf16>, vector<16x32xf32> -> vector<16x32xf32>
    %63 = tpu.reciprocal %60 : vector<16x1xf32> -> vector<16x1xf32>
    %64 = vector.broadcast %63 : vector<16x1xf32> to vector<16x32xf32>
    %65 = arith.mulf %62, %64 : vector<16x32xf32>
    %66 = arith.truncf %65 : vector<16x32xf32> to vector<16x32xbf16>
    %67 = vector.extract_strided_slice %32 {offsets = [0, 64], sizes = [16, 32], strides = [1, 1]} : vector<32x384xbf16> to vector<16x32xbf16>
    %68 = vector.extract_strided_slice %32 {offsets = [0, 192], sizes = [16, 32], strides = [1, 1]} : vector<32x384xbf16> to vector<16x32xbf16>
    %69 = vector.extract_strided_slice %32 {offsets = [0, 320], sizes = [16, 32], strides = [1, 1]} : vector<32x384xbf16> to vector<16x32xbf16>
    %cst_23 = arith.constant dense<0.000000e+00> : vector<16x16xf32>
    %70 = tpu.matmul %67, %68, %cst_23 {dimension_numbers = #tpu.dot_dimension_numbers<[1], [1], [0], [0], [0, 0, 1, 0], [], []>} : vector<16x32xbf16>, vector<16x32xbf16>, vector<16x16xf32> -> vector<16x16xf32>
    %cst_24 = arith.constant dense<0xFF800000> : vector<16xf32>
    %71 = vector.multi_reduction <maximumf>, %70, %cst_24 [1] : vector<16x16xf32> to vector<16xf32>
    %72 = vector.shape_cast %71 : vector<16xf32> to vector<16x1xf32>
    %73 = vector.broadcast %72 : vector<16x1xf32> to vector<16x16xf32>
    %74 = arith.subf %70, %73 : vector<16x16xf32>
    %75 = math.exp %74 : vector<16x16xf32>
    %cst_25 = arith.constant dense<0.000000e+00> : vector<16xf32>
    %76 = vector.multi_reduction <add>, %75, %cst_25 [1] : vector<16x16xf32> to vector<16xf32>
    %77 = vector.shape_cast %76 : vector<16xf32> to vector<16x1xf32>
    %78 = arith.truncf %75 : vector<16x16xf32> to vector<16x16xbf16>
    %cst_26 = arith.constant dense<0.000000e+00> : vector<16x32xf32>
    %79 = tpu.matmul %78, %69, %cst_26 {dimension_numbers = #tpu.dot_dimension_numbers<[1], [0], [0], [1], [0, 0, 1, 1], [], []>} : vector<16x16xbf16>, vector<16x32xbf16>, vector<16x32xf32> -> vector<16x32xf32>
    %80 = tpu.reciprocal %77 : vector<16x1xf32> -> vector<16x1xf32>
    %81 = vector.broadcast %80 : vector<16x1xf32> to vector<16x32xf32>
    %82 = arith.mulf %79, %81 : vector<16x32xf32>
    %83 = arith.truncf %82 : vector<16x32xf32> to vector<16x32xbf16>
    %84 = vector.extract_strided_slice %32 {offsets = [0, 96], sizes = [16, 32], strides = [1, 1]} : vector<32x384xbf16> to vector<16x32xbf16>
    %85 = vector.extract_strided_slice %32 {offsets = [0, 224], sizes = [16, 32], strides = [1, 1]} : vector<32x384xbf16> to vector<16x32xbf16>
    %86 = vector.extract_strided_slice %32 {offsets = [0, 352], sizes = [16, 32], strides = [1, 1]} : vector<32x384xbf16> to vector<16x32xbf16>
    %cst_27 = arith.constant dense<0.000000e+00> : vector<16x16xf32>
    %87 = tpu.matmul %84, %85, %cst_27 {dimension_numbers = #tpu.dot_dimension_numbers<[1], [1], [0], [0], [0, 0, 1, 0], [], []>} : vector<16x32xbf16>, vector<16x32xbf16>, vector<16x16xf32> -> vector<16x16xf32>
    %cst_28 = arith.constant dense<0xFF800000> : vector<16xf32>
    %88 = vector.multi_reduction <maximumf>, %87, %cst_28 [1] : vector<16x16xf32> to vector<16xf32>
    %89 = vector.shape_cast %88 : vector<16xf32> to vector<16x1xf32>
    %90 = vector.broadcast %89 : vector<16x1xf32> to vector<16x16xf32>
    %91 = arith.subf %87, %90 : vector<16x16xf32>
    %92 = math.exp %91 : vector<16x16xf32>
    %cst_29 = arith.constant dense<0.000000e+00> : vector<16xf32>
    %93 = vector.multi_reduction <add>, %92, %cst_29 [1] : vector<16x16xf32> to vector<16xf32>
    %94 = vector.shape_cast %93 : vector<16xf32> to vector<16x1xf32>
    %95 = arith.truncf %92 : vector<16x16xf32> to vector<16x16xbf16>
    %cst_30 = arith.constant dense<0.000000e+00> : vector<16x32xf32>
    %96 = tpu.matmul %95, %86, %cst_30 {dimension_numbers = #tpu.dot_dimension_numbers<[1], [0], [0], [1], [0, 0, 1, 1], [], []>} : vector<16x16xbf16>, vector<16x32xbf16>, vector<16x32xf32> -> vector<16x32xf32>
    %97 = tpu.reciprocal %94 : vector<16x1xf32> -> vector<16x1xf32>
    %98 = vector.broadcast %97 : vector<16x1xf32> to vector<16x32xf32>
    %99 = arith.mulf %96, %98 : vector<16x32xf32>
    %100 = arith.truncf %99 : vector<16x32xf32> to vector<16x32xbf16>
    %101 = tpu.concatenate %49, %66, %83, %100 in 1 : vector<16x32xbf16>, vector<16x32xbf16>, vector<16x32xbf16>, vector<16x32xbf16> -> vector<16x128xbf16>
    %102 = vector.extract_strided_slice %32 {offsets = [16, 0], sizes = [16, 32], strides = [1, 1]} : vector<32x384xbf16> to vector<16x32xbf16>
    %103 = vector.extract_strided_slice %32 {offsets = [16, 128], sizes = [16, 32], strides = [1, 1]} : vector<32x384xbf16> to vector<16x32xbf16>
    %104 = vector.extract_strided_slice %32 {offsets = [16, 256], sizes = [16, 32], strides = [1, 1]} : vector<32x384xbf16> to vector<16x32xbf16>
    %cst_31 = arith.constant dense<0.000000e+00> : vector<16x16xf32>
    %105 = tpu.matmul %102, %103, %cst_31 {dimension_numbers = #tpu.dot_dimension_numbers<[1], [1], [0], [0], [0, 0, 1, 0], [], []>} : vector<16x32xbf16>, vector<16x32xbf16>, vector<16x16xf32> -> vector<16x16xf32>
    %cst_32 = arith.constant dense<0xFF800000> : vector<16xf32>
    %106 = vector.multi_reduction <maximumf>, %105, %cst_32 [1] : vector<16x16xf32> to vector<16xf32>
    %107 = vector.shape_cast %106 : vector<16xf32> to vector<16x1xf32>
    %108 = vector.broadcast %107 : vector<16x1xf32> to vector<16x16xf32>
    %109 = arith.subf %105, %108 : vector<16x16xf32>
    %110 = math.exp %109 : vector<16x16xf32>
    %cst_33 = arith.constant dense<0.000000e+00> : vector<16xf32>
    %111 = vector.multi_reduction <add>, %110, %cst_33 [1] : vector<16x16xf32> to vector<16xf32>
    %112 = vector.shape_cast %111 : vector<16xf32> to vector<16x1xf32>
    %113 = arith.truncf %110 : vector<16x16xf32> to vector<16x16xbf16>
    %cst_34 = arith.constant dense<0.000000e+00> : vector<16x32xf32>
    %114 = tpu.matmul %113, %104, %cst_34 {dimension_numbers = #tpu.dot_dimension_numbers<[1], [0], [0], [1], [0, 0, 1, 1], [], []>} : vector<16x16xbf16>, vector<16x32xbf16>, vector<16x32xf32> -> vector<16x32xf32>
    %115 = tpu.reciprocal %112 : vector<16x1xf32> -> vector<16x1xf32>
    %116 = vector.broadcast %115 : vector<16x1xf32> to vector<16x32xf32>
    %117 = arith.mulf %114, %116 : vector<16x32xf32>
    %118 = arith.truncf %117 : vector<16x32xf32> to vector<16x32xbf16>
    %119 = vector.extract_strided_slice %32 {offsets = [16, 32], sizes = [16, 32], strides = [1, 1]} : vector<32x384xbf16> to vector<16x32xbf16>
    %120 = vector.extract_strided_slice %32 {offsets = [16, 160], sizes = [16, 32], strides = [1, 1]} : vector<32x384xbf16> to vector<16x32xbf16>
    %121 = vector.extract_strided_slice %32 {offsets = [16, 288], sizes = [16, 32], strides = [1, 1]} : vector<32x384xbf16> to vector<16x32xbf16>
    %cst_35 = arith.constant dense<0.000000e+00> : vector<16x16xf32>
    %122 = tpu.matmul %119, %120, %cst_35 {dimension_numbers = #tpu.dot_dimension_numbers<[1], [1], [0], [0], [0, 0, 1, 0], [], []>} : vector<16x32xbf16>, vector<16x32xbf16>, vector<16x16xf32> -> vector<16x16xf32>
    %cst_36 = arith.constant dense<0xFF800000> : vector<16xf32>
    %123 = vector.multi_reduction <maximumf>, %122, %cst_36 [1] : vector<16x16xf32> to vector<16xf32>
    %124 = vector.shape_cast %123 : vector<16xf32> to vector<16x1xf32>
    %125 = vector.broadcast %124 : vector<16x1xf32> to vector<16x16xf32>
    %126 = arith.subf %122, %125 : vector<16x16xf32>
    %127 = math.exp %126 : vector<16x16xf32>
    %cst_37 = arith.constant dense<0.000000e+00> : vector<16xf32>
    %128 = vector.multi_reduction <add>, %127, %cst_37 [1] : vector<16x16xf32> to vector<16xf32>
    %129 = vector.shape_cast %128 : vector<16xf32> to vector<16x1xf32>
    %130 = arith.truncf %127 : vector<16x16xf32> to vector<16x16xbf16>
    %cst_38 = arith.constant dense<0.000000e+00> : vector<16x32xf32>
    %131 = tpu.matmul %130, %121, %cst_38 {dimension_numbers = #tpu.dot_dimension_numbers<[1], [0], [0], [1], [0, 0, 1, 1], [], []>} : vector<16x16xbf16>, vector<16x32xbf16>, vector<16x32xf32> -> vector<16x32xf32>
    %132 = tpu.reciprocal %129 : vector<16x1xf32> -> vector<16x1xf32>
    %133 = vector.broadcast %132 : vector<16x1xf32> to vector<16x32xf32>
    %134 = arith.mulf %131, %133 : vector<16x32xf32>
    %135 = arith.truncf %134 : vector<16x32xf32> to vector<16x32xbf16>
    %136 = vector.extract_strided_slice %32 {offsets = [16, 64], sizes = [16, 32], strides = [1, 1]} : vector<32x384xbf16> to vector<16x32xbf16>
    %137 = vector.extract_strided_slice %32 {offsets = [16, 192], sizes = [16, 32], strides = [1, 1]} : vector<32x384xbf16> to vector<16x32xbf16>
    %138 = vector.extract_strided_slice %32 {offsets = [16, 320], sizes = [16, 32], strides = [1, 1]} : vector<32x384xbf16> to vector<16x32xbf16>
    %cst_39 = arith.constant dense<0.000000e+00> : vector<16x16xf32>
    %139 = tpu.matmul %136, %137, %cst_39 {dimension_numbers = #tpu.dot_dimension_numbers<[1], [1], [0], [0], [0, 0, 1, 0], [], []>} : vector<16x32xbf16>, vector<16x32xbf16>, vector<16x16xf32> -> vector<16x16xf32>
    %cst_40 = arith.constant dense<0xFF800000> : vector<16xf32>
    %140 = vector.multi_reduction <maximumf>, %139, %cst_40 [1] : vector<16x16xf32> to vector<16xf32>
    %141 = vector.shape_cast %140 : vector<16xf32> to vector<16x1xf32>
    %142 = vector.broadcast %141 : vector<16x1xf32> to vector<16x16xf32>
    %143 = arith.subf %139, %142 : vector<16x16xf32>
    %144 = math.exp %143 : vector<16x16xf32>
    %cst_41 = arith.constant dense<0.000000e+00> : vector<16xf32>
    %145 = vector.multi_reduction <add>, %144, %cst_41 [1] : vector<16x16xf32> to vector<16xf32>
    %146 = vector.shape_cast %145 : vector<16xf32> to vector<16x1xf32>
    %147 = arith.truncf %144 : vector<16x16xf32> to vector<16x16xbf16>
    %cst_42 = arith.constant dense<0.000000e+00> : vector<16x32xf32>
    %148 = tpu.matmul %147, %138, %cst_42 {dimension_numbers = #tpu.dot_dimension_numbers<[1], [0], [0], [1], [0, 0, 1, 1], [], []>} : vector<16x16xbf16>, vector<16x32xbf16>, vector<16x32xf32> -> vector<16x32xf32>
    %149 = tpu.reciprocal %146 : vector<16x1xf32> -> vector<16x1xf32>
    %150 = vector.broadcast %149 : vector<16x1xf32> to vector<16x32xf32>
    %151 = arith.mulf %148, %150 : vector<16x32xf32>
    %152 = arith.truncf %151 : vector<16x32xf32> to vector<16x32xbf16>
    %153 = vector.extract_strided_slice %32 {offsets = [16, 96], sizes = [16, 32], strides = [1, 1]} : vector<32x384xbf16> to vector<16x32xbf16>
    %154 = vector.extract_strided_slice %32 {offsets = [16, 224], sizes = [16, 32], strides = [1, 1]} : vector<32x384xbf16> to vector<16x32xbf16>
    %155 = vector.extract_strided_slice %32 {offsets = [16, 352], sizes = [16, 32], strides = [1, 1]} : vector<32x384xbf16> to vector<16x32xbf16>
    %cst_43 = arith.constant dense<0.000000e+00> : vector<16x16xf32>
    %156 = tpu.matmul %153, %154, %cst_43 {dimension_numbers = #tpu.dot_dimension_numbers<[1], [1], [0], [0], [0, 0, 1, 0], [], []>} : vector<16x32xbf16>, vector<16x32xbf16>, vector<16x16xf32> -> vector<16x16xf32>
    %cst_44 = arith.constant dense<0xFF800000> : vector<16xf32>
    %157 = vector.multi_reduction <maximumf>, %156, %cst_44 [1] : vector<16x16xf32> to vector<16xf32>
    %158 = vector.shape_cast %157 : vector<16xf32> to vector<16x1xf32>
    %159 = vector.broadcast %158 : vector<16x1xf32> to vector<16x16xf32>
    %160 = arith.subf %156, %159 : vector<16x16xf32>
    %161 = math.exp %160 : vector<16x16xf32>
    %cst_45 = arith.constant dense<0.000000e+00> : vector<16xf32>
    %162 = vector.multi_reduction <add>, %161, %cst_45 [1] : vector<16x16xf32> to vector<16xf32>
    %163 = vector.shape_cast %162 : vector<16xf32> to vector<16x1xf32>
    %164 = arith.truncf %161 : vector<16x16xf32> to vector<16x16xbf16>
    %cst_46 = arith.constant dense<0.000000e+00> : vector<16x32xf32>
    %165 = tpu.matmul %164, %155, %cst_46 {dimension_numbers = #tpu.dot_dimension_numbers<[1], [0], [0], [1], [0, 0, 1, 1], [], []>} : vector<16x16xbf16>, vector<16x32xbf16>, vector<16x32xf32> -> vector<16x32xf32>
    %166 = tpu.reciprocal %163 : vector<16x1xf32> -> vector<16x1xf32>
    %167 = vector.broadcast %166 : vector<16x1xf32> to vector<16x32xf32>
    %168 = arith.mulf %165, %167 : vector<16x32xf32>
    %169 = arith.truncf %168 : vector<16x32xf32> to vector<16x32xbf16>
    %170 = tpu.concatenate %118, %135, %152, %169 in 1 : vector<16x32xbf16>, vector<16x32xbf16>, vector<16x32xbf16>, vector<16x32xbf16> -> vector<16x128xbf16>
    %171 = tpu.concatenate %101, %170 in 0 : vector<16x128xbf16>, vector<16x128xbf16> -> vector<32x128xbf16>
    %c0_47 = arith.constant 0 : index
    %c0_48 = arith.constant 0 : index
    %172 = vector.load %arg6[%c0_47, %c0_48] : memref<128x128xbf16, #tpu.memory_space<vmem>>, vector<128x128xbf16>
    %cst_49 = arith.constant dense<0.000000e+00> : vector<32x128xf32>
    %173 = tpu.matmul %171, %172, %cst_49 {dimension_numbers = #tpu.dot_dimension_numbers<[1], [0], [0], [1], [0, 0, 1, 1], [], []>} : vector<32x128xbf16>, vector<128x128xbf16>, vector<32x128xf32> -> vector<32x128xf32>
    %c0_50 = arith.constant 0 : index
    %c0_51 = arith.constant 0 : index
    %174 = vector.load %arg7[%c0_50, %c0_51] : memref<1x128xf32, #tpu.memory_space<vmem>>, vector<1x128xf32>
    %175 = vector.broadcast %174 : vector<1x128xf32> to vector<32x128xf32>
    %176 = arith.addf %173, %175 : vector<32x128xf32>
    %177 = arith.addf %1, %176 : vector<32x128xf32>
    %c0_52 = arith.constant 0 : index
    %c0_53 = arith.constant 0 : index
    %178 = vector.load %arg8[%c0_52, %c0_53] : memref<1x128xf32, #tpu.memory_space<vmem>>, vector<1x128xf32>
    %c0_54 = arith.constant 0 : index
    %c0_55 = arith.constant 0 : index
    %179 = vector.load %arg9[%c0_54, %c0_55] : memref<1x128xf32, #tpu.memory_space<vmem>>, vector<1x128xf32>
    %cst_56 = arith.constant dense<0.000000e+00> : vector<32xf32>
    %180 = vector.multi_reduction <add>, %177, %cst_56 [1] : vector<32x128xf32> to vector<32xf32>
    %181 = vector.shape_cast %180 : vector<32xf32> to vector<32x1xf32>
    %cst_57 = arith.constant 1.280000e+02 : f32
    %182 = vector.broadcast %cst_57 : f32 to vector<32x1xf32>
    %183 = arith.divf %181, %182 : vector<32x1xf32>
    %184 = vector.broadcast %183 : vector<32x1xf32> to vector<32x128xf32>
    %185 = arith.subf %177, %184 : vector<32x128xf32>
    %186 = arith.mulf %185, %185 : vector<32x128xf32>
    %cst_58 = arith.constant dense<0.000000e+00> : vector<32xf32>
    %187 = vector.multi_reduction <add>, %186, %cst_58 [1] : vector<32x128xf32> to vector<32xf32>
    %188 = vector.shape_cast %187 : vector<32xf32> to vector<32x1xf32>
    %cst_59 = arith.constant 1.280000e+02 : f32
    %189 = vector.broadcast %cst_59 : f32 to vector<32x1xf32>
    %190 = arith.divf %188, %189 : vector<32x1xf32>
    %191 = vector.broadcast %183 : vector<32x1xf32> to vector<32x128xf32>
    %192 = arith.subf %177, %191 : vector<32x128xf32>
    %cst_60 = arith.constant 9.99999974E-6 : f32
    %193 = vector.broadcast %cst_60 : f32 to vector<32x1xf32>
    %194 = arith.addf %190, %193 : vector<32x1xf32>
    %195 = math.rsqrt %194 : vector<32x1xf32>
    %196 = vector.broadcast %195 : vector<32x1xf32> to vector<32x128xf32>
    %197 = arith.mulf %192, %196 : vector<32x128xf32>
    %198 = vector.broadcast %178 : vector<1x128xf32> to vector<32x128xf32>
    %199 = arith.mulf %197, %198 : vector<32x128xf32>
    %200 = vector.broadcast %179 : vector<1x128xf32> to vector<32x128xf32>
    %201 = arith.addf %199, %200 : vector<32x128xf32>
    %202 = arith.truncf %201 : vector<32x128xf32> to vector<32x128xbf16>
    %c0_61 = arith.constant 0 : index
    %c0_62 = arith.constant 0 : index
    %203 = vector.load %arg10[%c0_61, %c0_62] : memref<128x256xbf16, #tpu.memory_space<vmem>>, vector<128x256xbf16>
    %cst_63 = arith.constant dense<0.000000e+00> : vector<32x256xf32>
    %204 = tpu.matmul %202, %203, %cst_63 {dimension_numbers = #tpu.dot_dimension_numbers<[1], [0], [0], [1], [0, 0, 1, 1], [], []>} : vector<32x128xbf16>, vector<128x256xbf16>, vector<32x256xf32> -> vector<32x256xf32>
    %c0_64 = arith.constant 0 : index
    %c0_65 = arith.constant 0 : index
    %205 = vector.load %arg11[%c0_64, %c0_65] : memref<1x256xf32, #tpu.memory_space<vmem>>, vector<1x256xf32>
    %206 = vector.broadcast %205 : vector<1x256xf32> to vector<32x256xf32>
    %207 = arith.addf %204, %206 : vector<32x256xf32>
    %cst_66 = arith.constant 5.000000e-01 : f32
    %208 = vector.broadcast %cst_66 : f32 to vector<32x256xf32>
    %209 = arith.mulf %208, %207 : vector<32x256xf32>
    %cst_67 = arith.constant 0.707106769 : f32
    %210 = vector.broadcast %cst_67 : f32 to vector<32x256xf32>
    %211 = arith.mulf %207, %210 : vector<32x256xf32>
    %212 = math.erf %211 : vector<32x256xf32>
    %cst_68 = arith.constant 1.000000e+00 : f32
    %213 = vector.broadcast %cst_68 : f32 to vector<32x256xf32>
    %214 = arith.addf %213, %212 : vector<32x256xf32>
    %215 = arith.mulf %209, %214 : vector<32x256xf32>
    %216 = arith.truncf %215 : vector<32x256xf32> to vector<32x256xbf16>
    %c0_69 = arith.constant 0 : index
    %c0_70 = arith.constant 0 : index
    %217 = vector.load %arg12[%c0_69, %c0_70] : memref<256x128xbf16, #tpu.memory_space<vmem>>, vector<256x128xbf16>
    %cst_71 = arith.constant dense<0.000000e+00> : vector<32x128xf32>
    %218 = tpu.matmul %216, %217, %cst_71 {dimension_numbers = #tpu.dot_dimension_numbers<[1], [0], [0], [1], [0, 0, 1, 1], [], []>} : vector<32x256xbf16>, vector<256x128xbf16>, vector<32x128xf32> -> vector<32x128xf32>
    %c0_72 = arith.constant 0 : index
    %c0_73 = arith.constant 0 : index
    %219 = vector.load %arg13[%c0_72, %c0_73] : memref<1x128xf32, #tpu.memory_space<vmem>>, vector<1x128xf32>
    %220 = vector.broadcast %219 : vector<1x128xf32> to vector<32x128xf32>
    %221 = arith.addf %218, %220 : vector<32x128xf32>
    %222 = arith.addf %177, %221 : vector<32x128xf32>
    %223 = vector.shape_cast %222 : vector<32x128xf32> to vector<2x16x128xf32>
    %c0_74 = arith.constant 0 : index
    %c0_75 = arith.constant 0 : index
    %c0_76 = arith.constant 0 : index
    %224 = vector.load %arg14[%c0_74, %c0_75, %c0_76] : memref<2x16x128xf32, #tpu.memory_space<vmem>>, vector<2x16x128xf32>
    tpu.vector_store %arg14[%c0_74, %c0_75, %c0_76], %223 {strides = array<i32>} : memref<2x16x128xf32, #tpu.memory_space<vmem>>, vector<2x16x128xf32>,
    return
  }
  func.func @transform_0(%arg0: i32) -> (i32, i32, i32) {
    %c0_i32 = arith.constant 0 : i32
    %c0_i32_0 = arith.constant 0 : i32
    %c0_i32_1 = arith.constant 0 : i32
    return %arg0, %c0_i32, %c0_i32_0 : i32, i32, i32
  }
  func.func @transform_1(%arg0: i32) -> (i32, i32) {
    %c0_i32 = arith.constant 0 : i32
    %c0_i32_0 = arith.constant 0 : i32
    %c0_i32_1 = arith.constant 0 : i32
    return %c0_i32, %c0_i32_0 : i32, i32
  }
  func.func @transform_2(%arg0: i32) -> (i32, i32) {
    %c0_i32 = arith.constant 0 : i32
    %c0_i32_0 = arith.constant 0 : i32
    %c0_i32_1 = arith.constant 0 : i32
    return %c0_i32, %c0_i32_0 : i32, i32
  }
  func.func @transform_3(%arg0: i32) -> (i32, i32) {
    %c0_i32 = arith.constant 0 : i32
    %c0_i32_0 = arith.constant 0 : i32
    %c0_i32_1 = arith.constant 0 : i32
    return %c0_i32, %c0_i32_0 : i32, i32
  }
  func.func @transform_4(%arg0: i32) -> (i32, i32) {
    %c0_i32 = arith.constant 0 : i32
    %c0_i32_0 = arith.constant 0 : i32
    %c0_i32_1 = arith.constant 0 : i32
    return %c0_i32, %c0_i32_0 : i32, i32
  }
  func.func @transform_5(%arg0: i32) -> (i32, i32) {
    %c0_i32 = arith.constant 0 : i32
    %c0_i32_0 = arith.constant 0 : i32
    %c0_i32_1 = arith.constant 0 : i32
    return %c0_i32, %c0_i32_0 : i32, i32
  }
  func.func @transform_6(%arg0: i32) -> (i32, i32) {
    %c0_i32 = arith.constant 0 : i32
    %c0_i32_0 = arith.constant 0 : i32
    %c0_i32_1 = arith.constant 0 : i32
    return %c0_i32, %c0_i32_0 : i32, i32
  }
  func.func @transform_7(%arg0: i32) -> (i32, i32) {
    %c0_i32 = arith.constant 0 : i32
    %c0_i32_0 = arith.constant 0 : i32
    %c0_i32_1 = arith.constant 0 : i32
    return %c0_i32, %c0_i32_0 : i32, i32
  }
  func.func @transform_8(%arg0: i32) -> (i32, i32) {
    %c0_i32 = arith.constant 0 : i32
    %c0_i32_0 = arith.constant 0 : i32
    %c0_i32_1 = arith.constant 0 : i32
    return %c0_i32, %c0_i32_0 : i32, i32
  }
  func.func @transform_9(%arg0: i32) -> (i32, i32) {
    %c0_i32 = arith.constant 0 : i32
    %c0_i32_0 = arith.constant 0 : i32
    %c0_i32_1 = arith.constant 0 : i32
    return %c0_i32, %c0_i32_0 : i32, i32
  }
  func.func @transform_10(%arg0: i32) -> (i32, i32) {
    %c0_i32 = arith.constant 0 : i32
    %c0_i32_0 = arith.constant 0 : i32
    %c0_i32_1 = arith.constant 0 : i32
    return %c0_i32, %c0_i32_0 : i32, i32
  }
  func.func @transform_11(%arg0: i32) -> (i32, i32) {
    %c0_i32 = arith.constant 0 : i32
    %c0_i32_0 = arith.constant 0 : i32
    %c0_i32_1 = arith.constant 0 : i32
    return %c0_i32, %c0_i32_0 : i32, i32
  }
  func.func @transform_12(%arg0: i32) -> (i32, i32) {
    %c0_i32 = arith.constant 0 : i32
    %c0_i32_0 = arith.constant 0 : i32
    %c0_i32_1 = arith.constant 0 : i32
    return %c0_i32, %c0_i32_0 : i32, i32
  }
  func.func @transform_13(%arg0: i32) -> (i32, i32, i32) {
    %c0_i32 = arith.constant 0 : i32
    %c0_i32_0 = arith.constant 0 : i32
    %c0_i32_1 = arith.constant 0 : i32
    return %arg0, %c0_i32, %c0_i32_0 : i32, i32, i32
  }
}

</mosaic_0001>

<llo_original>
// kernel: tpu_custom_call.1
$region0: #{tpu_custom_call.1}
  #allocation0 [shape = 'u32[]', space=smem, size = 0x4, offset = 0x4, fixed_abs, tag = 'smem constant byte address 0x4 - core index']
  #allocation1 [shape = 'u32[144,128]{1,0:T(1,128)}', space=vmem, size = 0x12000, scoped, tag = 'internal scratch']
  %s0 = inlined_call_operand.hbm [shape: f32[2,16,128], index: 0, kind: input, shape index: {}]
  %s1 = inlined_call_operand.hbm [shape: f32[1,128], index: 1, kind: input, shape index: {}]
  %s2 = inlined_call_operand.hbm [shape: f32[1,128], index: 2, kind: input, shape index: {}]
  %s3 = inlined_call_operand.hbm [shape: bf16[128,384], index: 3, kind: input, shape index: {}]
  %s4 = inlined_call_operand.vmem [shape: f32[1,384], index: 4, kind: input, shape index: {}]
  %s5 = inlined_call_operand.hbm [shape: bf16[128,128], index: 5, kind: input, shape index: {}]
  %s6 = inlined_call_operand.vmem [shape: f32[1,128], index: 6, kind: input, shape index: {}]
  %s7 = inlined_call_operand.vmem [shape: f32[1,128], index: 7, kind: input, shape index: {}]
  %s8 = inlined_call_operand.vmem [shape: f32[1,128], index: 8, kind: input, shape index: {}]
  %s9 = inlined_call_operand.hbm [shape: bf16[128,256], index: 9, kind: input, shape index: {}]
  %s10 = inlined_call_operand.vmem [shape: f32[1,256], index: 10, kind: input, shape index: {}]
  %s11 = inlined_call_operand.hbm [shape: bf16[256,128], index: 11, kind: input, shape index: {}]
  %s12 = inlined_call_operand.vmem [shape: f32[1,128], index: 12, kind: input, shape index: {}]
  %s13 = inlined_call_operand.hbm [shape: f32[2,16,128], index: 13, kind: output, shape index: {}]
  %s14 = sld [smem:[#allocation0]]
  $region90: #{tpu_custom_call.1} parent=0
    _
  %s16 = ssub.s32 1, %s14
  %s17 = scalar_select 0, %s16, %s14
  $region1: #{tpu_custom_call.1} parent=0
    #allocation2 [shape = 'u8[16384]{0}', space=vmem, size = 0x4000, scoped, tag = 'input window, operand 0, single buffered']
    #allocation3 [shape = 's32[1]{0}', space=sflag, size = 0x4, scoped, tag = 'scoped memory for tpu_custom_call.1']
    #allocation4 [shape = 's32[1]{0}', space=sflag, size = 0x4, scoped, tag = 'scoped memory for tpu_custom_call.1']
    #allocation5 [shape = 'u8[512]{0}', space=vmem, size = 0x400, scoped, tag = 'input window, operand 1, single buffered']
    #allocation6 [shape = 's32[1]{0}', space=sflag, size = 0x4, scoped, tag = 'scoped memory for tpu_custom_call.1']
    #allocation7 [shape = 'u8[512]{0}', space=vmem, size = 0x400, scoped, tag = 'input window, operand 2, single buffered']
    #allocation8 [shape = 'u8[98304]{0}', space=vmem, size = 0x18000, scoped, tag = 'input window, operand 3, single buffered']
    #allocation9 [shape = 's32[1]{0}', space=sflag, size = 0x4, scoped, tag = 'scoped memory for tpu_custom_call.1']
    #allocation10 [shape = 'u8[32768]{0}', space=vmem, size = 0x8000, scoped, tag = 'input window, operand 5, single buffered']
    #allocation11 [shape = 'u8[65536]{0}', space=vmem, size = 0x10000, scoped, tag = 'input window, operand 9, single buffered']
    #allocation12 [shape = 's32[1]{0}', space=sflag, size = 0x4, scoped, tag = 'scoped memory for tpu_custom_call.1']
    #allocation13 [shape = 'u8[65536]{0}', space=vmem, size = 0x10000, scoped, tag = 'input window, operand 11, single buffered']
    #allocation14 [shape = 'u8[16384]{0}', space=vmem, size = 0x4000, scoped, tag = 'output window, operand 0, single buffered']
    %18 = vsyncpa [#allocation3], 0
    %19 = vsyncpa [#allocation6], 0
    %20 = vsyncpa [#allocation9], 0
    %21 = vsyncpa [#allocation12], 0
    %22 = vsyncpa [#allocation4], 0
    // Predicated region
    $region2: #{tpu_custom_call.1} parent=1 // pred_check
      _
    $region3: #{tpu_custom_call.1} parent=1 // pred_check_branch
      %24 = sbr.rel (0) target = $region5
    $region4: #{tpu_custom_call.1} parent=1 // pred_region
      %s26 = ssub.s32 512, 512
      %27 = vsyncadd [#allocation3], %s26
      %s28 = sshll.u32 [#allocation2], 4
      %s29 = int_to_ptr.vmem [resolvable:$true] %s28
      %34 = dma.hbm_to_vmem [thread:$0]  %s0, 512, %s29, [#allocation3], 128, 128, 8
    $region5: #{tpu_custom_call.1} parent=1 // pred_fallthru
      _
    // Predicated region
    $region6: #{tpu_custom_call.1} parent=1 // pred_check
      _
    $region7: #{tpu_custom_call.1} parent=1 // pred_check_branch
      %36 = sbr.rel (0) target = $region9
    $region8: #{tpu_custom_call.1} parent=1 // pred_region
      %s38 = ssub.s32 16, 16
      %39 = vsyncadd [#allocation6], %s38
      %s41 = sshll.u32 [#allocation5], 4
      %s42 = int_to_ptr.vmem [resolvable:$true] %s41
      %44 = dma.hbm_to_vmem [thread:$0]  %s1, 16, %s42, [#allocation6]
    $region9: #{tpu_custom_call.1} parent=1 // pred_fallthru
      _
    // Predicated region
    $region10: #{tpu_custom_call.1} parent=1 // pred_check
      _
    $region11: #{tpu_custom_call.1} parent=1 // pred_check_branch
      %46 = sbr.rel (0) target = $region13
    $region12: #{tpu_custom_call.1} parent=1 // pred_region
      %s48 = ssub.s32 16, 16
      %49 = vsyncadd [#allocation6], %s48
      %s51 = sshll.u32 [#allocation7], 4
      %s52 = int_to_ptr.vmem [resolvable:$true] %s51
      %54 = dma.hbm_to_vmem [thread:$0]  %s2, 16, %s52, [#allocation6]
    $region13: #{tpu_custom_call.1} parent=1 // pred_fallthru
      _
    // Predicated region
    $region14: #{tpu_custom_call.1} parent=1 // pred_check
      _
    $region15: #{tpu_custom_call.1} parent=1 // pred_check_branch
      %56 = sbr.rel (0) target = $region17
    $region16: #{tpu_custom_call.1} parent=1 // pred_region
      %s58 = ssub.s32 3072, 3072
      %59 = vsyncadd [#allocation9], %s58
      %s60 = sshll.u32 [#allocation8], 4
      %s61 = int_to_ptr.vmem [resolvable:$true] %s60
      %66 = dma.hbm_to_vmem [thread:$0]  %s3, 3072, %s61, [#allocation9], 192, 192, 12
    $region17: #{tpu_custom_call.1} parent=1 // pred_fallthru
      _
    // Predicated region
    $region18: #{tpu_custom_call.1} parent=1 // pred_check
      _
    $region19: #{tpu_custom_call.1} parent=1 // pred_check_branch
      %68 = sbr.rel (0) target = $region21
    $region20: #{tpu_custom_call.1} parent=1 // pred_region
      _
    $region21: #{tpu_custom_call.1} parent=1 // pred_fallthru
      _
    // Predicated region
    $region22: #{tpu_custom_call.1} parent=1 // pred_check
      _
    $region23: #{tpu_custom_call.1} parent=1 // pred_check_branch
      %70 = sbr.rel (0) target = $region25
    $region24: #{tpu_custom_call.1} parent=1 // pred_region
      %s72 = ssub.s32 1024, 1024
      %73 = vsyncadd [#allocation9], %s72
      %s74 = sshll.u32 [#allocation10], 4
      %s75 = int_to_ptr.vmem [resolvable:$true] %s74
      %80 = dma.hbm_to_vmem [thread:$0]  %s5, 1024, %s75, [#allocation9], 64, 64, 4
    $region25: #{tpu_custom_call.1} parent=1 // pred_fallthru
      _
    // Predicated region
    $region26: #{tpu_custom_call.1} parent=1 // pred_check
      _
    $region27: #{tpu_custom_call.1} parent=1 // pred_check_branch
      %82 = sbr.rel (0) target = $region29
    $region28: #{tpu_custom_call.1} parent=1 // pred_region
      _
    $region29: #{tpu_custom_call.1} parent=1 // pred_fallthru
      _
    // Predicated region
    $region30: #{tpu_custom_call.1} parent=1 // pred_check
      _
    $region31: #{tpu_custom_call.1} parent=1 // pred_check_branch
      %84 = sbr.rel (0) target = $region33
    $region32: #{tpu_custom_call.1} parent=1 // pred_region
      _
    $region33: #{tpu_custom_call.1} parent=1 // pred_fallthru
      _
    // Predicated region
    $region34: #{tpu_custom_call.1} parent=1 // pred_check
      _
    $region35: #{tpu_custom_call.1} parent=1 // pred_check_branch
      %86 = sbr.rel (0) target = $region37
    $region36: #{tpu_custom_call.1} parent=1 // pred_region
      _
    $region37: #{tpu_custom_call.1} parent=1 // pred_fallthru
      _
    // Predicated region
    $region38: #{tpu_custom_call.1} parent=1 // pred_check
      _
    $region39: #{tpu_custom_call.1} parent=1 // pred_check_branch
      %88 = sbr.rel (0) target = $region41
    $region40: #{tpu_custom_call.1} parent=1 // pred_region
      %s90 = ssub.s32 2048, 2048
      %91 = vsyncadd [#allocation12], %s90
      %s92 = sshll.u32 [#allocation11], 4
      %s93 = int_to_ptr.vmem [resolvable:$true] %s92
      %98 = dma.hbm_to_vmem [thread:$0]  %s9, 2048, %s93, [#allocation12], 128, 128, 8
    $region41: #{tpu_custom_call.1} parent=1 // pred_fallthru
      _
    // Predicated region
    $region42: #{tpu_custom_call.1} parent=1 // pred_check
      _
    $region43: #{tpu_custom_call.1} parent=1 // pred_check_branch
      %100 = sbr.rel (0) target = $region45
    $region44: #{tpu_custom_call.1} parent=1 // pred_region
      _
    $region45: #{tpu_custom_call.1} parent=1 // pred_fallthru
      _
    // Predicated region
    $region46: #{tpu_custom_call.1} parent=1 // pred_check
      _
    $region47: #{tpu_custom_call.1} parent=1 // pred_check_branch
      %102 = sbr.rel (0) target = $region49
    $region48: #{tpu_custom_call.1} parent=1 // pred_region
      %s104 = ssub.s32 2048, 2048
      %105 = vsyncadd [#allocation12], %s104
      %s106 = sshll.u32 [#allocation13], 4
      %s107 = int_to_ptr.vmem [resolvable:$true] %s106
      %112 = dma.hbm_to_vmem [thread:$0]  %s11, 2048, %s107, [#allocation12], 64, 64, 4
    $region49: #{tpu_custom_call.1} parent=1 // pred_fallthru
      _
    // Predicated region
    $region50: #{tpu_custom_call.1} parent=1 // pred_check
      _
    $region51: #{tpu_custom_call.1} parent=1 // pred_check_branch
      %114 = sbr.rel (0) target = $region53
    $region52: #{tpu_custom_call.1} parent=1 // pred_region
      _
    $region53: #{tpu_custom_call.1} parent=1 // pred_fallthru
      _
    // Predicated region
    $region54: #{tpu_custom_call.1} parent=1 // pred_check
      _
    $region55: #{tpu_custom_call.1} parent=1 // pred_check_branch
      %116 = sbr.rel (0) target = $region57
    $region56: #{tpu_custom_call.1} parent=1 // pred_region
      %117 = dma.done [#allocation3], 512
    $region57: #{tpu_custom_call.1} parent=1 // pred_fallthru
      _
    // Predicated region
    $region58: #{tpu_custom_call.1} parent=1 // pred_check
      _
    $region59: #{tpu_custom_call.1} parent=1 // pred_check_branch
      %119 = sbr.rel (0) target = $region61
    $region60: #{tpu_custom_call.1} parent=1 // pred_region
      %120 = dma.done [#allocation6], 16
    $region61: #{tpu_custom_call.1} parent=1 // pred_fallthru
      _
    // Predicated region
    $region62: #{tpu_custom_call.1} parent=1 // pred_check
      _
    $region63: #{tpu_custom_call.1} parent=1 // pred_check_branch
      %122 = sbr.rel (0) target = $region65
    $region64: #{tpu_custom_call.1} parent=1 // pred_region
      %123 = dma.done [#allocation6], 16
    $region65: #{tpu_custom_call.1} parent=1 // pred_fallthru
      _
    // Predicated region
    $region66: #{tpu_custom_call.1} parent=1 // pred_check
      _
    $region67: #{tpu_custom_call.1} parent=1 // pred_check_branch
      %125 = sbr.rel (0) target = $region69
    $region68: #{tpu_custom_call.1} parent=1 // pred_region
      %126 = dma.done [#allocation9], 3072
    $region69: #{tpu_custom_call.1} parent=1 // pred_fallthru
      _
    // Predicated region
    $region70: #{tpu_custom_call.1} parent=1 // pred_check
      _
    $region71: #{tpu_custom_call.1} parent=1 // pred_check_branch
      %128 = sbr.rel (0) target = $region73
    $region72: #{tpu_custom_call.1} parent=1 // pred_region
      %129 = dma.done [#allocation9], 1024
    $region73: #{tpu_custom_call.1} parent=1 // pred_fallthru
      _
    // Predicated region
    $region74: #{tpu_custom_call.1} parent=1 // pred_check
      _
    $region75: #{tpu_custom_call.1} parent=1 // pred_check_branch
      %131 = sbr.rel (0) target = $region77
    $region76: #{tpu_custom_call.1} parent=1 // pred_region
      %132 = dma.done [#allocation12], 2048
    $region77: #{tpu_custom_call.1} parent=1 // pred_fallthru
      _
    // Predicated region
    $region78: #{tpu_custom_call.1} parent=1 // pred_check
      _
    $region79: #{tpu_custom_call.1} parent=1 // pred_check_branch
      %134 = sbr.rel (0) target = $region81
    $region80: #{tpu_custom_call.1} parent=1 // pred_region
      %135 = dma.done [#allocation12], 2048
    $region81: #{tpu_custom_call.1} parent=1 // pred_fallthru
      _
    %v137 = vld [vmem:[#allocation2] sm:$0xff]
    %v138 = vld [vmem:[#allocation2 + $0x8] sm:$0xff]
    %v139 = vld [vmem:[#allocation2 + $0x10] sm:$0xff]
    %v140 = vld [vmem:[#allocation2 + $0x18] sm:$0xff]
    %v141 = vld [vmem:[#allocation5] sm:$0x1]
    %v142 = vld [vmem:[#allocation7] sm:$0x1]
    %143 = vadd.xlane.f32.xlu0 %v137
    %v144 = vpop.xlane.xlu0 %143
    %145 = vadd.xlane.f32.xlu0 %v138
    %v146 = vpop.xlane.xlu0 %145
    %147 = vadd.xlane.f32.xlu0 %v139
    %v148 = vpop.xlane.xlu0 %147
    %149 = vadd.xlane.f32.xlu0 %v140
    %v150 = vpop.xlane.xlu0 %149
    %v151 = vrcp.pop 128.0
    %v152 = vmul.f32 %v144, %v151
    %v153 = vmul.f32 %v146, %v151
    %v154 = vmul.f32 %v148, %v151
    %v155 = vmul.f32 %v150, %v151
    %v156 = vsub.f32 %v137, %v152
    %v157 = vsub.f32 %v138, %v153
    %v158 = vsub.f32 %v139, %v154
    %v159 = vsub.f32 %v140, %v155
    %v160 = vmul.f32 %v156, %v156
    %v161 = vmul.f32 %v157, %v157
    %v162 = vmul.f32 %v158, %v158
    %v163 = vmul.f32 %v159, %v159
    %164 = vadd.xlane.f32.xlu0 %v160
    %v165 = vpop.xlane.xlu0 %164
    %166 = vadd.xlane.f32.xlu0 %v161
    %v167 = vpop.xlane.xlu0 %166
    %168 = vadd.xlane.f32.xlu0 %v162
    %v169 = vpop.xlane.xlu0 %168
    %170 = vadd.xlane.f32.xlu0 %v163
    %v171 = vpop.xlane.xlu0 %170
    %v172 = vmul.f32 %v165, %v151
    %v173 = vmul.f32 %v167, %v151
    %v174 = vmul.f32 %v169, %v151
    %v175 = vmul.f32 %v171, %v151
    %v176 = vadd.f32 %v172, 1e-05
    %v177 = vadd.f32 %v173, 1e-05
    %v178 = vadd.f32 %v174, 1e-05
    %v179 = vadd.f32 %v175, 1e-05
    %v180 = vrsqrt.pop %v176
    %v181 = vrsqrt.pop %v177
    %v182 = vrsqrt.pop %v178
    %v183 = vrsqrt.pop %v179
    %v184 = vmul.f32 %v156, %v180
    %v185 = vmul.f32 %v157, %v181
    %v186 = vmul.f32 %v158, %v182
    %v187 = vmul.f32 %v159, %v183
    %v189 = vlaneseq
    %v190 = vshrl.u32 %v189, 7
    %v191 = vsub.s32 0, %v190
    %v192 = vrot.slane %v141, %v191
    %v194 = vmul.f32 %v184, %v192
    %v195 = vmul.f32 %v185, %v192
    %v196 = vmul.f32 %v186, %v192
    %v197 = vmul.f32 %v187, %v192
    %v199 = vlaneseq
    %v200 = vshrl.u32 %v199, 7
    %v201 = vsub.s32 0, %v200
    %v202 = vrot.slane %v142, %v201
    %v204 = vadd.f32 %v194, %v202
    %v205 = vadd.f32 %v195, %v202
    %v206 = vadd.f32 %v196, %v202
    %v207 = vadd.f32 %v197, %v202
    %v208 = vpack.c.bf16 %v205, %v204
    %v209 = vpack.c.bf16 %v207, %v206
    %v210 = vld [vmem:[#allocation8] sm:$0xff]
    %v211 = vld [vmem:[#allocation8 + $0x8] sm:$0xf]
    %v212 = vld [vmem:[#allocation8 + $0xc] sm:$0xff]
    %v213 = vld [vmem:[#allocation8 + $0x14] sm:$0xf]
    %v214 = vld [vmem:[#allocation8 + $0x18] sm:$0xff]
    %v215 = vld [vmem:[#allocation8 + $0x20] sm:$0xf]
    %v216 = vld [vmem:[#allocation8 + $0x24] sm:$0xff]
    %v217 = vld [vmem:[#allocation8 + $0x2c] sm:$0xf]
    %v218 = vld [vmem:[#allocation8 + $0x30] sm:$0xff]
    %v219 = vld [vmem:[#allocation8 + $0x38] sm:$0xf]
    %v220 = vld [vmem:[#allocation8 + $0x3c] sm:$0xff]
    %v221 = vld [vmem:[#allocation8 + $0x44] sm:$0xf]
    %v222 = vld [vmem:[#allocation8 + $0x48] sm:$0xff]
    %v223 = vld [vmem:[#allocation8 + $0x50] sm:$0xf]
    %v224 = vld [vmem:[#allocation8 + $0x54] sm:$0xff]
    %v225 = vld [vmem:[#allocation8 + $0x5c] sm:$0xf]
    %v226 = vld [vmem:[#allocation8 + $0x60] sm:$0xff]
    %v227 = vld [vmem:[#allocation8 + $0x68] sm:$0xf]
    %v228 = vld [vmem:[#allocation8 + $0x6c] sm:$0xff]
    %v229 = vld [vmem:[#allocation8 + $0x74] sm:$0xf]
    %v230 = vld [vmem:[#allocation8 + $0x78] sm:$0xff]
    %v231 = vld [vmem:[#allocation8 + $0x80] sm:$0xf]
    %v232 = vld [vmem:[#allocation8 + $0x84] sm:$0xff]
    %v233 = vld [vmem:[#allocation8 + $0x8c] sm:$0xf]
    %v234 = vld [vmem:[#allocation8 + $0x90] sm:$0xff]
    %v235 = vld [vmem:[#allocation8 + $0x98] sm:$0xf]
    %v236 = vld [vmem:[#allocation8 + $0x9c] sm:$0xff]
    %v237 = vld [vmem:[#allocation8 + $0xa4] sm:$0xf]
    %v238 = vld [vmem:[#allocation8 + $0xa8] sm:$0xff]
    %v239 = vld [vmem:[#allocation8 + $0xb0] sm:$0xf]
    %v240 = vld [vmem:[#allocation8 + $0xb4] sm:$0xff]
    %v241 = vld [vmem:[#allocation8 + $0xbc] sm:$0xf]
    %v242 = vld [vmem:[%s4] sm:$0x7]
    %v244 = vlaneseq
    %v245 = vshrl.u32 %v244, 7
    %v246 = vsub.s32 0, %v245
    %v247 = vrot.slane %v242, %v246
    %v248 = vlaneseq
    %v249 = vshrl.u32 %v248, 7
    %v250 = vsub.s32 1, %v249
    %v251 = vrot.slane %v242, %v250
    %v252 = vlaneseq
    %v253 = vshrl.u32 %v252, 7
    %v254 = vsub.s32 2, %v253
    %v255 = vrot.slane %v242, %v254
    %v291 = vunpack.c.l.b16 %v210
    %v292 = vunpack.c.h.b16 %v210
    %v293 = vunpack.c.l.b16 %v211
    %v294 = vunpack.c.l.b16 %v212
    %v295 = vunpack.c.h.b16 %v212
    %v296 = vunpack.c.l.b16 %v213
    %v297 = vunpack.c.l.b16 %v214
    %v298 = vunpack.c.h.b16 %v214
    %v299 = vunpack.c.l.b16 %v215
    %v300 = vunpack.c.l.b16 %v216
    %v301 = vunpack.c.h.b16 %v216
    %v302 = vunpack.c.l.b16 %v217
    %v303 = vunpack.c.l.b16 %v218
    %v304 = vunpack.c.h.b16 %v218
    %v305 = vunpack.c.l.b16 %v219
    %v306 = vunpack.c.l.b16 %v220
    %v307 = vunpack.c.h.b16 %v220
    %v308 = vunpack.c.l.b16 %v221
    %v309 = vunpack.c.l.b16 %v222
    %v310 = vunpack.c.h.b16 %v222
    %v311 = vunpack.c.l.b16 %v223
    %v312 = vunpack.c.l.b16 %v224
    %v313 = vunpack.c.h.b16 %v224
    %v314 = vunpack.c.l.b16 %v225
    %v315 = vunpack.c.l.b16 %v226
    %v316 = vunpack.c.h.b16 %v226
    %v317 = vunpack.c.l.b16 %v227
    %v318 = vunpack.c.l.b16 %v228
    %v319 = vunpack.c.h.b16 %v228
    %v320 = vunpack.c.l.b16 %v229
    %v321 = vunpack.c.l.b16 %v230
    %v322 = vunpack.c.h.b16 %v230
    %v323 = vunpack.c.l.b16 %v231
    %v324 = vunpack.c.l.b16 %v232
    %v325 = vunpack.c.h.b16 %v232
    %v326 = vunpack.c.l.b16 %v233
    %v327 = vunpack.c.l.b16 %v234
    %v328 = vunpack.c.h.b16 %v234
    %v329 = vunpack.c.l.b16 %v235
    %v330 = vunpack.c.l.b16 %v236
    %v331 = vunpack.c.h.b16 %v236
    %v332 = vunpack.c.l.b16 %v237
    %v333 = vunpack.c.l.b16 %v238
    %v334 = vunpack.c.h.b16 %v238
    %v335 = vunpack.c.l.b16 %v239
    %v336 = vunpack.c.l.b16 %v240
    %v337 = vunpack.c.h.b16 %v240
    %v338 = vunpack.c.l.b16 %v241
    %v339 = vpack.c.b16 %v294, %v291
    %v340 = vpack.c.b16 %v295, %v292
    %v341 = vpack.c.b16 %v296, %v293
    %v342 = vpack.c.b16 %v300, %v297
    %v343 = vpack.c.b16 %v301, %v298
    %v344 = vpack.c.b16 %v302, %v299
    %v345 = vpack.c.b16 %v306, %v303
    %v346 = vpack.c.b16 %v307, %v304
    %v347 = vpack.c.b16 %v308, %v305
    %v348 = vpack.c.b16 %v312, %v309
    %v349 = vpack.c.b16 %v313, %v310
    %v350 = vpack.c.b16 %v314, %v311
    %v351 = vpack.c.b16 %v318, %v315
    %v352 = vpack.c.b16 %v319, %v316
    %v353 = vpack.c.b16 %v320, %v317
    %v354 = vpack.c.b16 %v324, %v321
    %v355 = vpack.c.b16 %v325, %v322
    %v356 = vpack.c.b16 %v326, %v323
    %v357 = vpack.c.b16 %v330, %v327
    %v358 = vpack.c.b16 %v331, %v328
    %v359 = vpack.c.b16 %v332, %v329
    %v360 = vpack.c.b16 %v336, %v333
    %v361 = vpack.c.b16 %v337, %v334
    %v362 = vpack.c.b16 %v338, %v335
    %387 = vmatprep.subr.bf16.mxu0 %v361
    %388 = vmatpush1.bf16.msra.mxu0 %v360
    %389 = vmatprep.subr.bf16.mxu0 %v358
    %390 = vmatpush1.bf16.msra.mxu0 %v357
    %391 = vmatprep.subr.bf16.mxu0 %v355
    %392 = vmatpush1.bf16.msra.mxu0 %v354
    %393 = vmatprep.subr.bf16.mxu0 %v352
    %394 = vmatpush1.bf16.msra.mxu0 %v351
    %395 = vmatprep.subr.bf16.mxu0 %v349
    %396 = vmatpush1.bf16.msra.mxu0 %v348
    %397 = vmatprep.subr.bf16.mxu0 %v346
    %398 = vmatpush1.bf16.msra.mxu0 %v345
    %399 = vmatprep.subr.bf16.mxu0 %v343
    %400 = vmatpush1.bf16.msra.mxu0 %v342
    %401 = vmatprep.subr.bf16.mxu0 %v340
    %402 = vmatpush1.bf16.msra.mxu0 %v339
    %403 = vmatprep.subr.bf16.mxu0 0
    %404 = vmatpush2.bf16.msra.mxu0 0
    %405 = vmatprep.subr.bf16.mxu0 0
    %406 = vmatpush2.bf16.msra.mxu0 0
    %407 = vmatprep.subr.bf16.mxu0 0
    %408 = vmatpush2.bf16.msra.mxu0 0
    %409 = vmatprep.subr.bf16.mxu0 0
    %410 = vmatpush2.bf16.msra.mxu0 0
    %411 = vmatprep.subr.bf16.mxu0 0
    %412 = vmatpush2.bf16.msra.mxu0 0
    %413 = vmatprep.subr.bf16.mxu0 0
    %414 = vmatpush2.bf16.msra.mxu0 0
    %415 = vmatprep.subr.bf16.mxu0 0
    %416 = vmatpush2.bf16.msra.mxu0 0
    %417 = vmatprep.subr.bf16.mxu0 0
    %418 = vmatpush2.bf16.msra.mxu0 0
    %419 = vmatprep.mubr.bf16.mxu0 0
    %420 = vmatmul.mubr.bf16.gmra.mxu0 %v208
    %v421 = vpop.f32.mrf.mxu0
    %v422 = vadd.f32 %v247, %v421
    %v423 = vpop.f32.mrf.mxu0
    %v424 = vadd.f32 %v251, %v423
    %v425 = vpop.f32.mrf.mxu0
    %v426 = vadd.f32 %v247, %v425
    %v427 = vpop.f32.mrf.mxu0
    %v428 = vadd.f32 %v251, %v427
    %429 = vmatprep.mubr.bf16.mxu0 0
    %430 = vmatmul.mubr.bf16.gmra.mxu0 %v209
    %v431 = vpop.f32.mrf.mxu0
    %v432 = vadd.f32 %v247, %v431
    %v433 = vpop.f32.mrf.mxu0
    %v434 = vadd.f32 %v251, %v433
    %v435 = vpop.f32.mrf.mxu0
    %v436 = vadd.f32 %v247, %v435
    %v437 = vpop.f32.mrf.mxu0
    %v438 = vadd.f32 %v251, %v437
    %439 = vdwg.mxu0
    %440 = vmatprep.subr.bf16.mxu0 0
    %441 = vmatpush1.bf16.msra.mxu0 %v362
    %442 = vmatprep.subr.bf16.mxu0 0
    %443 = vmatpush1.bf16.msra.mxu0 %v359
    %444 = vmatprep.subr.bf16.mxu0 0
    %445 = vmatpush1.bf16.msra.mxu0 %v356
    %446 = vmatprep.subr.bf16.mxu0 0
    %447 = vmatpush1.bf16.msra.mxu0 %v353
    %448 = vmatprep.subr.bf16.mxu0 0
    %449 = vmatpush1.bf16.msra.mxu0 %v350
    %450 = vmatprep.subr.bf16.mxu0 0
    %451 = vmatpush1.bf16.msra.mxu0 %v347
    %452 = vmatprep.subr.bf16.mxu0 0
    %453 = vmatpush1.bf16.msra.mxu0 %v344
    %454 = vmatprep.subr.bf16.mxu0 0
    %455 = vmatpush1.bf16.msra.mxu0 %v341
    %456 = vmatprep.subr.bf16.mxu0 0
    %457 = vmatpush2.bf16.msra.mxu0 0
    %458 = vmatprep.subr.bf16.mxu0 0
    %459 = vmatpush2.bf16.msra.mxu0 0
    %460 = vmatprep.subr.bf16.mxu0 0
    %461 = vmatpush2.bf16.msra.mxu0 0
    %462 = vmatprep.subr.bf16.mxu0 0
    %463 = vmatpush2.bf16.msra.mxu0 0
    %464 = vmatprep.subr.bf16.mxu0 0
    %465 = vmatpush2.bf16.msra.mxu0 0
    %466 = vmatprep.subr.bf16.mxu0 0
    %467 = vmatpush2.bf16.msra.mxu0 0
    %468 = vmatprep.subr.bf16.mxu0 0
    %469 = vmatpush2.bf16.msra.mxu0 0
    %470 = vmatprep.subr.bf16.mxu0 0
    %471 = vmatpush2.bf16.msra.mxu0 0
    %472 = vmatprep.mubr.bf16.mxu0 0
    %473 = vmatmul.mubr.bf16.gmra.mxu0 %v208
    %v474 = vpop.f32.mrf.mxu0
    %v475 = vadd.f32 %v255, %v474
    %v476 = vpop.f32.mrf.mxu0
    %v477 = vpop.f32.mrf.mxu0
    %v478 = vadd.f32 %v255, %v477
    %v479 = vpop.f32.mrf.mxu0
    %480 = vmatprep.mubr.bf16.mxu0 0
    %481 = vmatmul.mubr.bf16.gmra.mxu0 %v209
    %v482 = vpop.f32.mrf.mxu0
    %v483 = vadd.f32 %v255, %v482
    %v484 = vpop.f32.mrf.mxu0
    %v485 = vpop.f32.mrf.mxu0
    %v486 = vadd.f32 %v255, %v485
    %v487 = vpop.f32.mrf.mxu0
    %488 = vdwg.mxu0
    %v489 = vpack.c.bf16 %v426, %v422
    %v490 = vpack.c.bf16 %v428, %v424
    %v491 = vpack.c.bf16 %v478, %v475
    %v492 = vpack.c.bf16 %v436, %v432
    %v493 = vpack.c.bf16 %v438, %v434
    %v494 = vpack.c.bf16 %v486, %v483
    %vm495 = vcmask 261120
    %v497 = vsel %vm495, %v489, 0
    %v500 = vsel %vm495, %v490, 0
    %502 = vmatprep.subr.bf16.mxu0 0
    %503 = vmatpush1.bf16.xpose.msra.mxu0 0
    %504 = vmatprep.subr.bf16.mxu0 0
    %505 = vmatpush1.bf16.xpose.msra.mxu0 0
    %506 = vmatprep.subr.bf16.mxu0 0
    %507 = vmatpush1.bf16.xpose.msra.mxu0 0
    %508 = vmatprep.subr.bf16.mxu0 0
    %509 = vmatpush1.bf16.xpose.msra.mxu0 0
    %510 = vmatprep.subr.bf16.mxu0 0
    %511 = vmatpush1.bf16.xpose.msra.mxu0 0
    %512 = vmatprep.subr.bf16.mxu0 0
    %513 = vmatpush1.bf16.xpose.msra.mxu0 0
    %514 = vmatprep.subr.bf16.mxu0 0
    %515 = vmatpush1.bf16.xpose.msra.mxu0 0
    %516 = vmatprep.subr.bf16.mxu0 0
    %517 = vmatpush1.bf16.xpose.msra.mxu0 %v500
    %518 = vmatprep.subr.bf16.mxu0 0
    %519 = vmatpush2.bf16.xpose.msra.mxu0 0
    %520 = vmatprep.subr.bf16.mxu0 0
    %521 = vmatpush2.bf16.xpose.msra.mxu0 0
    %522 = vmatprep.subr.bf16.mxu0 0
    %523 = vmatpush2.bf16.xpose.msra.mxu0 0
    %524 = vmatprep.subr.bf16.mxu0 0
    %525 = vmatpush2.bf16.xpose.msra.mxu0 0
    %526 = vmatprep.subr.bf16.mxu0 0
    %527 = vmatpush2.bf16.xpose.msra.mxu0 0
    %528 = vmatprep.subr.bf16.mxu0 0
    %529 = vmatpush2.bf16.xpose.msra.mxu0 0
    %530 = vmatprep.subr.bf16.mxu0 0
    %531 = vmatpush2.bf16.xpose.msra.mxu0 0
    %532 = vmatprep.subr.bf16.mxu0 0
    %533 = vmatpush2.bf16.xpose.msra.mxu0 0
    %534 = vmatprep.mubr.bf16.mxu0 0
    %535 = vmatmul.mubr.bf16.gmra.mxu0 %v497
    %v536 = vpop.f32.mrf.mxu0
    %v537 = vadd.f32 0.0, %v536
    %v538 = vpop.f32.mrf.mxu0
    %v539 = vpop.f32.mrf.mxu0
    %v540 = vadd.f32 0.0, %v539
    %v541 = vpop.f32.mrf.mxu0
    %542 = vdwg.mxu0
    %vm543 = vcmask 130048
    %v544 = vsel %vm543, %v537, -inf
    %545 = vmax.xlane.f32.xlu0 %v544
    %v546 = vpop.xlane.xlu0 %545
    %v547 = vsel %vm543, %v540, -inf
    %548 = vmax.xlane.f32.xlu0 %v547
    %v549 = vpop.xlane.xlu0 %548
    %v550 = vsub.f32 %v537, %v546
    %v551 = vsub.f32 %v540, %v549
    %v552 = vmul.f32 %v550, 1.442695
    %v553 = vpow.pop %v552
    %v554 = vmul.f32 %v551, 1.442695
    %v555 = vpow.pop %v554
    %v556 = vsel %vm543, %v553, 0.0
    %557 = vadd.xlane.f32.xlu0 %v556
    %v558 = vpop.xlane.xlu0 %557
    %v559 = vsel %vm543, %v555, 0.0
    %560 = vadd.xlane.f32.xlu0 %v559
    %v561 = vpop.xlane.xlu0 %560
    %v562 = vpack.c.bf16 %v555, %v553
    %v564 = vsel %vm543, %v562, 0
    %566 = vmatprep.subr.bf16.mxu0 0
    %567 = vmatpush1.bf16.msra.mxu0 0
    %568 = vmatprep.subr.bf16.mxu0 0
    %569 = vmatpush1.bf16.msra.mxu0 0
    %570 = vmatprep.subr.bf16.mxu0 0
    %571 = vmatpush1.bf16.msra.mxu0 0
    %572 = vmatprep.subr.bf16.mxu0 0
    %573 = vmatpush1.bf16.msra.mxu0 0
    %574 = vmatprep.subr.bf16.mxu0 0
    %575 = vmatpush1.bf16.msra.mxu0 0
    %576 = vmatprep.subr.bf16.mxu0 0
    %577 = vmatpush1.bf16.msra.mxu0 0
    %578 = vmatprep.subr.bf16.mxu0 0
    %579 = vmatpush1.bf16.msra.mxu0 0
    %580 = vmatprep.subr.bf16.mxu0 0
    %581 = vmatpush1.bf16.msra.mxu0 %v491
    %582 = vmatprep.subr.bf16.mxu0 0
    %583 = vmatpush2.bf16.msra.mxu0 0
    %584 = vmatprep.subr.bf16.mxu0 0
    %585 = vmatpush2.bf16.msra.mxu0 0
    %586 = vmatprep.subr.bf16.mxu0 0
    %587 = vmatpush2.bf16.msra.mxu0 0
    %588 = vmatprep.subr.bf16.mxu0 0
    %589 = vmatpush2.bf16.msra.mxu0 0
    %590 = vmatprep.subr.bf16.mxu0 0
    %591 = vmatpush2.bf16.msra.mxu0 0
    %592 = vmatprep.subr.bf16.mxu0 0
    %593 = vmatpush2.bf16.msra.mxu0 0
    %594 = vmatprep.subr.bf16.mxu0 0
    %595 = vmatpush2.bf16.msra.mxu0 0
    %596 = vmatprep.subr.bf16.mxu0 0
    %597 = vmatpush2.bf16.msra.mxu0 0
    %598 = vmatprep.mubr.bf16.mxu0 0
    %599 = vmatmul.mubr.bf16.gmra.mxu0 %v564
    %v600 = vpop.f32.mrf.mxu0
    %v601 = vadd.f32 0.0, %v600
    %v602 = vpop.f32.mrf.mxu0
    %v603 = vpop.f32.mrf.mxu0
    %v604 = vadd.f32 0.0, %v603
    %v605 = vpop.f32.mrf.mxu0
    %606 = vdwg.mxu0
    %v607 = vrcp.pop %v558
    %v608 = vrcp.pop %v561
    %v609 = vmul.f32 %v601, %v607
    %v610 = vmul.f32 %v604, %v608
    %v611 = vpack.c.bf16 %v610, %v609
    %613 = vrot.lane.b32.xlu0 %v489, 96
    %v614 = vpop.permute.xlu0 %613
    %616 = vrot.lane.b32.xlu0 %v490, 96
    %v617 = vpop.permute.xlu0 %616
    %v619 = vsel %vm495, %v614, 0
    %v622 = vsel %vm495, %v617, 0
    %624 = vmatprep.subr.bf16.mxu0 0
    %625 = vmatpush1.bf16.xpose.msra.mxu0 0
    %626 = vmatprep.subr.bf16.mxu0 0
    %627 = vmatpush1.bf16.xpose.msra.mxu0 0
    %628 = vmatprep.subr.bf16.mxu0 0
    %629 = vmatpush1.bf16.xpose.msra.mxu0 0
    %630 = vmatprep.subr.bf16.mxu0 0
    %631 = vmatpush1.bf16.xpose.msra.mxu0 0
    %632 = vmatprep.subr.bf16.mxu0 0
    %633 = vmatpush1.bf16.xpose.msra.mxu0 0
    %634 = vmatprep.subr.bf16.mxu0 0
    %635 = vmatpush1.bf16.xpose.msra.mxu0 0
    %636 = vmatprep.subr.bf16.mxu0 0
    %637 = vmatpush1.bf16.xpose.msra.mxu0 0
    %638 = vmatprep.subr.bf16.mxu0 0
    %639 = vmatpush1.bf16.xpose.msra.mxu0 %v622
    %640 = vmatprep.subr.bf16.mxu0 0
    %641 = vmatpush2.bf16.xpose.msra.mxu0 0
    %642 = vmatprep.subr.bf16.mxu0 0
    %643 = vmatpush2.bf16.xpose.msra.mxu0 0
    %644 = vmatprep.subr.bf16.mxu0 0
    %645 = vmatpush2.bf16.xpose.msra.mxu0 0
    %646 = vmatprep.subr.bf16.mxu0 0
    %647 = vmatpush2.bf16.xpose.msra.mxu0 0
    %648 = vmatprep.subr.bf16.mxu0 0
    %649 = vmatpush2.bf16.xpose.msra.mxu0 0
    %650 = vmatprep.subr.bf16.mxu0 0
    %651 = vmatpush2.bf16.xpose.msra.mxu0 0
    %652 = vmatprep.subr.bf16.mxu0 0
    %653 = vmatpush2.bf16.xpose.msra.mxu0 0
    %654 = vmatprep.subr.bf16.mxu0 0
    %655 = vmatpush2.bf16.xpose.msra.mxu0 0
    %656 = vmatprep.mubr.bf16.mxu0 0
    %657 = vmatmul.mubr.bf16.gmra.mxu0 %v619
    %v658 = vpop.f32.mrf.mxu0
    %v659 = vadd.f32 0.0, %v658
    %v660 = vpop.f32.mrf.mxu0
    %v661 = vpop.f32.mrf.mxu0
    %v662 = vadd.f32 0.0, %v661
    %v663 = vpop.f32.mrf.mxu0
    %664 = vdwg.mxu0
    %v665 = vsel %vm543, %v659, -inf
    %666 = vmax.xlane.f32.xlu0 %v665
    %v667 = vpop.xlane.xlu0 %666
    %v668 = vsel %vm543, %v662, -inf
    %669 = vmax.xlane.f32.xlu0 %v668
    %v670 = vpop.xlane.xlu0 %669
    %v671 = vsub.f32 %v659, %v667
    %v672 = vsub.f32 %v662, %v670
    %v673 = vmul.f32 %v671, 1.442695
    %v674 = vpow.pop %v673
    %v675 = vmul.f32 %v672, 1.442695
    %v676 = vpow.pop %v675
    %v677 = vsel %vm543, %v674, 0.0
    %678 = vadd.xlane.f32.xlu0 %v677
    %v679 = vpop.xlane.xlu0 %678
    %v680 = vsel %vm543, %v676, 0.0
    %681 = vadd.xlane.f32.xlu0 %v680
    %v682 = vpop.xlane.xlu0 %681
    %v683 = vpack.c.bf16 %v676, %v674
    %685 = vrot.lane.b32.xlu0 %v491, 96
    %v686 = vpop.permute.xlu0 %685
    %v689 = vsel %vm543, %v683, 0
    %691 = vmatprep.subr.bf16.mxu0 0
    %692 = vmatpush1.bf16.msra.mxu0 0
    %693 = vmatprep.subr.bf16.mxu0 0
    %694 = vmatpush1.bf16.msra.mxu0 0
    %695 = vmatprep.subr.bf16.mxu0 0
    %696 = vmatpush1.bf16.msra.mxu0 0
    %697 = vmatprep.subr.bf16.mxu0 0
    %698 = vmatpush1.bf16.msra.mxu0 0
    %699 = vmatprep.subr.bf16.mxu0 0
    %700 = vmatpush1.bf16.msra.mxu0 0
    %701 = vmatprep.subr.bf16.mxu0 0
    %702 = vmatpush1.bf16.msra.mxu0 0
    %703 = vmatprep.subr.bf16.mxu0 0
    %704 = vmatpush1.bf16.msra.mxu0 0
    %705 = vmatprep.subr.bf16.mxu0 0
    %706 = vmatpush1.bf16.msra.mxu0 %v686
    %707 = vmatprep.subr.bf16.mxu0 0
    %708 = vmatpush2.bf16.msra.mxu0 0
    %709 = vmatprep.subr.bf16.mxu0 0
    %710 = vmatpush2.bf16.msra.mxu0 0
    %711 = vmatprep.subr.bf16.mxu0 0
    %712 = vmatpush2.bf16.msra.mxu0 0
    %713 = vmatprep.subr.bf16.mxu0 0
    %714 = vmatpush2.bf16.msra.mxu0 0
    %715 = vmatprep.subr.bf16.mxu0 0
    %716 = vmatpush2.bf16.msra.mxu0 0
    %717 = vmatprep.subr.bf16.mxu0 0
    %718 = vmatpush2.bf16.msra.mxu0 0
    %719 = vmatprep.subr.bf16.mxu0 0
    %720 = vmatpush2.bf16.msra.mxu0 0
    %721 = vmatprep.subr.bf16.mxu0 0
    %722 = vmatpush2.bf16.msra.mxu0 0
    %723 = vmatprep.mubr.bf16.mxu0 0
    %724 = vmatmul.mubr.bf16.gmra.mxu0 %v689
    %v725 = vpop.f32.mrf.mxu0
    %v726 = vadd.f32 0.0, %v725
    %v727 = vpop.f32.mrf.mxu0
    %v728 = vpop.f32.mrf.mxu0
    %v729 = vadd.f32 0.0, %v728
    %v730 = vpop.f32.mrf.mxu0
    %731 = vdwg.mxu0
    %v732 = vrcp.pop %v679
    %v733 = vrcp.pop %v682
    %v734 = vmul.f32 %v726, %v732
    %v735 = vmul.f32 %v729, %v733
    %v736 = vpack.c.bf16 %v735, %v734
    %737 = vrot.lane.b32.xlu0 %v489, 64
    %v738 = vpop.permute.xlu0 %737
    %739 = vrot.lane.b32.xlu0 %v490, 64
    %v740 = vpop.permute.xlu0 %739
    %v742 = vsel %vm495, %v738, 0
    %v745 = vsel %vm495, %v740, 0
    %747 = vmatprep.subr.bf16.mxu0 0
    %748 = vmatpush1.bf16.xpose.msra.mxu0 0
    %749 = vmatprep.subr.bf16.mxu0 0
    %750 = vmatpush1.bf16.xpose.msra.mxu0 0
    %751 = vmatprep.subr.bf16.mxu0 0
    %752 = vmatpush1.bf16.xpose.msra.mxu0 0
    %753 = vmatprep.subr.bf16.mxu0 0
    %754 = vmatpush1.bf16.xpose.msra.mxu0 0
    %755 = vmatprep.subr.bf16.mxu0 0
    %756 = vmatpush1.bf16.xpose.msra.mxu0 0
    %757 = vmatprep.subr.bf16.mxu0 0
    %758 = vmatpush1.bf16.xpose.msra.mxu0 0
    %759 = vmatprep.subr.bf16.mxu0 0
    %760 = vmatpush1.bf16.xpose.msra.mxu0 0
    %761 = vmatprep.subr.bf16.mxu0 0
    %762 = vmatpush1.bf16.xpose.msra.mxu0 %v745
    %763 = vmatprep.subr.bf16.mxu0 0
    %764 = vmatpush2.bf16.xpose.msra.mxu0 0
    %765 = vmatprep.subr.bf16.mxu0 0
    %766 = vmatpush2.bf16.xpose.msra.mxu0 0
    %767 = vmatprep.subr.bf16.mxu0 0
    %768 = vmatpush2.bf16.xpose.msra.mxu0 0
    %769 = vmatprep.subr.bf16.mxu0 0
    %770 = vmatpush2.bf16.xpose.msra.mxu0 0
    %771 = vmatprep.subr.bf16.mxu0 0
    %772 = vmatpush2.bf16.xpose.msra.mxu0 0
    %773 = vmatprep.subr.bf16.mxu0 0
    %774 = vmatpush2.bf16.xpose.msra.mxu0 0
    %775 = vmatprep.subr.bf16.mxu0 0
    %776 = vmatpush2.bf16.xpose.msra.mxu0 0
    %777 = vmatprep.subr.bf16.mxu0 0
    %778 = vmatpush2.bf16.xpose.msra.mxu0 0
    %779 = vmatprep.mubr.bf16.mxu0 0
    %780 = vmatmul.mubr.bf16.gmra.mxu0 %v742
    %v781 = vpop.f32.mrf.mxu0
    %v782 = vadd.f32 0.0, %v781
    %v783 = vpop.f32.mrf.mxu0
    %v784 = vpop.f32.mrf.mxu0
    %v785 = vadd.f32 0.0, %v784
    %v786 = vpop.f32.mrf.mxu0
    %787 = vdwg.mxu0
    %v788 = vsel %vm543, %v782, -inf
    %789 = vmax.xlane.f32.xlu0 %v788
    %v790 = vpop.xlane.xlu0 %789
    %v791 = vsel %vm543, %v785, -inf
    %792 = vmax.xlane.f32.xlu0 %v791
    %v793 = vpop.xlane.xlu0 %792
    %v794 = vsub.f32 %v782, %v790
    %v795 = vsub.f32 %v785, %v793
    %v796 = vmul.f32 %v794, 1.442695
    %v797 = vpow.pop %v796
    %v798 = vmul.f32 %v795, 1.442695
    %v799 = vpow.pop %v798
    %v800 = vsel %vm543, %v797, 0.0
    %801 = vadd.xlane.f32.xlu0 %v800
    %v802 = vpop.xlane.xlu0 %801
    %v803 = vsel %vm543, %v799, 0.0
    %804 = vadd.xlane.f32.xlu0 %v803
    %v805 = vpop.xlane.xlu0 %804
    %v806 = vpack.c.bf16 %v799, %v797
    %807 = vrot.lane.b32.xlu0 %v491, 64
    %v808 = vpop.permute.xlu0 %807
    %v811 = vsel %vm543, %v806, 0
    %813 = vmatprep.subr.bf16.mxu0 0
    %814 = vmatpush1.bf16.msra.mxu0 0
    %815 = vmatprep.subr.bf16.mxu0 0
    %816 = vmatpush1.bf16.msra.mxu0 0
    %817 = vmatprep.subr.bf16.mxu0 0
    %818 = vmatpush1.bf16.msra.mxu0 0
    %819 = vmatprep.subr.bf16.mxu0 0
    %820 = vmatpush1.bf16.msra.mxu0 0
    %821 = vmatprep.subr.bf16.mxu0 0
    %822 = vmatpush1.bf16.msra.mxu0 0
    %823 = vmatprep.subr.bf16.mxu0 0
    %824 = vmatpush1.bf16.msra.mxu0 0
    %825 = vmatprep.subr.bf16.mxu0 0
    %826 = vmatpush1.bf16.msra.mxu0 0
    %827 = vmatprep.subr.bf16.mxu0 0
    %828 = vmatpush1.bf16.msra.mxu0 %v808
    %829 = vmatprep.subr.bf16.mxu0 0
    %830 = vmatpush2.bf16.msra.mxu0 0
    %831 = vmatprep.subr.bf16.mxu0 0
    %832 = vmatpush2.bf16.msra.mxu0 0
    %833 = vmatprep.subr.bf16.mxu0 0
    %834 = vmatpush2.bf16.msra.mxu0 0
    %835 = vmatprep.subr.bf16.mxu0 0
    %836 = vmatpush2.bf16.msra.mxu0 0
    %837 = vmatprep.subr.bf16.mxu0 0
    %838 = vmatpush2.bf16.msra.mxu0 0
    %839 = vmatprep.subr.bf16.mxu0 0
    %840 = vmatpush2.bf16.msra.mxu0 0
    %841 = vmatprep.subr.bf16.mxu0 0
    %842 = vmatpush2.bf16.msra.mxu0 0
    %843 = vmatprep.subr.bf16.mxu0 0
    %844 = vmatpush2.bf16.msra.mxu0 0
    %845 = vmatprep.mubr.bf16.mxu0 0
    %846 = vmatmul.mubr.bf16.gmra.mxu0 %v811
    %v847 = vpop.f32.mrf.mxu0
    %v848 = vadd.f32 0.0, %v847
    %v849 = vpop.f32.mrf.mxu0
    %v850 = vpop.f32.mrf.mxu0
    %v851 = vadd.f32 0.0, %v850
    %v852 = vpop.f32.mrf.mxu0
    %853 = vdwg.mxu0
    %v854 = vrcp.pop %v802
    %v855 = vrcp.pop %v805
    %v856 = vmul.f32 %v848, %v854
    %v857 = vmul.f32 %v851, %v855
    %v858 = vpack.c.bf16 %v857, %v856
    %859 = vrot.lane.b32.xlu0 %v489, 32
    %v860 = vpop.permute.xlu0 %859
    %861 = vrot.lane.b32.xlu0 %v490, 32
    %v862 = vpop.permute.xlu0 %861
    %v864 = vsel %vm495, %v860, 0
    %v867 = vsel %vm495, %v862, 0
    %869 = vmatprep.subr.bf16.mxu0 0
    %870 = vmatpush1.bf16.xpose.msra.mxu0 0
    %871 = vmatprep.subr.bf16.mxu0 0
    %872 = vmatpush1.bf16.xpose.msra.mxu0 0
    %873 = vmatprep.subr.bf16.mxu0 0
    %874 = vmatpush1.bf16.xpose.msra.mxu0 0
    %875 = vmatprep.subr.bf16.mxu0 0
    %876 = vmatpush1.bf16.xpose.msra.mxu0 0
    %877 = vmatprep.subr.bf16.mxu0 0
    %878 = vmatpush1.bf16.xpose.msra.mxu0 0
    %879 = vmatprep.subr.bf16.mxu0 0
    %880 = vmatpush1.bf16.xpose.msra.mxu0 0
    %881 = vmatprep.subr.bf16.mxu0 0
    %882 = vmatpush1.bf16.xpose.msra.mxu0 0
    %883 = vmatprep.subr.bf16.mxu0 0
    %884 = vmatpush1.bf16.xpose.msra.mxu0 %v867
    %885 = vmatprep.subr.bf16.mxu0 0
    %886 = vmatpush2.bf16.xpose.msra.mxu0 0
    %887 = vmatprep.subr.bf16.mxu0 0
    %888 = vmatpush2.bf16.xpose.msra.mxu0 0
    %889 = vmatprep.subr.bf16.mxu0 0
    %890 = vmatpush2.bf16.xpose.msra.mxu0 0
    %891 = vmatprep.subr.bf16.mxu0 0
    %892 = vmatpush2.bf16.xpose.msra.mxu0 0
    %893 = vmatprep.subr.bf16.mxu0 0
    %894 = vmatpush2.bf16.xpose.msra.mxu0 0
    %895 = vmatprep.subr.bf16.mxu0 0
    %896 = vmatpush2.bf16.xpose.msra.mxu0 0
    %897 = vmatprep.subr.bf16.mxu0 0
    %898 = vmatpush2.bf16.xpose.msra.mxu0 0
    %899 = vmatprep.subr.bf16.mxu0 0
    %900 = vmatpush2.bf16.xpose.msra.mxu0 0
    %901 = vmatprep.mubr.bf16.mxu0 0
    %902 = vmatmul.mubr.bf16.gmra.mxu0 %v864
    %v903 = vpop.f32.mrf.mxu0
    %v904 = vadd.f32 0.0, %v903
    %v905 = vpop.f32.mrf.mxu0
    %v906 = vpop.f32.mrf.mxu0
    %v907 = vadd.f32 0.0, %v906
    %v908 = vpop.f32.mrf.mxu0
    %909 = vdwg.mxu0
    %v910 = vsel %vm543, %v904, -inf
    %911 = vmax.xlane.f32.xlu0 %v910
    %v912 = vpop.xlane.xlu0 %911
    %v913 = vsel %vm543, %v907, -inf
    %914 = vmax.xlane.f32.xlu0 %v913
    %v915 = vpop.xlane.xlu0 %914
    %v916 = vsub.f32 %v904, %v912
    %v917 = vsub.f32 %v907, %v915
    %v918 = vmul.f32 %v916, 1.442695
    %v919 = vpow.pop %v918
    %v920 = vmul.f32 %v917, 1.442695
    %v921 = vpow.pop %v920
    %v922 = vsel %vm543, %v919, 0.0
    %923 = vadd.xlane.f32.xlu0 %v922
    %v924 = vpop.xlane.xlu0 %923
    %v925 = vsel %vm543, %v921, 0.0
    %926 = vadd.xlane.f32.xlu0 %v925
    %v927 = vpop.xlane.xlu0 %926
    %v928 = vpack.c.bf16 %v921, %v919
    %929 = vrot.lane.b32.xlu0 %v491, 32
    %v930 = vpop.permute.xlu0 %929
    %v933 = vsel %vm543, %v928, 0
    %935 = vmatprep.subr.bf16.mxu0 0
    %936 = vmatpush1.bf16.msra.mxu0 0
    %937 = vmatprep.subr.bf16.mxu0 0
    %938 = vmatpush1.bf16.msra.mxu0 0
    %939 = vmatprep.subr.bf16.mxu0 0
    %940 = vmatpush1.bf16.msra.mxu0 0
    %941 = vmatprep.subr.bf16.mxu0 0
    %942 = vmatpush1.bf16.msra.mxu0 0
    %943 = vmatprep.subr.bf16.mxu0 0
    %944 = vmatpush1.bf16.msra.mxu0 0
    %945 = vmatprep.subr.bf16.mxu0 0
    %946 = vmatpush1.bf16.msra.mxu0 0
    %947 = vmatprep.subr.bf16.mxu0 0
    %948 = vmatpush1.bf16.msra.mxu0 0
    %949 = vmatprep.subr.bf16.mxu0 0
    %950 = vmatpush1.bf16.msra.mxu0 %v930
    %951 = vmatprep.subr.bf16.mxu0 0
    %952 = vmatpush2.bf16.msra.mxu0 0
    %953 = vmatprep.subr.bf16.mxu0 0
    %954 = vmatpush2.bf16.msra.mxu0 0
    %955 = vmatprep.subr.bf16.mxu0 0
    %956 = vmatpush2.bf16.msra.mxu0 0
    %957 = vmatprep.subr.bf16.mxu0 0
    %958 = vmatpush2.bf16.msra.mxu0 0
    %959 = vmatprep.subr.bf16.mxu0 0
    %960 = vmatpush2.bf16.msra.mxu0 0
    %961 = vmatprep.subr.bf16.mxu0 0
    %962 = vmatpush2.bf16.msra.mxu0 0
    %963 = vmatprep.subr.bf16.mxu0 0
    %964 = vmatpush2.bf16.msra.mxu0 0
    %965 = vmatprep.subr.bf16.mxu0 0
    %966 = vmatpush2.bf16.msra.mxu0 0
    %967 = vmatprep.mubr.bf16.mxu0 0
    %968 = vmatmul.mubr.bf16.gmra.mxu0 %v933
    %v969 = vpop.f32.mrf.mxu0
    %v970 = vadd.f32 0.0, %v969
    %v971 = vpop.f32.mrf.mxu0
    %v972 = vpop.f32.mrf.mxu0
    %v973 = vadd.f32 0.0, %v972
    %v974 = vpop.f32.mrf.mxu0
    %975 = vdwg.mxu0
    %v976 = vrcp.pop %v924
    %v977 = vrcp.pop %v927
    %v978 = vmul.f32 %v970, %v976
    %v979 = vmul.f32 %v973, %v977
    %v980 = vpack.c.bf16 %v979, %v978
    %982 = vrot.lane.b32.xlu0 %v736, 32
    %v983 = vpop.permute.xlu0 %982
    %985 = vrot.lane.b32.xlu0 %v858, 64
    %v986 = vpop.permute.xlu0 %985
    %988 = vrot.lane.b32.xlu0 %v980, 96
    %v989 = vpop.permute.xlu0 %988
    %v992 = vsel %vm495, %v611, %v983
    %vm993 = vcmask 523264
    %v995 = vsel %vm993, %v992, %v986
    %vm996 = vcmask 785408
    %v998 = vsel %vm996, %v995, %v989
    %v1001 = vsel %vm495, %v492, 0
    %v1004 = vsel %vm495, %v493, 0
    %1006 = vmatprep.subr.bf16.mxu0 0
    %1007 = vmatpush1.bf16.xpose.msra.mxu0 0
    %1008 = vmatprep.subr.bf16.mxu0 0
    %1009 = vmatpush1.bf16.xpose.msra.mxu0 0
    %1010 = vmatprep.subr.bf16.mxu0 0
    %1011 = vmatpush1.bf16.xpose.msra.mxu0 0
    %1012 = vmatprep.subr.bf16.mxu0 0
    %1013 = vmatpush1.bf16.xpose.msra.mxu0 0
    %1014 = vmatprep.subr.bf16.mxu0 0
    %1015 = vmatpush1.bf16.xpose.msra.mxu0 0
    %1016 = vmatprep.subr.bf16.mxu0 0
    %1017 = vmatpush1.bf16.xpose.msra.mxu0 0
    %1018 = vmatprep.subr.bf16.mxu0 0
    %1019 = vmatpush1.bf16.xpose.msra.mxu0 0
    %1020 = vmatprep.subr.bf16.mxu0 0
    %1021 = vmatpush1.bf16.xpose.msra.mxu0 %v1004
    %1022 = vmatprep.subr.bf16.mxu0 0
    %1023 = vmatpush2.bf16.xpose.msra.mxu0 0
    %1024 = vmatprep.subr.bf16.mxu0 0
    %1025 = vmatpush2.bf16.xpose.msra.mxu0 0
    %1026 = vmatprep.subr.bf16.mxu0 0
    %1027 = vmatpush2.bf16.xpose.msra.mxu0 0
    %1028 = vmatprep.subr.bf16.mxu0 0
    %1029 = vmatpush2.bf16.xpose.msra.mxu0 0
    %1030 = vmatprep.subr.bf16.mxu0 0
    %1031 = vmatpush2.bf16.xpose.msra.mxu0 0
    %1032 = vmatprep.subr.bf16.mxu0 0
    %1033 = vmatpush2.bf16.xpose.msra.mxu0 0
    %1034 = vmatprep.subr.bf16.mxu0 0
    %1035 = vmatpush2.bf16.xpose.msra.mxu0 0
    %1036 = vmatprep.subr.bf16.mxu0 0
    %1037 = vmatpush2.bf16.xpose.msra.mxu0 0
    %1038 = vmatprep.mubr.bf16.mxu0 0
    %1039 = vmatmul.mubr.bf16.gmra.mxu0 %v1001
    %v1040 = vpop.f32.mrf.mxu0
    %v1041 = vadd.f32 0.0, %v1040
    %v1042 = vpop.f32.mrf.mxu0
    %v1043 = vpop.f32.mrf.mxu0
    %v1044 = vadd.f32 0.0, %v1043
    %v1045 = vpop.f32.mrf.mxu0
    %1046 = vdwg.mxu0
    %v1047 = vsel %vm543, %v1041, -inf
    %1048 = vmax.xlane.f32.xlu0 %v1047
    %v1049 = vpop.xlane.xlu0 %1048
    %v1050 = vsel %vm543, %v1044, -inf
    %1051 = vmax.xlane.f32.xlu0 %v1050
    %v1052 = vpop.xlane.xlu0 %1051
    %v1053 = vsub.f32 %v1041, %v1049
    %v1054 = vsub.f32 %v1044, %v1052
    %v1055 = vmul.f32 %v1053, 1.442695
    %v1056 = vpow.pop %v1055
    %v1057 = vmul.f32 %v1054, 1.442695
    %v1058 = vpow.pop %v1057
    %v1059 = vsel %vm543, %v1056, 0.0
    %1060 = vadd.xlane.f32.xlu0 %v1059
    %v1061 = vpop.xlane.xlu0 %1060
    %v1062 = vsel %vm543, %v1058, 0.0
    %1063 = vadd.xlane.f32.xlu0 %v1062
    %v1064 = vpop.xlane.xlu0 %1063
    %v1065 = vpack.c.bf16 %v1058, %v1056
    %v1067 = vsel %vm543, %v1065, 0
    %1069 = vmatprep.subr.bf16.mxu0 0
    %1070 = vmatpush1.bf16.msra.mxu0 0
    %1071 = vmatprep.subr.bf16.mxu0 0
    %1072 = vmatpush1.bf16.msra.mxu0 0
    %1073 = vmatprep.subr.bf16.mxu0 0
    %1074 = vmatpush1.bf16.msra.mxu0 0
    %1075 = vmatprep.subr.bf16.mxu0 0
    %1076 = vmatpush1.bf16.msra.mxu0 0
    %1077 = vmatprep.subr.bf16.mxu0 0
    %1078 = vmatpush1.bf16.msra.mxu0 0
    %1079 = vmatprep.subr.bf16.mxu0 0
    %1080 = vmatpush1.bf16.msra.mxu0 0
    %1081 = vmatprep.subr.bf16.mxu0 0
    %1082 = vmatpush1.bf16.msra.mxu0 0
    %1083 = vmatprep.subr.bf16.mxu0 0
    %1084 = vmatpush1.bf16.msra.mxu0 %v494
    %1085 = vmatprep.subr.bf16.mxu0 0
    %1086 = vmatpush2.bf16.msra.mxu0 0
    %1087 = vmatprep.subr.bf16.mxu0 0
    %1088 = vmatpush2.bf16.msra.mxu0 0
    %1089 = vmatprep.subr.bf16.mxu0 0
    %1090 = vmatpush2.bf16.msra.mxu0 0
    %1091 = vmatprep.subr.bf16.mxu0 0
    %1092 = vmatpush2.bf16.msra.mxu0 0
    %1093 = vmatprep.subr.bf16.mxu0 0
    %1094 = vmatpush2.bf16.msra.mxu0 0
    %1095 = vmatprep.subr.bf16.mxu0 0
    %1096 = vmatpush2.bf16.msra.mxu0 0
    %1097 = vmatprep.subr.bf16.mxu0 0
    %1098 = vmatpush2.bf16.msra.mxu0 0
    %1099 = vmatprep.subr.bf16.mxu0 0
    %1100 = vmatpush2.bf16.msra.mxu0 0
    %1101 = vmatprep.mubr.bf16.mxu0 0
    %1102 = vmatmul.mubr.bf16.gmra.mxu0 %v1067
    %v1103 = vpop.f32.mrf.mxu0
    %v1104 = vadd.f32 0.0, %v1103
    %v1105 = vpop.f32.mrf.mxu0
    %v1106 = vpop.f32.mrf.mxu0
    %v1107 = vadd.f32 0.0, %v1106
    %v1108 = vpop.f32.mrf.mxu0
    %1109 = vdwg.mxu0
    %v1110 = vrcp.pop %v1061
    %v1111 = vrcp.pop %v1064
    %v1112 = vmul.f32 %v1104, %v1110
    %v1113 = vmul.f32 %v1107, %v1111
    %v1114 = vpack.c.bf16 %v1113, %v1112
    %1116 = vrot.lane.b32.xlu0 %v492, 96
    %v1117 = vpop.permute.xlu0 %1116
    %1119 = vrot.lane.b32.xlu0 %v493, 96
    %v1120 = vpop.permute.xlu0 %1119
    %v1122 = vsel %vm495, %v1117, 0
    %v1125 = vsel %vm495, %v1120, 0
    %1127 = vmatprep.subr.bf16.mxu0 0
    %1128 = vmatpush1.bf16.xpose.msra.mxu0 0
    %1129 = vmatprep.subr.bf16.mxu0 0
    %1130 = vmatpush1.bf16.xpose.msra.mxu0 0
    %1131 = vmatprep.subr.bf16.mxu0 0
    %1132 = vmatpush1.bf16.xpose.msra.mxu0 0
    %1133 = vmatprep.subr.bf16.mxu0 0
    %1134 = vmatpush1.bf16.xpose.msra.mxu0 0
    %1135 = vmatprep.subr.bf16.mxu0 0
    %1136 = vmatpush1.bf16.xpose.msra.mxu0 0
    %1137 = vmatprep.subr.bf16.mxu0 0
    %1138 = vmatpush1.bf16.xpose.msra.mxu0 0
    %1139 = vmatprep.subr.bf16.mxu0 0
    %1140 = vmatpush1.bf16.xpose.msra.mxu0 0
    %1141 = vmatprep.subr.bf16.mxu0 0
    %1142 = vmatpush1.bf16.xpose.msra.mxu0 %v1125
    %1143 = vmatprep.subr.bf16.mxu0 0
    %1144 = vmatpush2.bf16.xpose.msra.mxu0 0
    %1145 = vmatprep.subr.bf16.mxu0 0
    %1146 = vmatpush2.bf16.xpose.msra.mxu0 0
    %1147 = vmatprep.subr.bf16.mxu0 0
    %1148 = vmatpush2.bf16.xpose.msra.mxu0 0
    %1149 = vmatprep.subr.bf16.mxu0 0
    %1150 = vmatpush2.bf16.xpose.msra.mxu0 0
    %1151 = vmatprep.subr.bf16.mxu0 0
    %1152 = vmatpush2.bf16.xpose.msra.mxu0 0
    %1153 = vmatprep.subr.bf16.mxu0 0
    %1154 = vmatpush2.bf16.xpose.msra.mxu0 0
    %1155 = vmatprep.subr.bf16.mxu0 0
    %1156 = vmatpush2.bf16.xpose.msra.mxu0 0
    %1157 = vmatprep.subr.bf16.mxu0 0
    %1158 = vmatpush2.bf16.xpose.msra.mxu0 0
    %1159 = vmatprep.mubr.bf16.mxu0 0
    %1160 = vmatmul.mubr.bf16.gmra.mxu0 %v1122
    %v1161 = vpop.f32.mrf.mxu0
    %v1162 = vadd.f32 0.0, %v1161
    %v1163 = vpop.f32.mrf.mxu0
    %v1164 = vpop.f32.mrf.mxu0
    %v1165 = vadd.f32 0.0, %v1164
    %v1166 = vpop.f32.mrf.mxu0
    %1167 = vdwg.mxu0
    %v1168 = vsel %vm543, %v1162, -inf
    %1169 = vmax.xlane.f32.xlu0 %v1168
    %v1170 = vpop.xlane.xlu0 %1169
    %v1171 = vsel %vm543, %v1165, -inf
    %1172 = vmax.xlane.f32.xlu0 %v1171
    %v1173 = vpop.xlane.xlu0 %1172
    %v1174 = vsub.f32 %v1162, %v1170
    %v1175 = vsub.f32 %v1165, %v1173
    %v1176 = vmul.f32 %v1174, 1.442695
    %v1177 = vpow.pop %v1176
    %v1178 = vmul.f32 %v1175, 1.442695
    %v1179 = vpow.pop %v1178
    %v1180 = vsel %vm543, %v1177, 0.0
    %1181 = vadd.xlane.f32.xlu0 %v1180
    %v1182 = vpop.xlane.xlu0 %1181
    %v1183 = vsel %vm543, %v1179, 0.0
    %1184 = vadd.xlane.f32.xlu0 %v1183
    %v1185 = vpop.xlane.xlu0 %1184
    %v1186 = vpack.c.bf16 %v1179, %v1177
    %1188 = vrot.lane.b32.xlu0 %v494, 96
    %v1189 = vpop.permute.xlu0 %1188
    %v1192 = vsel %vm543, %v1186, 0
    %1194 = vmatprep.subr.bf16.mxu0 0
    %1195 = vmatpush1.bf16.msra.mxu0 0
    %1196 = vmatprep.subr.bf16.mxu0 0
    %1197 = vmatpush1.bf16.msra.mxu0 0
    %1198 = vmatprep.subr.bf16.mxu0 0
    %1199 = vmatpush1.bf16.msra.mxu0 0
    %1200 = vmatprep.subr.bf16.mxu0 0
    %1201 = vmatpush1.bf16.msra.mxu0 0
    %1202 = vmatprep.subr.bf16.mxu0 0
    %1203 = vmatpush1.bf16.msra.mxu0 0
    %1204 = vmatprep.subr.bf16.mxu0 0
    %1205 = vmatpush1.bf16.msra.mxu0 0
    %1206 = vmatprep.subr.bf16.mxu0 0
    %1207 = vmatpush1.bf16.msra.mxu0 0
    %1208 = vmatprep.subr.bf16.mxu0 0
    %1209 = vmatpush1.bf16.msra.mxu0 %v1189
    %1210 = vmatprep.subr.bf16.mxu0 0
    %1211 = vmatpush2.bf16.msra.mxu0 0
    %1212 = vmatprep.subr.bf16.mxu0 0
    %1213 = vmatpush2.bf16.msra.mxu0 0
    %1214 = vmatprep.subr.bf16.mxu0 0
    %1215 = vmatpush2.bf16.msra.mxu0 0
    %1216 = vmatprep.subr.bf16.mxu0 0
    %1217 = vmatpush2.bf16.msra.mxu0 0
    %1218 = vmatprep.subr.bf16.mxu0 0
    %1219 = vmatpush2.bf16.msra.mxu0 0
    %1220 = vmatprep.subr.bf16.mxu0 0
    %1221 = vmatpush2.bf16.msra.mxu0 0
    %1222 = vmatprep.subr.bf16.mxu0 0
    %1223 = vmatpush2.bf16.msra.mxu0 0
    %1224 = vmatprep.subr.bf16.mxu0 0
    %1225 = vmatpush2.bf16.msra.mxu0 0
    %1226 = vmatprep.mubr.bf16.mxu0 0
    %1227 = vmatmul.mubr.bf16.gmra.mxu0 %v1192
    %v1228 = vpop.f32.mrf.mxu0
    %v1229 = vadd.f32 0.0, %v1228
    %v1230 = vpop.f32.mrf.mxu0
    %v1231 = vpop.f32.mrf.mxu0
    %v1232 = vadd.f32 0.0, %v1231
    %v1233 = vpop.f32.mrf.mxu0
    %1234 = vdwg.mxu0
    %v1235 = vrcp.pop %v1182
    %v1236 = vrcp.pop %v1185
    %v1237 = vmul.f32 %v1229, %v1235
    %v1238 = vmul.f32 %v1232, %v1236
    %v1239 = vpack.c.bf16 %v1238, %v1237
    %1240 = vrot.lane.b32.xlu0 %v492, 64
    %v1241 = vpop.permute.xlu0 %1240
    %1242 = vrot.lane.b32.xlu0 %v493, 64
    %v1243 = vpop.permute.xlu0 %1242
    %v1245 = vsel %vm495, %v1241, 0
    %v1248 = vsel %vm495, %v1243, 0
    %1250 = vmatprep.subr.bf16.mxu0 0
    %1251 = vmatpush1.bf16.xpose.msra.mxu0 0
    %1252 = vmatprep.subr.bf16.mxu0 0
    %1253 = vmatpush1.bf16.xpose.msra.mxu0 0
    %1254 = vmatprep.subr.bf16.mxu0 0
    %1255 = vmatpush1.bf16.xpose.msra.mxu0 0
    %1256 = vmatprep.subr.bf16.mxu0 0
    %1257 = vmatpush1.bf16.xpose.msra.mxu0 0
    %1258 = vmatprep.subr.bf16.mxu0 0
    %1259 = vmatpush1.bf16.xpose.msra.mxu0 0
    %1260 = vmatprep.subr.bf16.mxu0 0
    %1261 = vmatpush1.bf16.xpose.msra.mxu0 0
    %1262 = vmatprep.subr.bf16.mxu0 0
    %1263 = vmatpush1.bf16.xpose.msra.mxu0 0
    %1264 = vmatprep.subr.bf16.mxu0 0
    %1265 = vmatpush1.bf16.xpose.msra.mxu0 %v1248
    %1266 = vmatprep.subr.bf16.mxu0 0
    %1267 = vmatpush2.bf16.xpose.msra.mxu0 0
    %1268 = vmatprep.subr.bf16.mxu0 0
    %1269 = vmatpush2.bf16.xpose.msra.mxu0 0
    %1270 = vmatprep.subr.bf16.mxu0 0
    %1271 = vmatpush2.bf16.xpose.msra.mxu0 0
    %1272 = vmatprep.subr.bf16.mxu0 0
    %1273 = vmatpush2.bf16.xpose.msra.mxu0 0
    %1274 = vmatprep.subr.bf16.mxu0 0
    %1275 = vmatpush2.bf16.xpose.msra.mxu0 0
    %1276 = vmatprep.subr.bf16.mxu0 0
    %1277 = vmatpush2.bf16.xpose.msra.mxu0 0
    %1278 = vmatprep.subr.bf16.mxu0 0
    %1279 = vmatpush2.bf16.xpose.msra.mxu0 0
    %1280 = vmatprep.subr.bf16.mxu0 0
    %1281 = vmatpush2.bf16.xpose.msra.mxu0 0
    %1282 = vmatprep.mubr.bf16.mxu0 0
    %1283 = vmatmul.mubr.bf16.gmra.mxu0 %v1245
    %v1284 = vpop.f32.mrf.mxu0
    %v1285 = vadd.f32 0.0, %v1284
    %v1286 = vpop.f32.mrf.mxu0
    %v1287 = vpop.f32.mrf.mxu0
    %v1288 = vadd.f32 0.0, %v1287
    %v1289 = vpop.f32.mrf.mxu0
    %1290 = vdwg.mxu0
    %v1291 = vsel %vm543, %v1285, -inf
    %1292 = vmax.xlane.f32.xlu0 %v1291
    %v1293 = vpop.xlane.xlu0 %1292
    %v1294 = vsel %vm543, %v1288, -inf
    %1295 = vmax.xlane.f32.xlu0 %v1294
    %v1296 = vpop.xlane.xlu0 %1295
    %v1297 = vsub.f32 %v1285, %v1293
    %v1298 = vsub.f32 %v1288, %v1296
    %v1299 = vmul.f32 %v1297, 1.442695
    %v1300 = vpow.pop %v1299
    %v1301 = vmul.f32 %v1298, 1.442695
    %v1302 = vpow.pop %v1301
    %v1303 = vsel %vm543, %v1300, 0.0
    %1304 = vadd.xlane.f32.xlu0 %v1303
    %v1305 = vpop.xlane.xlu0 %1304
    %v1306 = vsel %vm543, %v1302, 0.0
    %1307 = vadd.xlane.f32.xlu0 %v1306
    %v1308 = vpop.xlane.xlu0 %1307
    %v1309 = vpack.c.bf16 %v1302, %v1300
    %1310 = vrot.lane.b32.xlu0 %v494, 64
    %v1311 = vpop.permute.xlu0 %1310
    %v1314 = vsel %vm543, %v1309, 0
    %1316 = vmatprep.subr.bf16.mxu0 0
    %1317 = vmatpush1.bf16.msra.mxu0 0
    %1318 = vmatprep.subr.bf16.mxu0 0
    %1319 = vmatpush1.bf16.msra.mxu0 0
    %1320 = vmatprep.subr.bf16.mxu0 0
    %1321 = vmatpush1.bf16.msra.mxu0 0
    %1322 = vmatprep.subr.bf16.mxu0 0
    %1323 = vmatpush1.bf16.msra.mxu0 0
    %1324 = vmatprep.subr.bf16.mxu0 0
    %1325 = vmatpush1.bf16.msra.mxu0 0
    %1326 = vmatprep.subr.bf16.mxu0 0
    %1327 = vmatpush1.bf16.msra.mxu0 0
    %1328 = vmatprep.subr.bf16.mxu0 0
    %1329 = vmatpush1.bf16.msra.mxu0 0
    %1330 = vmatprep.subr.bf16.mxu0 0
    %1331 = vmatpush1.bf16.msra.mxu0 %v1311
    %1332 = vmatprep.subr.bf16.mxu0 0
    %1333 = vmatpush2.bf16.msra.mxu0 0
    %1334 = vmatprep.subr.bf16.mxu0 0
    %1335 = vmatpush2.bf16.msra.mxu0 0
    %1336 = vmatprep.subr.bf16.mxu0 0
    %1337 = vmatpush2.bf16.msra.mxu0 0
    %1338 = vmatprep.subr.bf16.mxu0 0
    %1339 = vmatpush2.bf16.msra.mxu0 0
    %1340 = vmatprep.subr.bf16.mxu0 0
    %1341 = vmatpush2.bf16.msra.mxu0 0
    %1342 = vmatprep.subr.bf16.mxu0 0
    %1343 = vmatpush2.bf16.msra.mxu0 0
    %1344 = vmatprep.subr.bf16.mxu0 0
    %1345 = vmatpush2.bf16.msra.mxu0 0
    %1346 = vmatprep.subr.bf16.mxu0 0
    %1347 = vmatpush2.bf16.msra.mxu0 0
    %1348 = vmatprep.mubr.bf16.mxu0 0
    %1349 = vmatmul.mubr.bf16.gmra.mxu0 %v1314
    %v1350 = vpop.f32.mrf.mxu0
    %v1351 = vadd.f32 0.0, %v1350
    %v1352 = vpop.f32.mrf.mxu0
    %v1353 = vpop.f32.mrf.mxu0
    %v1354 = vadd.f32 0.0, %v1353
    %v1355 = vpop.f32.mrf.mxu0
    %1356 = vdwg.mxu0
    %v1357 = vrcp.pop %v1305
    %v1358 = vrcp.pop %v1308
    %v1359 = vmul.f32 %v1351, %v1357
    %v1360 = vmul.f32 %v1354, %v1358
    %v1361 = vpack.c.bf16 %v1360, %v1359
    %1362 = vrot.lane.b32.xlu0 %v492, 32
    %v1363 = vpop.permute.xlu0 %1362
    %1364 = vrot.lane.b32.xlu0 %v493, 32
    %v1365 = vpop.permute.xlu0 %1364
    %v1367 = vsel %vm495, %v1363, 0
    %v1370 = vsel %vm495, %v1365, 0
    %1372 = vmatprep.subr.bf16.mxu0 0
    %1373 = vmatpush1.bf16.xpose.msra.mxu0 0
    %1374 = vmatprep.subr.bf16.mxu0 0
    %1375 = vmatpush1.bf16.xpose.msra.mxu0 0
    %1376 = vmatprep.subr.bf16.mxu0 0
    %1377 = vmatpush1.bf16.xpose.msra.mxu0 0
    %1378 = vmatprep.subr.bf16.mxu0 0
    %1379 = vmatpush1.bf16.xpose.msra.mxu0 0
    %1380 = vmatprep.subr.bf16.mxu0 0
    %1381 = vmatpush1.bf16.xpose.msra.mxu0 0
    %1382 = vmatprep.subr.bf16.mxu0 0
    %1383 = vmatpush1.bf16.xpose.msra.mxu0 0
    %1384 = vmatprep.subr.bf16.mxu0 0
    %1385 = vmatpush1.bf16.xpose.msra.mxu0 0
    %1386 = vmatprep.subr.bf16.mxu0 0
    %1387 = vmatpush1.bf16.xpose.msra.mxu0 %v1370
    %1388 = vmatprep.subr.bf16.mxu0 0
    %1389 = vmatpush2.bf16.xpose.msra.mxu0 0
    %1390 = vmatprep.subr.bf16.mxu0 0
    %1391 = vmatpush2.bf16.xpose.msra.mxu0 0
    %1392 = vmatprep.subr.bf16.mxu0 0
    %1393 = vmatpush2.bf16.xpose.msra.mxu0 0
    %1394 = vmatprep.subr.bf16.mxu0 0
    %1395 = vmatpush2.bf16.xpose.msra.mxu0 0
    %1396 = vmatprep.subr.bf16.mxu0 0
    %1397 = vmatpush2.bf16.xpose.msra.mxu0 0
    %1398 = vmatprep.subr.bf16.mxu0 0
    %1399 = vmatpush2.bf16.xpose.msra.mxu0 0
    %1400 = vmatprep.subr.bf16.mxu0 0
    %1401 = vmatpush2.bf16.xpose.msra.mxu0 0
    %1402 = vmatprep.subr.bf16.mxu0 0
    %1403 = vmatpush2.bf16.xpose.msra.mxu0 0
    %1404 = vmatprep.mubr.bf16.mxu0 0
    %1405 = vmatmul.mubr.bf16.gmra.mxu0 %v1367
    %v1406 = vpop.f32.mrf.mxu0
    %v1407 = vadd.f32 0.0, %v1406
    %v1408 = vpop.f32.mrf.mxu0
    %v1409 = vpop.f32.mrf.mxu0
    %v1410 = vadd.f32 0.0, %v1409
    %v1411 = vpop.f32.mrf.mxu0
    %1412 = vdwg.mxu0
    %v1413 = vsel %vm543, %v1407, -inf
    %1414 = vmax.xlane.f32.xlu0 %v1413
    %v1415 = vpop.xlane.xlu0 %1414
    %v1416 = vsel %vm543, %v1410, -inf
    %1417 = vmax.xlane.f32.xlu0 %v1416
    %v1418 = vpop.xlane.xlu0 %1417
    %v1419 = vsub.f32 %v1407, %v1415
    %v1420 = vsub.f32 %v1410, %v1418
    %v1421 = vmul.f32 %v1419, 1.442695
    %v1422 = vpow.pop %v1421
    %v1423 = vmul.f32 %v1420, 1.442695
    %v1424 = vpow.pop %v1423
    %v1425 = vsel %vm543, %v1422, 0.0
    %1426 = vadd.xlane.f32.xlu0 %v1425
    %v1427 = vpop.xlane.xlu0 %1426
    %v1428 = vsel %vm543, %v1424, 0.0
    %1429 = vadd.xlane.f32.xlu0 %v1428
    %v1430 = vpop.xlane.xlu0 %1429
    %v1431 = vpack.c.bf16 %v1424, %v1422
    %1432 = vrot.lane.b32.xlu0 %v494, 32
    %v1433 = vpop.permute.xlu0 %1432
    %v1436 = vsel %vm543, %v1431, 0
    %1438 = vmatprep.subr.bf16.mxu0 0
    %1439 = vmatpush1.bf16.msra.mxu0 0
    %1440 = vmatprep.subr.bf16.mxu0 0
    %1441 = vmatpush1.bf16.msra.mxu0 0
    %1442 = vmatprep.subr.bf16.mxu0 0
    %1443 = vmatpush1.bf16.msra.mxu0 0
    %1444 = vmatprep.subr.bf16.mxu0 0
    %1445 = vmatpush1.bf16.msra.mxu0 0
    %1446 = vmatprep.subr.bf16.mxu0 0
    %1447 = vmatpush1.bf16.msra.mxu0 0
    %1448 = vmatprep.subr.bf16.mxu0 0
    %1449 = vmatpush1.bf16.msra.mxu0 0
    %1450 = vmatprep.subr.bf16.mxu0 0
    %1451 = vmatpush1.bf16.msra.mxu0 0
    %1452 = vmatprep.subr.bf16.mxu0 0
    %1453 = vmatpush1.bf16.msra.mxu0 %v1433
    %1454 = vmatprep.subr.bf16.mxu0 0
    %1455 = vmatpush2.bf16.msra.mxu0 0
    %1456 = vmatprep.subr.bf16.mxu0 0
    %1457 = vmatpush2.bf16.msra.mxu0 0
    %1458 = vmatprep.subr.bf16.mxu0 0
    %1459 = vmatpush2.bf16.msra.mxu0 0
    %1460 = vmatprep.subr.bf16.mxu0 0
    %1461 = vmatpush2.bf16.msra.mxu0 0
    %1462 = vmatprep.subr.bf16.mxu0 0
    %1463 = vmatpush2.bf16.msra.mxu0 0
    %1464 = vmatprep.subr.bf16.mxu0 0
    %1465 = vmatpush2.bf16.msra.mxu0 0
    %1466 = vmatprep.subr.bf16.mxu0 0
    %1467 = vmatpush2.bf16.msra.mxu0 0
    %1468 = vmatprep.subr.bf16.mxu0 0
    %1469 = vmatpush2.bf16.msra.mxu0 0
    %1470 = vmatprep.mubr.bf16.mxu0 0
    %1471 = vmatmul.mubr.bf16.gmra.mxu0 %v1436
    %v1472 = vpop.f32.mrf.mxu0
    %v1473 = vadd.f32 0.0, %v1472
    %v1474 = vpop.f32.mrf.mxu0
    %v1475 = vpop.f32.mrf.mxu0
    %v1476 = vadd.f32 0.0, %v1475
    %v1477 = vpop.f32.mrf.mxu0
    %1478 = vdwg.mxu0
    %v1479 = vrcp.pop %v1427
    %v1480 = vrcp.pop %v1430
    %v1481 = vmul.f32 %v1473, %v1479
    %v1482 = vmul.f32 %v1476, %v1480
    %v1483 = vpack.c.bf16 %v1482, %v1481
    %1485 = vrot.lane.b32.xlu0 %v1239, 32
    %v1486 = vpop.permute.xlu0 %1485
    %1488 = vrot.lane.b32.xlu0 %v1361, 64
    %v1489 = vpop.permute.xlu0 %1488
    %1491 = vrot.lane.b32.xlu0 %v1483, 96
    %v1492 = vpop.permute.xlu0 %1491
    %v1495 = vsel %vm495, %v1114, %v1486
    %v1497 = vsel %vm993, %v1495, %v1489
    %v1499 = vsel %vm996, %v1497, %v1492
    %v1501 = vld [vmem:[#allocation10] sm:$0xf]
    %v1502 = vld [vmem:[#allocation10 + $0x4] sm:$0xf]
    %v1503 = vld [vmem:[#allocation10 + $0x8] sm:$0xf]
    %v1504 = vld [vmem:[#allocation10 + $0xc] sm:$0xf]
    %v1505 = vld [vmem:[#allocation10 + $0x10] sm:$0xf]
    %v1506 = vld [vmem:[#allocation10 + $0x14] sm:$0xf]
    %v1507 = vld [vmem:[#allocation10 + $0x18] sm:$0xf]
    %v1508 = vld [vmem:[#allocation10 + $0x1c] sm:$0xf]
    %v1509 = vld [vmem:[#allocation10 + $0x20] sm:$0xf]
    %v1510 = vld [vmem:[#allocation10 + $0x24] sm:$0xf]
    %v1511 = vld [vmem:[#allocation10 + $0x28] sm:$0xf]
    %v1512 = vld [vmem:[#allocation10 + $0x2c] sm:$0xf]
    %v1513 = vld [vmem:[#allocation10 + $0x30] sm:$0xf]
    %v1514 = vld [vmem:[#allocation10 + $0x34] sm:$0xf]
    %v1515 = vld [vmem:[#allocation10 + $0x38] sm:$0xf]
    %v1516 = vld [vmem:[#allocation10 + $0x3c] sm:$0xf]
    %v1517 = vld [vmem:[%s6] sm:$0x1]
    %v1519 = vlaneseq
    %v1520 = vshrl.u32 %v1519, 7
    %v1521 = vsub.s32 0, %v1520
    %v1522 = vrot.slane %v1517, %v1521
    %v1540 = vunpack.c.l.b16 %v1501
    %v1541 = vunpack.c.l.b16 %v1502
    %v1542 = vunpack.c.l.b16 %v1503
    %v1543 = vunpack.c.l.b16 %v1504
    %v1544 = vunpack.c.l.b16 %v1505
    %v1545 = vunpack.c.l.b16 %v1506
    %v1546 = vunpack.c.l.b16 %v1507
    %v1547 = vunpack.c.l.b16 %v1508
    %v1548 = vunpack.c.l.b16 %v1509
    %v1549 = vunpack.c.l.b16 %v1510
    %v1550 = vunpack.c.l.b16 %v1511
    %v1551 = vunpack.c.l.b16 %v1512
    %v1552 = vunpack.c.l.b16 %v1513
    %v1553 = vunpack.c.l.b16 %v1514
    %v1554 = vunpack.c.l.b16 %v1515
    %v1555 = vunpack.c.l.b16 %v1516
    %v1556 = vpack.c.b16 %v1541, %v1540
    %v1557 = vpack.c.b16 %v1543, %v1542
    %v1558 = vpack.c.b16 %v1545, %v1544
    %v1559 = vpack.c.b16 %v1547, %v1546
    %v1560 = vpack.c.b16 %v1549, %v1548
    %v1561 = vpack.c.b16 %v1551, %v1550
    %v1562 = vpack.c.b16 %v1553, %v1552
    %v1563 = vpack.c.b16 %v1555, %v1554
    %1572 = vmatprep.subr.bf16.mxu0 0
    %1573 = vmatpush1.bf16.msra.mxu0 %v1563
    %1574 = vmatprep.subr.bf16.mxu0 0
    %1575 = vmatpush1.bf16.msra.mxu0 %v1562
    %1576 = vmatprep.subr.bf16.mxu0 0
    %1577 = vmatpush1.bf16.msra.mxu0 %v1561
    %1578 = vmatprep.subr.bf16.mxu0 0
    %1579 = vmatpush1.bf16.msra.mxu0 %v1560
    %1580 = vmatprep.subr.bf16.mxu0 0
    %1581 = vmatpush1.bf16.msra.mxu0 %v1559
    %1582 = vmatprep.subr.bf16.mxu0 0
    %1583 = vmatpush1.bf16.msra.mxu0 %v1558
    %1584 = vmatprep.subr.bf16.mxu0 0
    %1585 = vmatpush1.bf16.msra.mxu0 %v1557
    %1586 = vmatprep.subr.bf16.mxu0 0
    %1587 = vmatpush1.bf16.msra.mxu0 %v1556
    %1588 = vmatprep.subr.bf16.mxu0 0
    %1589 = vmatpush2.bf16.msra.mxu0 0
    %1590 = vmatprep.subr.bf16.mxu0 0
    %1591 = vmatpush2.bf16.msra.mxu0 0
    %1592 = vmatprep.subr.bf16.mxu0 0
    %1593 = vmatpush2.bf16.msra.mxu0 0
    %1594 = vmatprep.subr.bf16.mxu0 0
    %1595 = vmatpush2.bf16.msra.mxu0 0
    %1596 = vmatprep.subr.bf16.mxu0 0
    %1597 = vmatpush2.bf16.msra.mxu0 0
    %1598 = vmatprep.subr.bf16.mxu0 0
    %1599 = vmatpush2.bf16.msra.mxu0 0
    %1600 = vmatprep.subr.bf16.mxu0 0
    %1601 = vmatpush2.bf16.msra.mxu0 0
    %1602 = vmatprep.subr.bf16.mxu0 0
    %1603 = vmatpush2.bf16.msra.mxu0 0
    %1604 = vmatprep.mubr.bf16.mxu0 0
    %1605 = vmatmul.mubr.bf16.gmra.mxu0 %v998
    %v1606 = vpop.f32.mrf.mxu0
    %v1607 = vadd.f32 %v1522, %v1606
    %v1608 = vpop.f32.mrf.mxu0
    %v1609 = vpop.f32.mrf.mxu0
    %v1610 = vadd.f32 %v1522, %v1609
    %v1611 = vpop.f32.mrf.mxu0
    %1612 = vmatprep.mubr.bf16.mxu0 0
    %1613 = vmatmul.mubr.bf16.gmra.mxu0 %v1499
    %v1614 = vpop.f32.mrf.mxu0
    %v1615 = vadd.f32 %v1522, %v1614
    %v1616 = vpop.f32.mrf.mxu0
    %v1617 = vpop.f32.mrf.mxu0
    %v1618 = vadd.f32 %v1522, %v1617
    %v1619 = vpop.f32.mrf.mxu0
    %1620 = vdwg.mxu0
    %v1621 = vadd.f32 %v137, %v1607
    %v1622 = vadd.f32 %v138, %v1610
    %v1623 = vadd.f32 %v139, %v1615
    %v1624 = vadd.f32 %v140, %v1618
    %v1625 = vld [vmem:[%s7] sm:$0x1]
    %v1626 = vld [vmem:[%s8] sm:$0x1]
    %1627 = vadd.xlane.f32.xlu0 %v1621
    %v1628 = vpop.xlane.xlu0 %1627
    %1629 = vadd.xlane.f32.xlu0 %v1622
    %v1630 = vpop.xlane.xlu0 %1629
    %1631 = vadd.xlane.f32.xlu0 %v1623
    %v1632 = vpop.xlane.xlu0 %1631
    %1633 = vadd.xlane.f32.xlu0 %v1624
    %v1634 = vpop.xlane.xlu0 %1633
    %v1635 = vmul.f32 %v1628, %v151
    %v1636 = vmul.f32 %v1630, %v151
    %v1637 = vmul.f32 %v1632, %v151
    %v1638 = vmul.f32 %v1634, %v151
    %v1639 = vsub.f32 %v1621, %v1635
    %v1640 = vsub.f32 %v1622, %v1636
    %v1641 = vsub.f32 %v1623, %v1637
    %v1642 = vsub.f32 %v1624, %v1638
    %v1643 = vmul.f32 %v1639, %v1639
    %v1644 = vmul.f32 %v1640, %v1640
    %v1645 = vmul.f32 %v1641, %v1641
    %v1646 = vmul.f32 %v1642, %v1642
    %1647 = vadd.xlane.f32.xlu0 %v1643
    %v1648 = vpop.xlane.xlu0 %1647
    %1649 = vadd.xlane.f32.xlu0 %v1644
    %v1650 = vpop.xlane.xlu0 %1649
    %1651 = vadd.xlane.f32.xlu0 %v1645
    %v1652 = vpop.xlane.xlu0 %1651
    %1653 = vadd.xlane.f32.xlu0 %v1646
    %v1654 = vpop.xlane.xlu0 %1653
    %v1655 = vmul.f32 %v1648, %v151
    %v1656 = vmul.f32 %v1650, %v151
    %v1657 = vmul.f32 %v1652, %v151
    %v1658 = vmul.f32 %v1654, %v151
    %v1659 = vadd.f32 %v1655, 1e-05
    %v1660 = vadd.f32 %v1656, 1e-05
    %v1661 = vadd.f32 %v1657, 1e-05
    %v1662 = vadd.f32 %v1658, 1e-05
    %v1663 = vrsqrt.pop %v1659
    %v1664 = vrsqrt.pop %v1660
    %v1665 = vrsqrt.pop %v1661
    %v1666 = vrsqrt.pop %v1662
    %v1667 = vmul.f32 %v1639, %v1663
    %v1668 = vmul.f32 %v1640, %v1664
    %v1669 = vmul.f32 %v1641, %v1665
    %v1670 = vmul.f32 %v1642, %v1666
    %v1672 = vlaneseq
    %v1673 = vshrl.u32 %v1672, 7
    %v1674 = vsub.s32 0, %v1673
    %v1675 = vrot.slane %v1625, %v1674
    %v1677 = vmul.f32 %v1667, %v1675
    %v1678 = vmul.f32 %v1668, %v1675
    %v1679 = vmul.f32 %v1669, %v1675
    %v1680 = vmul.f32 %v1670, %v1675
    %v1682 = vlaneseq
    %v1683 = vshrl.u32 %v1682, 7
    %v1684 = vsub.s32 0, %v1683
    %v1685 = vrot.slane %v1626, %v1684
    %v1687 = vadd.f32 %v1677, %v1685
    %v1688 = vadd.f32 %v1678, %v1685
    %v1689 = vadd.f32 %v1679, %v1685
    %v1690 = vadd.f32 %v1680, %v1685
    %v1691 = vpack.c.bf16 %v1688, %v1687
    %v1692 = vpack.c.bf16 %v1690, %v1689
    %v1693 = vld [vmem:[#allocation11] sm:$0xff]
    %v1694 = vld [vmem:[#allocation11 + $0x8] sm:$0xff]
    %v1695 = vld [vmem:[#allocation11 + $0x10] sm:$0xff]
    %v1696 = vld [vmem:[#allocation11 + $0x18] sm:$0xff]
    %v1697 = vld [vmem:[#allocation11 + $0x20] sm:$0xff]
    %v1698 = vld [vmem:[#allocation11 + $0x28] sm:$0xff]
    %v1699 = vld [vmem:[#allocation11 + $0x30] sm:$0xff]
    %v1700 = vld [vmem:[#allocation11 + $0x38] sm:$0xff]
    %v1701 = vld [vmem:[#allocation11 + $0x40] sm:$0xff]
    %v1702 = vld [vmem:[#allocation11 + $0x48] sm:$0xff]
    %v1703 = vld [vmem:[#allocation11 + $0x50] sm:$0xff]
    %v1704 = vld [vmem:[#allocation11 + $0x58] sm:$0xff]
    %v1705 = vld [vmem:[#allocation11 + $0x60] sm:$0xff]
    %v1706 = vld [vmem:[#allocation11 + $0x68] sm:$0xff]
    %v1707 = vld [vmem:[#allocation11 + $0x70] sm:$0xff]
    %v1708 = vld [vmem:[#allocation11 + $0x78] sm:$0xff]
    %v1709 = vld [vmem:[%s10] sm:$0x3]
    %v1711 = vlaneseq
    %v1712 = vshrl.u32 %v1711, 7
    %v1713 = vsub.s32 0, %v1712
    %v1714 = vrot.slane %v1709, %v1713
    %v1715 = vlaneseq
    %v1716 = vshrl.u32 %v1715, 7
    %v1717 = vsub.s32 1, %v1716
    %v1718 = vrot.slane %v1709, %v1717
    %v1737 = vunpack.c.l.b16 %v1693
    %v1738 = vunpack.c.h.b16 %v1693
    %v1739 = vunpack.c.l.b16 %v1694
    %v1740 = vunpack.c.h.b16 %v1694
    %v1741 = vunpack.c.l.b16 %v1695
    %v1742 = vunpack.c.h.b16 %v1695
    %v1743 = vunpack.c.l.b16 %v1696
    %v1744 = vunpack.c.h.b16 %v1696
    %v1745 = vunpack.c.l.b16 %v1697
    %v1746 = vunpack.c.h.b16 %v1697
    %v1747 = vunpack.c.l.b16 %v1698
    %v1748 = vunpack.c.h.b16 %v1698
    %v1749 = vunpack.c.l.b16 %v1699
    %v1750 = vunpack.c.h.b16 %v1699
    %v1751 = vunpack.c.l.b16 %v1700
    %v1752 = vunpack.c.h.b16 %v1700
    %v1753 = vunpack.c.l.b16 %v1701
    %v1754 = vunpack.c.h.b16 %v1701
    %v1755 = vunpack.c.l.b16 %v1702
    %v1756 = vunpack.c.h.b16 %v1702
    %v1757 = vunpack.c.l.b16 %v1703
    %v1758 = vunpack.c.h.b16 %v1703
    %v1759 = vunpack.c.l.b16 %v1704
    %v1760 = vunpack.c.h.b16 %v1704
    %v1761 = vunpack.c.l.b16 %v1705
    %v1762 = vunpack.c.h.b16 %v1705
    %v1763 = vunpack.c.l.b16 %v1706
    %v1764 = vunpack.c.h.b16 %v1706
    %v1765 = vunpack.c.l.b16 %v1707
    %v1766 = vunpack.c.h.b16 %v1707
    %v1767 = vunpack.c.l.b16 %v1708
    %v1768 = vunpack.c.h.b16 %v1708
    %v1769 = vpack.c.b16 %v1739, %v1737
    %v1770 = vpack.c.b16 %v1740, %v1738
    %v1771 = vpack.c.b16 %v1743, %v1741
    %v1772 = vpack.c.b16 %v1744, %v1742
    %v1773 = vpack.c.b16 %v1747, %v1745
    %v1774 = vpack.c.b16 %v1748, %v1746
    %v1775 = vpack.c.b16 %v1751, %v1749
    %v1776 = vpack.c.b16 %v1752, %v1750
    %v1777 = vpack.c.b16 %v1755, %v1753
    %v1778 = vpack.c.b16 %v1756, %v1754
    %v1779 = vpack.c.b16 %v1759, %v1757
    %v1780 = vpack.c.b16 %v1760, %v1758
    %v1781 = vpack.c.b16 %v1763, %v1761
    %v1782 = vpack.c.b16 %v1764, %v1762
    %v1783 = vpack.c.b16 %v1767, %v1765
    %v1784 = vpack.c.b16 %v1768, %v1766
    %1801 = vmatprep.subr.bf16.mxu0 %v1784
    %1802 = vmatpush1.bf16.msra.mxu0 %v1783
    %1803 = vmatprep.subr.bf16.mxu0 %v1782
    %1804 = vmatpush1.bf16.msra.mxu0 %v1781
    %1805 = vmatprep.subr.bf16.mxu0 %v1780
    %1806 = vmatpush1.bf16.msra.mxu0 %v1779
    %1807 = vmatprep.subr.bf16.mxu0 %v1778
    %1808 = vmatpush1.bf16.msra.mxu0 %v1777
    %1809 = vmatprep.subr.bf16.mxu0 %v1776
    %1810 = vmatpush1.bf16.msra.mxu0 %v1775
    %1811 = vmatprep.subr.bf16.mxu0 %v1774
    %1812 = vmatpush1.bf16.msra.mxu0 %v1773
    %1813 = vmatprep.subr.bf16.mxu0 %v1772
    %1814 = vmatpush1.bf16.msra.mxu0 %v1771
    %1815 = vmatprep.subr.bf16.mxu0 %v1770
    %1816 = vmatpush1.bf16.msra.mxu0 %v1769
    %1817 = vmatprep.subr.bf16.mxu0 0
    %1818 = vmatpush2.bf16.msra.mxu0 0
    %1819 = vmatprep.subr.bf16.mxu0 0
    %1820 = vmatpush2.bf16.msra.mxu0 0
    %1821 = vmatprep.subr.bf16.mxu0 0
    %1822 = vmatpush2.bf16.msra.mxu0 0
    %1823 = vmatprep.subr.bf16.mxu0 0
    %1824 = vmatpush2.bf16.msra.mxu0 0
    %1825 = vmatprep.subr.bf16.mxu0 0
    %1826 = vmatpush2.bf16.msra.mxu0 0
    %1827 = vmatprep.subr.bf16.mxu0 0
    %1828 = vmatpush2.bf16.msra.mxu0 0
    %1829 = vmatprep.subr.bf16.mxu0 0
    %1830 = vmatpush2.bf16.msra.mxu0 0
    %1831 = vmatprep.subr.bf16.mxu0 0
    %1832 = vmatpush2.bf16.msra.mxu0 0
    %1833 = vmatprep.mubr.bf16.mxu0 0
    %1834 = vmatmul.mubr.bf16.gmra.mxu0 %v1691
    %v1835 = vpop.f32.mrf.mxu0
    %v1836 = vadd.f32 %v1714, %v1835
    %v1837 = vpop.f32.mrf.mxu0
    %v1838 = vadd.f32 %v1718, %v1837
    %v1839 = vpop.f32.mrf.mxu0
    %v1840 = vadd.f32 %v1714, %v1839
    %v1841 = vpop.f32.mrf.mxu0
    %v1842 = vadd.f32 %v1718, %v1841
    %1843 = vmatprep.mubr.bf16.mxu0 0
    %1844 = vmatmul.mubr.bf16.gmra.mxu0 %v1692
    %v1845 = vpop.f32.mrf.mxu0
    %v1846 = vadd.f32 %v1714, %v1845
    %v1847 = vpop.f32.mrf.mxu0
    %v1848 = vadd.f32 %v1718, %v1847
    %v1849 = vpop.f32.mrf.mxu0
    %v1850 = vadd.f32 %v1714, %v1849
    %v1851 = vpop.f32.mrf.mxu0
    %v1852 = vadd.f32 %v1718, %v1851
    %1853 = vdwg.mxu0
    %v1854 = vmul.f32 %v1836, 0.5
    %v1855 = vmul.f32 %v1838, 0.5
    %v1856 = vmul.f32 %v1840, 0.5
    %v1857 = vmul.f32 %v1842, 0.5
    %v1858 = vmul.f32 %v1846, 0.5
    %v1859 = vmul.f32 %v1848, 0.5
    %v1860 = vmul.f32 %v1850, 0.5
    %v1861 = vmul.f32 %v1852, 0.5
    %v1862 = vmul.f32 %v1836, 0.70710677
    %v1863 = vmul.f32 %v1838, 0.70710677
    %v1864 = vmul.f32 %v1840, 0.70710677
    %v1865 = vmul.f32 %v1842, 0.70710677
    %v1866 = vmul.f32 %v1846, 0.70710677
    %v1867 = vmul.f32 %v1848, 0.70710677
    %v1868 = vmul.f32 %v1850, 0.70710677
    %v1869 = vmul.f32 %v1852, 0.70710677
    %v1870 = verf.f32.pop %v1862
    %v1871 = verf.f32.pop %v1863
    %v1872 = verf.f32.pop %v1864
    %v1873 = verf.f32.pop %v1865
    %v1874 = verf.f32.pop %v1866
    %v1875 = verf.f32.pop %v1867
    %v1876 = verf.f32.pop %v1868
    %v1877 = verf.f32.pop %v1869
    %v1878 = vadd.f32 %v1870, 1.0
    %v1879 = vadd.f32 %v1871, 1.0
    %v1880 = vadd.f32 %v1872, 1.0
    %v1881 = vadd.f32 %v1873, 1.0
    %v1882 = vadd.f32 %v1874, 1.0
    %v1883 = vadd.f32 %v1875, 1.0
    %v1884 = vadd.f32 %v1876, 1.0
    %v1885 = vadd.f32 %v1877, 1.0
    %v1886 = vmul.f32 %v1854, %v1878
    %v1887 = vmul.f32 %v1855, %v1879
    %v1888 = vmul.f32 %v1856, %v1880
    %v1889 = vmul.f32 %v1857, %v1881
    %v1890 = vmul.f32 %v1858, %v1882
    %v1891 = vmul.f32 %v1859, %v1883
    %v1892 = vmul.f32 %v1860, %v1884
    %v1893 = vmul.f32 %v1861, %v1885
    %v1894 = vpack.c.bf16 %v1888, %v1886
    %v1895 = vpack.c.bf16 %v1889, %v1887
    %v1896 = vpack.c.bf16 %v1892, %v1890
    %v1897 = vpack.c.bf16 %v1893, %v1891
    %v1898 = vld [vmem:[#allocation13] sm:$0xf]
    %v1899 = vld [vmem:[#allocation13 + $0x4] sm:$0xf]
    %v1900 = vld [vmem:[#allocation13 + $0x8] sm:$0xf]
    %v1901 = vld [vmem:[#allocation13 + $0xc] sm:$0xf]
    %v1902 = vld [vmem:[#allocation13 + $0x10] sm:$0xf]
    %v1903 = vld [vmem:[#allocation13 + $0x14] sm:$0xf]
    %v1904 = vld [vmem:[#allocation13 + $0x18] sm:$0xf]
    %v1905 = vld [vmem:[#allocation13 + $0x1c] sm:$0xf]
    %v1906 = vld [vmem:[#allocation13 + $0x20] sm:$0xf]
    %v1907 = vld [vmem:[#allocation13 + $0x24] sm:$0xf]
    %v1908 = vld [vmem:[#allocation13 + $0x28] sm:$0xf]
    %v1909 = vld [vmem:[#allocation13 + $0x2c] sm:$0xf]
    %v1910 = vld [vmem:[#allocation13 + $0x30] sm:$0xf]
    %v1911 = vld [vmem:[#allocation13 + $0x34] sm:$0xf]
    %v1912 = vld [vmem:[#allocation13 + $0x38] sm:$0xf]
    %v1913 = vld [vmem:[#allocation13 + $0x3c] sm:$0xf]
    %v1914 = vld [vmem:[#allocation13 + $0x40] sm:$0xf]
    %v1915 = vld [vmem:[#allocation13 + $0x44] sm:$0xf]
    %v1916 = vld [vmem:[#allocation13 + $0x48] sm:$0xf]
    %v1917 = vld [vmem:[#allocation13 + $0x4c] sm:$0xf]
    %v1918 = vld [vmem:[#allocation13 + $0x50] sm:$0xf]
    %v1919 = vld [vmem:[#allocation13 + $0x54] sm:$0xf]
    %v1920 = vld [vmem:[#allocation13 + $0x58] sm:$0xf]
    %v1921 = vld [vmem:[#allocation13 + $0x5c] sm:$0xf]
    %v1922 = vld [vmem:[#allocation13 + $0x60] sm:$0xf]
    %v1923 = vld [vmem:[#allocation13 + $0x64] sm:$0xf]
    %v1924 = vld [vmem:[#allocation13 + $0x68] sm:$0xf]
    %v1925 = vld [vmem:[#allocation13 + $0x6c] sm:$0xf]
    %v1926 = vld [vmem:[#allocation13 + $0x70] sm:$0xf]
    %v1927 = vld [vmem:[#allocation13 + $0x74] sm:$0xf]
    %v1928 = vld [vmem:[#allocation13 + $0x78] sm:$0xf]
    %v1929 = vld [vmem:[#allocation13 + $0x7c] sm:$0xf]
    %v1930 = vld [vmem:[%s12] sm:$0x1]
    %v1932 = vlaneseq
    %v1933 = vshrl.u32 %v1932, 7
    %v1934 = vsub.s32 0, %v1933
    %v1935 = vrot.slane %v1930, %v1934
    %v1969 = vunpack.c.l.b16 %v1898
    %v1970 = vunpack.c.l.b16 %v1899
    %v1971 = vunpack.c.l.b16 %v1900
    %v1972 = vunpack.c.l.b16 %v1901
    %v1973 = vunpack.c.l.b16 %v1902
    %v1974 = vunpack.c.l.b16 %v1903
    %v1975 = vunpack.c.l.b16 %v1904
    %v1976 = vunpack.c.l.b16 %v1905
    %v1977 = vunpack.c.l.b16 %v1906
    %v1978 = vunpack.c.l.b16 %v1907
    %v1979 = vunpack.c.l.b16 %v1908
    %v1980 = vunpack.c.l.b16 %v1909
    %v1981 = vunpack.c.l.b16 %v1910
    %v1982 = vunpack.c.l.b16 %v1911
    %v1983 = vunpack.c.l.b16 %v1912
    %v1984 = vunpack.c.l.b16 %v1913
    %v1985 = vunpack.c.l.b16 %v1914
    %v1986 = vunpack.c.l.b16 %v1915
    %v1987 = vunpack.c.l.b16 %v1916
    %v1988 = vunpack.c.l.b16 %v1917
    %v1989 = vunpack.c.l.b16 %v1918
    %v1990 = vunpack.c.l.b16 %v1919
    %v1991 = vunpack.c.l.b16 %v1920
    %v1992 = vunpack.c.l.b16 %v1921
    %v1993 = vunpack.c.l.b16 %v1922
    %v1994 = vunpack.c.l.b16 %v1923
    %v1995 = vunpack.c.l.b16 %v1924
    %v1996 = vunpack.c.l.b16 %v1925
    %v1997 = vunpack.c.l.b16 %v1926
    %v1998 = vunpack.c.l.b16 %v1927
    %v1999 = vunpack.c.l.b16 %v1928
    %v2000 = vunpack.c.l.b16 %v1929
    %v2001 = vpack.c.b16 %v1970, %v1969
    %v2002 = vpack.c.b16 %v1972, %v1971
    %v2003 = vpack.c.b16 %v1974, %v1973
    %v2004 = vpack.c.b16 %v1976, %v1975
    %v2005 = vpack.c.b16 %v1978, %v1977
    %v2006 = vpack.c.b16 %v1980, %v1979
    %v2007 = vpack.c.b16 %v1982, %v1981
    %v2008 = vpack.c.b16 %v1984, %v1983
    %v2009 = vpack.c.b16 %v1986, %v1985
    %v2010 = vpack.c.b16 %v1988, %v1987
    %v2011 = vpack.c.b16 %v1990, %v1989
    %v2012 = vpack.c.b16 %v1992, %v1991
    %v2013 = vpack.c.b16 %v1994, %v1993
    %v2014 = vpack.c.b16 %v1996, %v1995
    %v2015 = vpack.c.b16 %v1998, %v1997
    %v2016 = vpack.c.b16 %v2000, %v1999
    %2033 = vmatprep.subr.bf16.mxu0 0
    %2034 = vmatpush1.bf16.msra.mxu0 %v2008
    %2035 = vmatprep.subr.bf16.mxu0 0
    %2036 = vmatpush1.bf16.msra.mxu0 %v2007
    %2037 = vmatprep.subr.bf16.mxu0 0
    %2038 = vmatpush1.bf16.msra.mxu0 %v2006
    %2039 = vmatprep.subr.bf16.mxu0 0
    %2040 = vmatpush1.bf16.msra.mxu0 %v2005
    %2041 = vmatprep.subr.bf16.mxu0 0
    %2042 = vmatpush1.bf16.msra.mxu0 %v2004
    %2043 = vmatprep.subr.bf16.mxu0 0
    %2044 = vmatpush1.bf16.msra.mxu0 %v2003
    %2045 = vmatprep.subr.bf16.mxu0 0
    %2046 = vmatpush1.bf16.msra.mxu0 %v2002
    %2047 = vmatprep.subr.bf16.mxu0 0
    %2048 = vmatpush1.bf16.msra.mxu0 %v2001
    %2049 = vmatprep.subr.bf16.mxu0 0
    %2050 = vmatpush2.bf16.msra.mxu0 %v2016
    %2051 = vmatprep.subr.bf16.mxu0 0
    %2052 = vmatpush2.bf16.msra.mxu0 %v2015
    %2053 = vmatprep.subr.bf16.mxu0 0
    %2054 = vmatpush2.bf16.msra.mxu0 %v2014
    %2055 = vmatprep.subr.bf16.mxu0 0
    %2056 = vmatpush2.bf16.msra.mxu0 %v2013
    %2057 = vmatprep.subr.bf16.mxu0 0
    %2058 = vmatpush2.bf16.msra.mxu0 %v2012
    %2059 = vmatprep.subr.bf16.mxu0 0
    %2060 = vmatpush2.bf16.msra.mxu0 %v2011
    %2061 = vmatprep.subr.bf16.mxu0 0
    %2062 = vmatpush2.bf16.msra.mxu0 %v2010
    %2063 = vmatprep.subr.bf16.mxu0 0
    %2064 = vmatpush2.bf16.msra.mxu0 %v2009
    %2065 = vmatprep.mubr.bf16.mxu0 %v1895
    %2066 = vmatmul.mubr.bf16.gmra.mxu0 %v1894
    %v2067 = vpop.f32.mrf.mxu0
    %v2068 = vadd.f32 %v1935, %v2067
    %v2069 = vpop.f32.mrf.mxu0
    %v2070 = vpop.f32.mrf.mxu0
    %v2071 = vadd.f32 %v1935, %v2070
    %v2072 = vpop.f32.mrf.mxu0
    %2073 = vmatprep.mubr.bf16.mxu0 %v1897
    %2074 = vmatmul.mubr.bf16.gmra.mxu0 %v1896
    %v2075 = vpop.f32.mrf.mxu0
    %v2076 = vadd.f32 %v1935, %v2075
    %v2077 = vpop.f32.mrf.mxu0
    %v2078 = vpop.f32.mrf.mxu0
    %v2079 = vadd.f32 %v1935, %v2078
    %v2080 = vpop.f32.mrf.mxu0
    %2081 = vdwg.mxu0
    %v2082 = vadd.f32 %v1621, %v2068
    %v2083 = vadd.f32 %v1622, %v2071
    %v2084 = vadd.f32 %v1623, %v2076
    %v2085 = vadd.f32 %v1624, %v2079
    %2086 = vst [vmem:[#allocation14] sm:$0xff] %v2082
    %2087 = vst [vmem:[#allocation14 + $0x8] sm:$0xff] %v2083
    %2088 = vst [vmem:[#allocation14 + $0x10] sm:$0xff] %v2084
    %2089 = vst [vmem:[#allocation14 + $0x18] sm:$0xff] %v2085
    // Predicated region
    $region82: #{tpu_custom_call.1} parent=1 // pred_check
      _
    $region83: #{tpu_custom_call.1} parent=1 // pred_check_branch
      %2091 = sbr.rel (0) target = $region85
    $region84: #{tpu_custom_call.1} parent=1 // pred_region
      %s2093 = ssub.s32 512, 512
      %2094 = vsyncadd [#allocation4], %s2093
      %s2095 = sshll.u32 [#allocation14], 4
      %s2096 = int_to_ptr.vmem [resolvable:$true] %s2095
      %2101 = dma.vmem_to_hbm [thread:$0]  %s2096, 512, %s13, [#allocation4], 128, 128, 8
    $region85: #{tpu_custom_call.1} parent=1 // pred_fallthru
      _
    // Predicated region
    $region86: #{tpu_custom_call.1} parent=1 // pred_check
      _
    $region87: #{tpu_custom_call.1} parent=1 // pred_check_branch
      %2103 = sbr.rel (0) target = $region89
    $region88: #{tpu_custom_call.1} parent=1 // pred_region
      %2104 = dma.done [#allocation4], 512
    $region89: #{tpu_custom_call.1} parent=1 // pred_fallthru
      _
    %2105 = vsyncpa [#allocation3], 1
    %2106 = vsyncpa [#allocation6], 1
    %2107 = vsyncpa [#allocation9], 1
    %2108 = vsyncpa [#allocation12], 1
    %2109 = vsyncpa [#allocation4], 1

// kernel: tpu_custom_call.1
$region0: #{tpu_custom_call.1}
  #allocation0 [shape = 'u32[]', space=smem, size = 0x4, offset = 0x4, fixed_abs, tag = 'smem constant byte address 0x4 - core index']
  #allocation1 [shape = 'u32[144,128]{1,0:T(1,128)}', space=vmem, size = 0x12000, scoped, tag = 'internal scratch']
  %s0 = inlined_call_operand.hbm [shape: f32[2,16,128], index: 0, kind: input, shape index: {}]
  %s1 = inlined_call_operand.hbm [shape: f32[1,128], index: 1, kind: input, shape index: {}]
  %s2 = inlined_call_operand.hbm [shape: f32[1,128], index: 2, kind: input, shape index: {}]
  %s3 = inlined_call_operand.hbm [shape: bf16[128,384], index: 3, kind: input, shape index: {}]
  %s4 = inlined_call_operand.vmem [shape: f32[1,384], index: 4, kind: input, shape index: {}]
  %s5 = inlined_call_operand.hbm [shape: bf16[128,128], index: 5, kind: input, shape index: {}]
  %s6 = inlined_call_operand.vmem [shape: f32[1,128], index: 6, kind: input, shape index: {}]
  %s7 = inlined_call_operand.vmem [shape: f32[1,128], index: 7, kind: input, shape index: {}]
  %s8 = inlined_call_operand.vmem [shape: f32[1,128], index: 8, kind: input, shape index: {}]
  %s9 = inlined_call_operand.hbm [shape: bf16[128,256], index: 9, kind: input, shape index: {}]
  %s10 = inlined_call_operand.vmem [shape: f32[1,256], index: 10, kind: input, shape index: {}]
  %s11 = inlined_call_operand.hbm [shape: bf16[256,128], index: 11, kind: input, shape index: {}]
  %s12 = inlined_call_operand.vmem [shape: f32[1,128], index: 12, kind: input, shape index: {}]
  %s13 = inlined_call_operand.hbm [shape: f32[2,16,128], index: 13, kind: output, shape index: {}]
  %s14 = sld [smem:[#allocation0]]
  $region90: #{tpu_custom_call.1} parent=0
    _
  %s16 = ssub.s32 1, %s14
  %s17 = scalar_select 0, %s16, %s14
  $region1: #{tpu_custom_call.1} parent=0
    #allocation2 [shape = 'u8[16384]{0}', space=vmem, size = 0x4000, scoped, tag = 'input window, operand 0, single buffered']
    #allocation3 [shape = 's32[1]{0}', space=sflag, size = 0x4, scoped, tag = 'scoped memory for tpu_custom_call.1']
    #allocation4 [shape = 's32[1]{0}', space=sflag, size = 0x4, scoped, tag = 'scoped memory for tpu_custom_call.1']
    #allocation5 [shape = 'u8[512]{0}', space=vmem, size = 0x400, scoped, tag = 'input window, operand 1, single buffered']
    #allocation6 [shape = 's32[1]{0}', space=sflag, size = 0x4, scoped, tag = 'scoped memory for tpu_custom_call.1']
    #allocation7 [shape = 'u8[512]{0}', space=vmem, size = 0x400, scoped, tag = 'input window, operand 2, single buffered']
    #allocation8 [shape = 'u8[98304]{0}', space=vmem, size = 0x18000, scoped, tag = 'input window, operand 3, single buffered']
    #allocation9 [shape = 's32[1]{0}', space=sflag, size = 0x4, scoped, tag = 'scoped memory for tpu_custom_call.1']
    #allocation10 [shape = 'u8[32768]{0}', space=vmem, size = 0x8000, scoped, tag = 'input window, operand 5, single buffered']
    #allocation11 [shape = 'u8[65536]{0}', space=vmem, size = 0x10000, scoped, tag = 'input window, operand 9, single buffered']
    #allocation12 [shape = 's32[1]{0}', space=sflag, size = 0x4, scoped, tag = 'scoped memory for tpu_custom_call.1']
    #allocation13 [shape = 'u8[65536]{0}', space=vmem, size = 0x10000, scoped, tag = 'input window, operand 11, single buffered']
    #allocation14 [shape = 'u8[16384]{0}', space=vmem, size = 0x4000, scoped, tag = 'output window, operand 0, single buffered']
    %18 = vsyncpa [#allocation3], 0
    %19 = vsyncpa [#allocation6], 0
    %20 = vsyncpa [#allocation9], 0
    %21 = vsyncpa [#allocation12], 0
    %22 = vsyncpa [#allocation4], 0
    // Predicated region
    $region2: #{tpu_custom_call.1} parent=1 // pred_check
      _
    $region3: #{tpu_custom_call.1} parent=1 // pred_check_branch
      %24 = sbr.rel (0) target = $region5
    $region4: #{tpu_custom_call.1} parent=1 // pred_region
      %s26 = ssub.s32 512, 512
      %27 = vsyncadd [#allocation3], %s26
      %s28 = sshll.u32 [#allocation2], 4
      %s29 = int_to_ptr.vmem [resolvable:$true] %s28
      %34 = dma.hbm_to_vmem [thread:$0]  %s0, 512, %s29, [#allocation3], 128, 128, 8
    $region5: #{tpu_custom_call.1} parent=1 // pred_fallthru
      _
    // Predicated region
    $region6: #{tpu_custom_call.1} parent=1 // pred_check
      _
    $region7: #{tpu_custom_call.1} parent=1 // pred_check_branch
      %36 = sbr.rel (0) target = $region9
    $region8: #{tpu_custom_call.1} parent=1 // pred_region
      %s38 = ssub.s32 16, 16
      %39 = vsyncadd [#allocation6], %s38
      %s41 = sshll.u32 [#allocation5], 4
      %s42 = int_to_ptr.vmem [resolvable:$true] %s41
      %44 = dma.hbm_to_vmem [thread:$0]  %s1, 16, %s42, [#allocation6]
    $region9: #{tpu_custom_call.1} parent=1 // pred_fallthru
      _
    // Predicated region
    $region10: #{tpu_custom_call.1} parent=1 // pred_check
      _
    $region11: #{tpu_custom_call.1} parent=1 // pred_check_branch
      %46 = sbr.rel (0) target = $region13
    $region12: #{tpu_custom_call.1} parent=1 // pred_region
      %s48 = ssub.s32 16, 16
      %49 = vsyncadd [#allocation6], %s48
      %s51 = sshll.u32 [#allocation7], 4
      %s52 = int_to_ptr.vmem [resolvable:$true] %s51
      %54 = dma.hbm_to_vmem [thread:$0]  %s2, 16, %s52, [#allocation6]
    $region13: #{tpu_custom_call.1} parent=1 // pred_fallthru
      _
    // Predicated region
    $region14: #{tpu_custom_call.1} parent=1 // pred_check
      _
    $region15: #{tpu_custom_call.1} parent=1 // pred_check_branch
      %56 = sbr.rel (0) target = $region17
    $region16: #{tpu_custom_call.1} parent=1 // pred_region
      %s58 = ssub.s32 3072, 3072
      %59 = vsyncadd [#allocation9], %s58
      %s60 = sshll.u32 [#allocation8], 4
      %s61 = int_to_ptr.vmem [resolvable:$true] %s60
      %66 = dma.hbm_to_vmem [thread:$0]  %s3, 3072, %s61, [#allocation9], 192, 192, 12
    $region17: #{tpu_custom_call.1} parent=1 // pred_fallthru
      _
    // Predicated region
    $region18: #{tpu_custom_call.1} parent=1 // pred_check
      _
    $region19: #{tpu_custom_call.1} parent=1 // pred_check_branch
      %68 = sbr.rel (0) target = $region21
    $region20: #{tpu_custom_call.1} parent=1 // pred_region
      _
    $region21: #{tpu_custom_call.1} parent=1 // pred_fallthru
      _
    // Predicated region
    $region22: #{tpu_custom_call.1} parent=1 // pred_check
      _
    $region23: #{tpu_custom_call.1} parent=1 // pred_check_branch
      %70 = sbr.rel (0) target = $region25
    $region24: #{tpu_custom_call.1} parent=1 // pred_region
      %s72 = ssub.s32 1024, 1024
      %73 = vsyncadd [#allocation9], %s72
      %s74 = sshll.u32 [#allocation10], 4
      %s75 = int_to_ptr.vmem [resolvable:$true] %s74
      %80 = dma.hbm_to_vmem [thread:$0]  %s5, 1024, %s75, [#allocation9], 64, 64, 4
    $region25: #{tpu_custom_call.1} parent=1 // pred_fallthru
      _
    // Predicated region
    $region26: #{tpu_custom_call.1} parent=1 // pred_check
      _
    $region27: #{tpu_custom_call.1} parent=1 // pred_check_branch
      %82 = sbr.rel (0) target = $region29
    $region28: #{tpu_custom_call.1} parent=1 // pred_region
      _
    $region29: #{tpu_custom_call.1} parent=1 // pred_fallthru
      _
    // Predicated region
    $region30: #{tpu_custom_call.1} parent=1 // pred_check
      _
    $region31: #{tpu_custom_call.1} parent=1 // pred_check_branch
      %84 = sbr.rel (0) target = $region33
    $region32: #{tpu_custom_call.1} parent=1 // pred_region
      _
    $region33: #{tpu_custom_call.1} parent=1 // pred_fallthru
      _
    // Predicated region
    $region34: #{tpu_custom_call.1} parent=1 // pred_check
      _
    $region35: #{tpu_custom_call.1} parent=1 // pred_check_branch
      %86 = sbr.rel (0) target = $region37
    $region36: #{tpu_custom_call.1} parent=1 // pred_region
      _
    $region37: #{tpu_custom_call.1} parent=1 // pred_fallthru
      _
    // Predicated region
    $region38: #{tpu_custom_call.1} parent=1 // pred_check
      _
    $region39: #{tpu_custom_call.1} parent=1 // pred_check_branch
      %88 = sbr.rel (0) target = $region41
    $region40: #{tpu_custom_call.1} parent=1 // pred_region
      %s90 = ssub.s32 2048, 2048
      %91 = vsyncadd [#allocation12], %s90
      %s92 = sshll.u32 [#allocation11], 4
      %s93 = int_to_ptr.vmem [resolvable:$true] %s92
      %98 = dma.hbm_to_vmem [thread:$0]  %s9, 2048, %s93, [#allocation12], 128, 128, 8
    $region41: #{tpu_custom_call.1} parent=1 // pred_fallthru
      _
    // Predicated region
    $region42: #{tpu_custom_call.1} parent=1 // pred_check
      _
    $region43: #{tpu_custom_call.1} parent=1 // pred_check_branch
      %100 = sbr.rel (0) target = $region45
    $region44: #{tpu_custom_call.1} parent=1 // pred_region
      _
    $region45: #{tpu_custom_call.1} parent=1 // pred_fallthru
      _
    // Predicated region
    $region46: #{tpu_custom_call.1} parent=1 // pred_check
      _
    $region47: #{tpu_custom_call.1} parent=1 // pred_check_branch
      %102 = sbr.rel (0) target = $region49
    $region48: #{tpu_custom_call.1} parent=1 // pred_region
      %s104 = ssub.s32 2048, 2048
      %105 = vsyncadd [#allocation12], %s104
      %s106 = sshll.u32 [#allocation13], 4
      %s107 = int_to_ptr.vmem [resolvable:$true] %s106
      %112 = dma.hbm_to_vmem [thread:$0]  %s11, 2048, %s107, [#allocation12], 64, 64, 4
    $region49: #{tpu_custom_call.1} parent=1 // pred_fallthru
      _
    // Predicated region
    $region50: #{tpu_custom_call.1} parent=1 // pred_check
      _
    $region51: #{tpu_custom_call.1} parent=1 // pred_check_branch
      %114 = sbr.rel (0) target = $region53
    $region52: #{tpu_custom_call.1} parent=1 // pred_region
      _
    $region53: #{tpu_custom_call.1} parent=1 // pred_fallthru
      _
    // Predicated region
    $region54: #{tpu_custom_call.1} parent=1 // pred_check
      _
    $region55: #{tpu_custom_call.1} parent=1 // pred_check_branch
      %116 = sbr.rel (0) target = $region57
    $region56: #{tpu_custom_call.1} parent=1 // pred_region
      %117 = dma.done [#allocation3], 512
    $region57: #{tpu_custom_call.1} parent=1 // pred_fallthru
      _
    // Predicated region
    $region58: #{tpu_custom_call.1} parent=1 // pred_check
      _
    $region59: #{tpu_custom_call.1} parent=1 // pred_check_branch
      %119 = sbr.rel (0) target = $region61
    $region60: #{tpu_custom_call.1} parent=1 // pred_region
      %120 = dma.done [#allocation6], 16
    $region61: #{tpu_custom_call.1} parent=1 // pred_fallthru
      _
    // Predicated region
    $region62: #{tpu_custom_call.1} parent=1 // pred_check
      _
    $region63: #{tpu_custom_call.1} parent=1 // pred_check_branch
      %122 = sbr.rel (0) target = $region65
    $region64: #{tpu_custom_call.1} parent=1 // pred_region
      %123 = dma.done [#allocation6], 16
    $region65: #{tpu_custom_call.1} parent=1 // pred_fallthru
      _
    // Predicated region
    $region66: #{tpu_custom_call.1} parent=1 // pred_check
      _
    $region67: #{tpu_custom_call.1} parent=1 // pred_check_branch
      %125 = sbr.rel (0) target = $region69
    $region68: #{tpu_custom_call.1} parent=1 // pred_region
      %126 = dma.done [#allocation9], 3072
    $region69: #{tpu_custom_call.1} parent=1 // pred_fallthru
      _
    // Predicated region
    $region70: #{tpu_custom_call.1} parent=1 // pred_check
      _
    $region71: #{tpu_custom_call.1} parent=1 // pred_check_branch
      %128 = sbr.rel (0) target = $region73
    $region72: #{tpu_custom_call.1} parent=1 // pred_region
      %129 = dma.done [#allocation9], 1024
    $region73: #{tpu_custom_call.1} parent=1 // pred_fallthru
      _
    // Predicated region
    $region74: #{tpu_custom_call.1} parent=1 // pred_check
      _
    $region75: #{tpu_custom_call.1} parent=1 // pred_check_branch
      %131 = sbr.rel (0) target = $region77
    $region76: #{tpu_custom_call.1} parent=1 // pred_region
      %132 = dma.done [#allocation12], 2048
    $region77: #{tpu_custom_call.1} parent=1 // pred_fallthru
      _
    // Predicated region
    $region78: #{tpu_custom_call.1} parent=1 // pred_check
      _
    $region79: #{tpu_custom_call.1} parent=1 // pred_check_branch
      %134 = sbr.rel (0) target = $region81
    $region80: #{tpu_custom_call.1} parent=1 // pred_region
      %135 = dma.done [#allocation12], 2048
    $region81: #{tpu_custom_call.1} parent=1 // pred_fallthru
      _
    %v137 = vld [vmem:[#allocation2] sm:$0xff]
    %v138 = vld [vmem:[#allocation2 + $0x8] sm:$0xff]
    %v139 = vld [vmem:[#allocation2 + $0x10] sm:$0xff]
    %v140 = vld [vmem:[#allocation2 + $0x18] sm:$0xff]
    %v141 = vld [vmem:[#allocation5] sm:$0x1]
    %v142 = vld [vmem:[#allocation7] sm:$0x1]
    %143 = vadd.xlane.f32.xlu0 %v137
    %v144 = vpop.xlane.xlu0 %143
    %145 = vadd.xlane.f32.xlu0 %v138
    %v146 = vpop.xlane.xlu0 %145
    %147 = vadd.xlane.f32.xlu0 %v139
    %v148 = vpop.xlane.xlu0 %147
    %149 = vadd.xlane.f32.xlu0 %v140
    %v150 = vpop.xlane.xlu0 %149
    %v151 = vrcp.pop 128.0
    %v152 = vmul.f32 %v144, %v151
    %v153 = vmul.f32 %v146, %v151
    %v154 = vmul.f32 %v148, %v151
    %v155 = vmul.f32 %v150, %v151
    %v156 = vsub.f32 %v137, %v152
    %v157 = vsub.f32 %v138, %v153
    %v158 = vsub.f32 %v139, %v154
    %v159 = vsub.f32 %v140, %v155
    %v160 = vmul.f32 %v156, %v156
    %v161 = vmul.f32 %v157, %v157
    %v162 = vmul.f32 %v158, %v158
    %v163 = vmul.f32 %v159, %v159
    %164 = vadd.xlane.f32.xlu0 %v160
    %v165 = vpop.xlane.xlu0 %164
    %166 = vadd.xlane.f32.xlu0 %v161
    %v167 = vpop.xlane.xlu0 %166
    %168 = vadd.xlane.f32.xlu0 %v162
    %v169 = vpop.xlane.xlu0 %168
    %170 = vadd.xlane.f32.xlu0 %v163
    %v171 = vpop.xlane.xlu0 %170
    %v172 = vmul.f32 %v165, %v151
    %v173 = vmul.f32 %v167, %v151
    %v174 = vmul.f32 %v169, %v151
    %v175 = vmul.f32 %v171, %v151
    %v176 = vadd.f32 %v172, 1e-05
    %v177 = vadd.f32 %v173, 1e-05
    %v178 = vadd.f32 %v174, 1e-05
    %v179 = vadd.f32 %v175, 1e-05
    %v180 = vrsqrt.pop %v176
    %v181 = vrsqrt.pop %v177
    %v182 = vrsqrt.pop %v178
    %v183 = vrsqrt.pop %v179
    %v184 = vmul.f32 %v156, %v180
    %v185 = vmul.f32 %v157, %v181
    %v186 = vmul.f32 %v158, %v182
    %v187 = vmul.f32 %v159, %v183
    %v189 = vlaneseq
    %v190 = vshrl.u32 %v189, 7
    %v191 = vsub.s32 0, %v190
    %v192 = vrot.slane %v141, %v191
    %v194 = vmul.f32 %v184, %v192
    %v195 = vmul.f32 %v185, %v192
    %v196 = vmul.f32 %v186, %v192
    %v197 = vmul.f32 %v187, %v192
    %v199 = vlaneseq
    %v200 = vshrl.u32 %v199, 7
    %v201 = vsub.s32 0, %v200
    %v202 = vrot.slane %v142, %v201
    %v204 = vadd.f32 %v194, %v202
    %v205 = vadd.f32 %v195, %v202
    %v206 = vadd.f32 %v196, %v202
    %v207 = vadd.f32 %v197, %v202
    %v208 = vpack.c.bf16 %v205, %v204
    %v209 = vpack.c.bf16 %v207, %v206
    %v210 = vld [vmem:[#allocation8] sm:$0xff]
    %v211 = vld [vmem:[#allocation8 + $0x8] sm:$0xf]
    %v212 = vld [vmem:[#allocation8 + $0xc] sm:$0xff]
    %v213 = vld [vmem:[#allocation8 + $0x14] sm:$0xf]
    %v214 = vld [vmem:[#allocation8 + $0x18] sm:$0xff]
    %v215 = vld [vmem:[#allocation8 + $0x20] sm:$0xf]
    %v216 = vld [vmem:[#allocation8 + $0x24] sm:$0xff]
    %v217 = vld [vmem:[#allocation8 + $0x2c] sm:$0xf]
    %v218 = vld [vmem:[#allocation8 + $0x30] sm:$0xff]
    %v219 = vld [vmem:[#allocation8 + $0x38] sm:$0xf]
    %v220 = vld [vmem:[#allocation8 + $0x3c] sm:$0xff]
    %v221 = vld [vmem:[#allocation8 + $0x44] sm:$0xf]
    %v222 = vld [vmem:[#allocation8 + $0x48] sm:$0xff]
    %v223 = vld [vmem:[#allocation8 + $0x50] sm:$0xf]
    %v224 = vld [vmem:[#allocation8 + $0x54] sm:$0xff]
    %v225 = vld [vmem:[#allocation8 + $0x5c] sm:$0xf]
    %v226 = vld [vmem:[#allocation8 + $0x60] sm:$0xff]
    %v227 = vld [vmem:[#allocation8 + $0x68] sm:$0xf]
    %v228 = vld [vmem:[#allocation8 + $0x6c] sm:$0xff]
    %v229 = vld [vmem:[#allocation8 + $0x74] sm:$0xf]
    %v230 = vld [vmem:[#allocation8 + $0x78] sm:$0xff]
    %v231 = vld [vmem:[#allocation8 + $0x80] sm:$0xf]
    %v232 = vld [vmem:[#allocation8 + $0x84] sm:$0xff]
    %v233 = vld [vmem:[#allocation8 + $0x8c] sm:$0xf]
    %v234 = vld [vmem:[#allocation8 + $0x90] sm:$0xff]
    %v235 = vld [vmem:[#allocation8 + $0x98] sm:$0xf]
    %v236 = vld [vmem:[#allocation8 + $0x9c] sm:$0xff]
    %v237 = vld [vmem:[#allocation8 + $0xa4] sm:$0xf]
    %v238 = vld [vmem:[#allocation8 + $0xa8] sm:$0xff]
    %v239 = vld [vmem:[#allocation8 + $0xb0] sm:$0xf]
    %v240 = vld [vmem:[#allocation8 + $0xb4] sm:$0xff]
    %v241 = vld [vmem:[#allocation8 + $0xbc] sm:$0xf]
    %v242 = vld [vmem:[%s4] sm:$0x7]
    %v244 = vlaneseq
    %v245 = vshrl.u32 %v244, 7
    %v246 = vsub.s32 0, %v245
    %v247 = vrot.slane %v242, %v246
    %v248 = vlaneseq
    %v249 = vshrl.u32 %v248, 7
    %v250 = vsub.s32 1, %v249
    %v251 = vrot.slane %v242, %v250
    %v252 = vlaneseq
    %v253 = vshrl.u32 %v252, 7
    %v254 = vsub.s32 2, %v253
    %v255 = vrot.slane %v242, %v254
    %v291 = vunpack.c.l.b16 %v210
    %v292 = vunpack.c.h.b16 %v210
    %v293 = vunpack.c.l.b16 %v211
    %v294 = vunpack.c.l.b16 %v212
    %v295 = vunpack.c.h.b16 %v212
    %v296 = vunpack.c.l.b16 %v213
    %v297 = vunpack.c.l.b16 %v214
    %v298 = vunpack.c.h.b16 %v214
    %v299 = vunpack.c.l.b16 %v215
    %v300 = vunpack.c.l.b16 %v216
    %v301 = vunpack.c.h.b16 %v216
    %v302 = vunpack.c.l.b16 %v217
    %v303 = vunpack.c.l.b16 %v218
    %v304 = vunpack.c.h.b16 %v218
    %v305 = vunpack.c.l.b16 %v219
    %v306 = vunpack.c.l.b16 %v220
    %v307 = vunpack.c.h.b16 %v220
    %v308 = vunpack.c.l.b16 %v221
    %v309 = vunpack.c.l.b16 %v222
    %v310 = vunpack.c.h.b16 %v222
    %v311 = vunpack.c.l.b16 %v223
    %v312 = vunpack.c.l.b16 %v224
    %v313 = vunpack.c.h.b16 %v224
    %v314 = vunpack.c.l.b16 %v225
    %v315 = vunpack.c.l.b16 %v226
    %v316 = vunpack.c.h.b16 %v226
    %v317 = vunpack.c.l.b16 %v227
    %v318 = vunpack.c.l.b16 %v228
    %v319 = vunpack.c.h.b16 %v228
    %v320 = vunpack.c.l.b16 %v229
    %v321 = vunpack.c.l.b16 %v230
    %v322 = vunpack.c.h.b16 %v230
    %v323 = vunpack.c.l.b16 %v231
    %v324 = vunpack.c.l.b16 %v232
    %v325 = vunpack.c.h.b16 %v232
    %v326 = vunpack.c.l.b16 %v233
    %v327 = vunpack.c.l.b16 %v234
    %v328 = vunpack.c.h.b16 %v234
    %v329 = vunpack.c.l.b16 %v235
    %v330 = vunpack.c.l.b16 %v236
    %v331 = vunpack.c.h.b16 %v236
    %v332 = vunpack.c.l.b16 %v237
    %v333 = vunpack.c.l.b16 %v238
    %v334 = vunpack.c.h.b16 %v238
    %v335 = vunpack.c.l.b16 %v239
    %v336 = vunpack.c.l.b16 %v240
    %v337 = vunpack.c.h.b16 %v240
    %v338 = vunpack.c.l.b16 %v241
    %v339 = vpack.c.b16 %v294, %v291
    %v340 = vpack.c.b16 %v295, %v292
    %v341 = vpack.c.b16 %v296, %v293
    %v342 = vpack.c.b16 %v300, %v297
    %v343 = vpack.c.b16 %v301, %v298
    %v344 = vpack.c.b16 %v302, %v299
    %v345 = vpack.c.b16 %v306, %v303
    %v346 = vpack.c.b16 %v307, %v304
    %v347 = vpack.c.b16 %v308, %v305
    %v348 = vpack.c.b16 %v312, %v309
    %v349 = vpack.c.b16 %v313, %v310
    %v350 = vpack.c.b16 %v314, %v311
    %v351 = vpack.c.b16 %v318, %v315
    %v352 = vpack.c.b16 %v319, %v316
    %v353 = vpack.c.b16 %v320, %v317
    %v354 = vpack.c.b16 %v324, %v321
    %v355 = vpack.c.b16 %v325, %v322
    %v356 = vpack.c.b16 %v326, %v323
    %v357 = vpack.c.b16 %v330, %v327
    %v358 = vpack.c.b16 %v331, %v328
    %v359 = vpack.c.b16 %v332, %v329
    %v360 = vpack.c.b16 %v336, %v333
    %v361 = vpack.c.b16 %v337, %v334
    %v362 = vpack.c.b16 %v338, %v335
    %387 = vmatprep.subr.bf16.mxu0 %v361
    %388 = vmatpush1.bf16.msra.mxu0 %v360
    %389 = vmatprep.subr.bf16.mxu0 %v358
    %390 = vmatpush1.bf16.msra.mxu0 %v357
    %391 = vmatprep.subr.bf16.mxu0 %v355
    %392 = vmatpush1.bf16.msra.mxu0 %v354
    %393 = vmatprep.subr.bf16.mxu0 %v352
    %394 = vmatpush1.bf16.msra.mxu0 %v351
    %395 = vmatprep.subr.bf16.mxu0 %v349
    %396 = vmatpush1.bf16.msra.mxu0 %v348
    %397 = vmatprep.subr.bf16.mxu0 %v346
    %398 = vmatpush1.bf16.msra.mxu0 %v345
    %399 = vmatprep.subr.bf16.mxu0 %v343
    %400 = vmatpush1.bf16.msra.mxu0 %v342
    %401 = vmatprep.subr.bf16.mxu0 %v340
    %402 = vmatpush1.bf16.msra.mxu0 %v339
    %403 = vmatprep.subr.bf16.mxu0 0
    %404 = vmatpush2.bf16.msra.mxu0 0
    %405 = vmatprep.subr.bf16.mxu0 0
    %406 = vmatpush2.bf16.msra.mxu0 0
    %407 = vmatprep.subr.bf16.mxu0 0
    %408 = vmatpush2.bf16.msra.mxu0 0
    %409 = vmatprep.subr.bf16.mxu0 0
    %410 = vmatpush2.bf16.msra.mxu0 0
    %411 = vmatprep.subr.bf16.mxu0 0
    %412 = vmatpush2.bf16.msra.mxu0 0
    %413 = vmatprep.subr.bf16.mxu0 0
    %414 = vmatpush2.bf16.msra.mxu0 0
    %415 = vmatprep.subr.bf16.mxu0 0
    %416 = vmatpush2.bf16.msra.mxu0 0
    %417 = vmatprep.subr.bf16.mxu0 0
    %418 = vmatpush2.bf16.msra.mxu0 0
    %419 = vmatprep.mubr.bf16.mxu0 0
    %420 = vmatmul.mubr.bf16.gmra.mxu0 %v208
    %v421 = vpop.f32.mrf.mxu0
    %v422 = vadd.f32 %v247, %v421
    %v423 = vpop.f32.mrf.mxu0
    %v424 = vadd.f32 %v251, %v423
    %v425 = vpop.f32.mrf.mxu0
    %v426 = vadd.f32 %v247, %v425
    %v427 = vpop.f32.mrf.mxu0
    %v428 = vadd.f32 %v251, %v427
    %429 = vmatprep.mubr.bf16.mxu0 0
    %430 = vmatmul.mubr.bf16.gmra.mxu0 %v209
    %v431 = vpop.f32.mrf.mxu0
    %v432 = vadd.f32 %v247, %v431
    %v433 = vpop.f32.mrf.mxu0
    %v434 = vadd.f32 %v251, %v433
    %v435 = vpop.f32.mrf.mxu0
    %v436 = vadd.f32 %v247, %v435
    %v437 = vpop.f32.mrf.mxu0
    %v438 = vadd.f32 %v251, %v437
    %439 = vdwg.mxu0
    %440 = vmatprep.subr.bf16.mxu0 0
    %441 = vmatpush1.bf16.msra.mxu0 %v362
    %442 = vmatprep.subr.bf16.mxu0 0
    %443 = vmatpush1.bf16.msra.mxu0 %v359
    %444 = vmatprep.subr.bf16.mxu0 0
    %445 = vmatpush1.bf16.msra.mxu0 %v356
    %446 = vmatprep.subr.bf16.mxu0 0
    %447 = vmatpush1.bf16.msra.mxu0 %v353
    %448 = vmatprep.subr.bf16.mxu0 0
    %449 = vmatpush1.bf16.msra.mxu0 %v350
    %450 = vmatprep.subr.bf16.mxu0 0
    %451 = vmatpush1.bf16.msra.mxu0 %v347
    %452 = vmatprep.subr.bf16.mxu0 0
    %453 = vmatpush1.bf16.msra.mxu0 %v344
    %454 = vmatprep.subr.bf16.mxu0 0
    %455 = vmatpush1.bf16.msra.mxu0 %v341
    %456 = vmatprep.subr.bf16.mxu0 0
    %457 = vmatpush2.bf16.msra.mxu0 0
    %458 = vmatprep.subr.bf16.mxu0 0
    %459 = vmatpush2.bf16.msra.mxu0 0
    %460 = vmatprep.subr.bf16.mxu0 0
    %461 = vmatpush2.bf16.msra.mxu0 0
    %462 = vmatprep.subr.bf16.mxu0 0
    %463 = vmatpush2.bf16.msra.mxu0 0
    %464 = vmatprep.subr.bf16.mxu0 0
    %465 = vmatpush2.bf16.msra.mxu0 0
    %466 = vmatprep.subr.bf16.mxu0 0
    %467 = vmatpush2.bf16.msra.mxu0 0
    %468 = vmatprep.subr.bf16.mxu0 0
    %469 = vmatpush2.bf16.msra.mxu0 0
    %470 = vmatprep.subr.bf16.mxu0 0
    %471 = vmatpush2.bf16.msra.mxu0 0
    %472 = vmatprep.mubr.bf16.mxu0 0
    %473 = vmatmul.mubr.bf16.gmra.mxu0 %v208
    %v474 = vpop.f32.mrf.mxu0
    %v475 = vadd.f32 %v255, %v474
    %v476 = vpop.f32.mrf.mxu0
    %v477 = vpop.f32.mrf.mxu0
    %v478 = vadd.f32 %v255, %v477
    %v479 = vpop.f32.mrf.mxu0
    %480 = vmatprep.mubr.bf16.mxu0 0
    %481 = vmatmul.mubr.bf16.gmra.mxu0 %v209
    %v482 = vpop.f32.mrf.mxu0
    %v483 = vadd.f32 %v255, %v482
    %v484 = vpop.f32.mrf.mxu0
    %v485 = vpop.f32.mrf.mxu0
    %v486 = vadd.f32 %v255, %v485
    %v487 = vpop.f32.mrf.mxu0
    %488 = vdwg.mxu0
    %v489 = vpack.c.bf16 %v426, %v422
    %v490 = vpack.c.bf16 %v428, %v424
    %v491 = vpack.c.bf16 %v478, %v475
    %v492 = vpack.c.bf16 %v436, %v432
    %v493 = vpack.c.bf16 %v438, %v434
    %v494 = vpack.c.bf16 %v486, %v483
    %vm495 = vcmask 261120
    %v497 = vsel %vm495, %v489, 0
    %v500 = vsel %vm495, %v490, 0
    %502 = vmatprep.subr.bf16.mxu0 0
    %503 = vmatpush1.bf16.xpose.msra.mxu0 0
    %504 = vmatprep.subr.bf16.mxu0 0
    %505 = vmatpush1.bf16.xpose.msra.mxu0 0
    %506 = vmatprep.subr.bf16.mxu0 0
    %507 = vmatpush1.bf16.xpose.msra.mxu0 0
    %508 = vmatprep.subr.bf16.mxu0 0
    %509 = vmatpush1.bf16.xpose.msra.mxu0 0
    %510 = vmatprep.subr.bf16.mxu0 0
    %511 = vmatpush1.bf16.xpose.msra.mxu0 0
    %512 = vmatprep.subr.bf16.mxu0 0
    %513 = vmatpush1.bf16.xpose.msra.mxu0 0
    %514 = vmatprep.subr.bf16.mxu0 0
    %515 = vmatpush1.bf16.xpose.msra.mxu0 0
    %516 = vmatprep.subr.bf16.mxu0 0
    %517 = vmatpush1.bf16.xpose.msra.mxu0 %v500
    %518 = vmatprep.subr.bf16.mxu0 0
    %519 = vmatpush2.bf16.xpose.msra.mxu0 0
    %520 = vmatprep.subr.bf16.mxu0 0
    %521 = vmatpush2.bf16.xpose.msra.mxu0 0
    %522 = vmatprep.subr.bf16.mxu0 0
    %523 = vmatpush2.bf16.xpose.msra.mxu0 0
    %524 = vmatprep.subr.bf16.mxu0 0
    %525 = vmatpush2.bf16.xpose.msra.mxu0 0
    %526 = vmatprep.subr.bf16.mxu0 0
    %527 = vmatpush2.bf16.xpose.msra.mxu0 0
    %528 = vmatprep.subr.bf16.mxu0 0
    %529 = vmatpush2.bf16.xpose.msra.mxu0 0
    %530 = vmatprep.subr.bf16.mxu0 0
    %531 = vmatpush2.bf16.xpose.msra.mxu0 0
    %532 = vmatprep.subr.bf16.mxu0 0
    %533 = vmatpush2.bf16.xpose.msra.mxu0 0
    %534 = vmatprep.mubr.bf16.mxu0 0
    %535 = vmatmul.mubr.bf16.gmra.mxu0 %v497
    %v536 = vpop.f32.mrf.mxu0
    %v537 = vadd.f32 0.0, %v536
    %v538 = vpop.f32.mrf.mxu0
    %v539 = vpop.f32.mrf.mxu0
    %v540 = vadd.f32 0.0, %v539
    %v541 = vpop.f32.mrf.mxu0
    %542 = vdwg.mxu0
    %vm543 = vcmask 130048
    %v544 = vsel %vm543, %v537, -inf
    %545 = vmax.xlane.f32.xlu0 %v544
    %v546 = vpop.xlane.xlu0 %545
    %v547 = vsel %vm543, %v540, -inf
    %548 = vmax.xlane.f32.xlu0 %v547
    %v549 = vpop.xlane.xlu0 %548
    %v550 = vsub.f32 %v537, %v546
    %v551 = vsub.f32 %v540, %v549
    %v552 = vmul.f32 %v550, 1.442695
    %v553 = vpow.pop %v552
    %v554 = vmul.f32 %v551, 1.442695
    %v555 = vpow.pop %v554
    %v556 = vsel %vm543, %v553, 0.0
    %557 = vadd.xlane.f32.xlu0 %v556
    %v558 = vpop.xlane.xlu0 %557
    %v559 = vsel %vm543, %v555, 0.0
    %560 = vadd.xlane.f32.xlu0 %v559
    %v561 = vpop.xlane.xlu0 %560
    %v562 = vpack.c.bf16 %v555, %v553
    %v564 = vsel %vm543, %v562, 0
    %566 = vmatprep.subr.bf16.mxu0 0
    %567 = vmatpush1.bf16.msra.mxu0 0
    %568 = vmatprep.subr.bf16.mxu0 0
    %569 = vmatpush1.bf16.msra.mxu0 0
    %570 = vmatprep.subr.bf16.mxu0 0
    %571 = vmatpush1.bf16.msra.mxu0 0
    %572 = vmatprep.subr.bf16.mxu0 0
    %573 = vmatpush1.bf16.msra.mxu0 0
    %574 = vmatprep.subr.bf16.mxu0 0
    %575 = vmatpush1.bf16.msra.mxu0 0
    %576 = vmatprep.subr.bf16.mxu0 0
    %577 = vmatpush1.bf16.msra.mxu0 0
    %578 = vmatprep.subr.bf16.mxu0 0
    %579 = vmatpush1.bf16.msra.mxu0 0
    %580 = vmatprep.subr.bf16.mxu0 0
    %581 = vmatpush1.bf16.msra.mxu0 %v491
    %582 = vmatprep.subr.bf16.mxu0 0
    %583 = vmatpush2.bf16.msra.mxu0 0
    %584 = vmatprep.subr.bf16.mxu0 0
    %585 = vmatpush2.bf16.msra.mxu0 0
    %586 = vmatprep.subr.bf16.mxu0 0
    %587 = vmatpush2.bf16.msra.mxu0 0
    %588 = vmatprep.subr.bf16.mxu0 0
    %589 = vmatpush2.bf16.msra.mxu0 0
    %590 = vmatprep.subr.bf16.mxu0 0
    %591 = vmatpush2.bf16.msra.mxu0 0
    %592 = vmatprep.subr.bf16.mxu0 0
    %593 = vmatpush2.bf16.msra.mxu0 0
    %594 = vmatprep.subr.bf16.mxu0 0
    %595 = vmatpush2.bf16.msra.mxu0 0
    %596 = vmatprep.subr.bf16.mxu0 0
    %597 = vmatpush2.bf16.msra.mxu0 0
    %598 = vmatprep.mubr.bf16.mxu0 0
    %599 = vmatmul.mubr.bf16.gmra.mxu0 %v564
    %v600 = vpop.f32.mrf.mxu0
    %v601 = vadd.f32 0.0, %v600
    %v602 = vpop.f32.mrf.mxu0
    %v603 = vpop.f32.mrf.mxu0
    %v604 = vadd.f32 0.0, %v603
    %v605 = vpop.f32.mrf.mxu0
    %606 = vdwg.mxu0
    %v607 = vrcp.pop %v558
    %v608 = vrcp.pop %v561
    %v609 = vmul.f32 %v601, %v607
    %v610 = vmul.f32 %v604, %v608
    %v611 = vpack.c.bf16 %v610, %v609
    %613 = vrot.lane.b32.xlu0 %v489, 96
    %v614 = vpop.permute.xlu0 %613
    %616 = vrot.lane.b32.xlu0 %v490, 96
    %v617 = vpop.permute.xlu0 %616
    %v619 = vsel %vm495, %v614, 0
    %v622 = vsel %vm495, %v617, 0
    %624 = vmatprep.subr.bf16.mxu0 0
    %625 = vmatpush1.bf16.xpose.msra.mxu0 0
    %626 = vmatprep.subr.bf16.mxu0 0
    %627 = vmatpush1.bf16.xpose.msra.mxu0 0
    %628 = vmatprep.subr.bf16.mxu0 0
    %629 = vmatpush1.bf16.xpose.msra.mxu0 0
    %630 = vmatprep.subr.bf16.mxu0 0
    %631 = vmatpush1.bf16.xpose.msra.mxu0 0
    %632 = vmatprep.subr.bf16.mxu0 0
    %633 = vmatpush1.bf16.xpose.msra.mxu0 0
    %634 = vmatprep.subr.bf16.mxu0 0
    %635 = vmatpush1.bf16.xpose.msra.mxu0 0
    %636 = vmatprep.subr.bf16.mxu0 0
    %637 = vmatpush1.bf16.xpose.msra.mxu0 0
    %638 = vmatprep.subr.bf16.mxu0 0
    %639 = vmatpush1.bf16.xpose.msra.mxu0 %v622
    %640 = vmatprep.subr.bf16.mxu0 0
    %641 = vmatpush2.bf16.xpose.msra.mxu0 0
    %642 = vmatprep.subr.bf16.mxu0 0
    %643 = vmatpush2.bf16.xpose.msra.mxu0 0
    %644 = vmatprep.subr.bf16.mxu0 0
    %645 = vmatpush2.bf16.xpose.msra.mxu0 0
    %646 = vmatprep.subr.bf16.mxu0 0
    %647 = vmatpush2.bf16.xpose.msra.mxu0 0
    %648 = vmatprep.subr.bf16.mxu0 0
    %649 = vmatpush2.bf16.xpose.msra.mxu0 0
    %650 = vmatprep.subr.bf16.mxu0 0
    %651 = vmatpush2.bf16.xpose.msra.mxu0 0
    %652 = vmatprep.subr.bf16.mxu0 0
    %653 = vmatpush2.bf16.xpose.msra.mxu0 0
    %654 = vmatprep.subr.bf16.mxu0 0
    %655 = vmatpush2.bf16.xpose.msra.mxu0 0
    %656 = vmatprep.mubr.bf16.mxu0 0
    %657 = vmatmul.mubr.bf16.gmra.mxu0 %v619
    %v658 = vpop.f32.mrf.mxu0
    %v659 = vadd.f32 0.0, %v658
    %v660 = vpop.f32.mrf.mxu0
    %v661 = vpop.f32.mrf.mxu0
    %v662 = vadd.f32 0.0, %v661
    %v663 = vpop.f32.mrf.mxu0
    %664 = vdwg.mxu0
    %v665 = vsel %vm543, %v659, -inf
    %666 = vmax.xlane.f32.xlu0 %v665
    %v667 = vpop.xlane.xlu0 %666
    %v668 = vsel %vm543, %v662, -inf
    %669 = vmax.xlane.f32.xlu0 %v668
    %v670 = vpop.xlane.xlu0 %669
    %v671 = vsub.f32 %v659, %v667
    %v672 = vsub.f32 %v662, %v670
    %v673 = vmul.f32 %v671, 1.442695
    %v674 = vpow.pop %v673
    %v675 = vmul.f32 %v672, 1.442695
    %v676 = vpow.pop %v675
    %v677 = vsel %vm543, %v674, 0.0
    %678 = vadd.xlane.f32.xlu0 %v677
    %v679 = vpop.xlane.xlu0 %678
    %v680 = vsel %vm543, %v676, 0.0
    %681 = vadd.xlane.f32.xlu0 %v680
    %v682 = vpop.xlane.xlu0 %681
    %v683 = vpack.c.bf16 %v676, %v674
    %685 = vrot.lane.b32.xlu0 %v491, 96
    %v686 = vpop.permute.xlu0 %685
    %v689 = vsel %vm543, %v683, 0
    %691 = vmatprep.subr.bf16.mxu0 0
    %692 = vmatpush1.bf16.msra.mxu0 0
    %693 = vmatprep.subr.bf16.mxu0 0
    %694 = vmatpush1.bf16.msra.mxu0 0
    %695 = vmatprep.subr.bf16.mxu0 0
    %696 = vmatpush1.bf16.msra.mxu0 0
    %697 = vmatprep.subr.bf16.mxu0 0
    %698 = vmatpush1.bf16.msra.mxu0 0
    %699 = vmatprep.subr.bf16.mxu0 0
    %700 = vmatpush1.bf16.msra.mxu0 0
    %701 = vmatprep.subr.bf16.mxu0 0
    %702 = vmatpush1.bf16.msra.mxu0 0
    %703 = vmatprep.subr.bf16.mxu0 0
    %704 = vmatpush1.bf16.msra.mxu0 0
    %705 = vmatprep.subr.bf16.mxu0 0
    %706 = vmatpush1.bf16.msra.mxu0 %v686
    %707 = vmatprep.subr.bf16.mxu0 0
    %708 = vmatpush2.bf16.msra.mxu0 0
    %709 = vmatprep.subr.bf16.mxu0 0
    %710 = vmatpush2.bf16.msra.mxu0 0
    %711 = vmatprep.subr.bf16.mxu0 0
    %712 = vmatpush2.bf16.msra.mxu0 0
    %713 = vmatprep.subr.bf16.mxu0 0
    %714 = vmatpush2.bf16.msra.mxu0 0
    %715 = vmatprep.subr.bf16.mxu0 0
    %716 = vmatpush2.bf16.msra.mxu0 0
    %717 = vmatprep.subr.bf16.mxu0 0
    %718 = vmatpush2.bf16.msra.mxu0 0
    %719 = vmatprep.subr.bf16.mxu0 0
    %720 = vmatpush2.bf16.msra.mxu0 0
    %721 = vmatprep.subr.bf16.mxu0 0
    %722 = vmatpush2.bf16.msra.mxu0 0
    %723 = vmatprep.mubr.bf16.mxu0 0
    %724 = vmatmul.mubr.bf16.gmra.mxu0 %v689
    %v725 = vpop.f32.mrf.mxu0
    %v726 = vadd.f32 0.0, %v725
    %v727 = vpop.f32.mrf.mxu0
    %v728 = vpop.f32.mrf.mxu0
    %v729 = vadd.f32 0.0, %v728
    %v730 = vpop.f32.mrf.mxu0
    %731 = vdwg.mxu0
    %v732 = vrcp.pop %v679
    %v733 = vrcp.pop %v682
    %v734 = vmul.f32 %v726, %v732
    %v735 = vmul.f32 %v729, %v733
    %v736 = vpack.c.bf16 %v735, %v734
    %737 = vrot.lane.b32.xlu0 %v489, 64
    %v738 = vpop.permute.xlu0 %737
    %739 = vrot.lane.b32.xlu0 %v490, 64
    %v740 = vpop.permute.xlu0 %739
    %v742 = vsel %vm495, %v738, 0
    %v745 = vsel %vm495, %v740, 0
    %747 = vmatprep.subr.bf16.mxu0 0
    %748 = vmatpush1.bf16.xpose.msra.mxu0 0
    %749 = vmatprep.subr.bf16.mxu0 0
    %750 = vmatpush1.bf16.xpose.msra.mxu0 0
    %751 = vmatprep.subr.bf16.mxu0 0
    %752 = vmatpush1.bf16.xpose.msra.mxu0 0
    %753 = vmatprep.subr.bf16.mxu0 0
    %754 = vmatpush1.bf16.xpose.msra.mxu0 0
    %755 = vmatprep.subr.bf16.mxu0 0
    %756 = vmatpush1.bf16.xpose.msra.mxu0 0
    %757 = vmatprep.subr.bf16.mxu0 0
    %758 = vmatpush1.bf16.xpose.msra.mxu0 0
    %759 = vmatprep.subr.bf16.mxu0 0
    %760 = vmatpush1.bf16.xpose.msra.mxu0 0
    %761 = vmatprep.subr.bf16.mxu0 0
    %762 = vmatpush1.bf16.xpose.msra.mxu0 %v745
    %763 = vmatprep.subr.bf16.mxu0 0
    %764 = vmatpush2.bf16.xpose.msra.mxu0 0
    %765 = vmatprep.subr.bf16.mxu0 0
    %766 = vmatpush2.bf16.xpose.msra.mxu0 0
    %767 = vmatprep.subr.bf16.mxu0 0
    %768 = vmatpush2.bf16.xpose.msra.mxu0 0
    %769 = vmatprep.subr.bf16.mxu0 0
    %770 = vmatpush2.bf16.xpose.msra.mxu0 0
    %771 = vmatprep.subr.bf16.mxu0 0
    %772 = vmatpush2.bf16.xpose.msra.mxu0 0
    %773 = vmatprep.subr.bf16.mxu0 0
    %774 = vmatpush2.bf16.xpose.msra.mxu0 0
    %775 = vmatprep.subr.bf16.mxu0 0
    %776 = vmatpush2.bf16.xpose.msra.mxu0 0
    %777 = vmatprep.subr.bf16.mxu0 0
    %778 = vmatpush2.bf16.xpose.msra.mxu0 0
    %779 = vmatprep.mubr.bf16.mxu0 0
    %780 = vmatmul.mubr.bf16.gmra.mxu0 %v742
    %v781 = vpop.f32.mrf.mxu0
    %v782 = vadd.f32 0.0, %v781
    %v783 = vpop.f32.mrf.mxu0
    %v784 = vpop.f32.mrf.mxu0
    %v785 = vadd.f32 0.0, %v784
    %v786 = vpop.f32.mrf.mxu0
    %787 = vdwg.mxu0
    %v788 = vsel %vm543, %v782, -inf
    %789 = vmax.xlane.f32.xlu0 %v788
    %v790 = vpop.xlane.xlu0 %789
    %v791 = vsel %vm543, %v785, -inf
    %792 = vmax.xlane.f32.xlu0 %v791
    %v793 = vpop.xlane.xlu0 %792
    %v794 = vsub.f32 %v782, %v790
    %v795 = vsub.f32 %v785, %v793
    %v796 = vmul.f32 %v794, 1.442695
    %v797 = vpow.pop %v796
    %v798 = vmul.f32 %v795, 1.442695
    %v799 = vpow.pop %v798
    %v800 = vsel %vm543, %v797, 0.0
    %801 = vadd.xlane.f32.xlu0 %v800
    %v802 = vpop.xlane.xlu0 %801
    %v803 = vsel %vm543, %v799, 0.0
    %804 = vadd.xlane.f32.xlu0 %v803
    %v805 = vpop.xlane.xlu0 %804
    %v806 = vpack.c.bf16 %v799, %v797
    %807 = vrot.lane.b32.xlu0 %v491, 64
    %v808 = vpop.permute.xlu0 %807
    %v811 = vsel %vm543, %v806, 0
    %813 = vmatprep.subr.bf16.mxu0 0
    %814 = vmatpush1.bf16.msra.mxu0 0
    %815 = vmatprep.subr.bf16.mxu0 0
    %816 = vmatpush1.bf16.msra.mxu0 0
    %817 = vmatprep.subr.bf16.mxu0 0
    %818 = vmatpush1.bf16.msra.mxu0 0
    %819 = vmatprep.subr.bf16.mxu0 0
    %820 = vmatpush1.bf16.msra.mxu0 0
    %821 = vmatprep.subr.bf16.mxu0 0
    %822 = vmatpush1.bf16.msra.mxu0 0
    %823 = vmatprep.subr.bf16.mxu0 0
    %824 = vmatpush1.bf16.msra.mxu0 0
    %825 = vmatprep.subr.bf16.mxu0 0
    %826 = vmatpush1.bf16.msra.mxu0 0
    %827 = vmatprep.subr.bf16.mxu0 0
    %828 = vmatpush1.bf16.msra.mxu0 %v808
    %829 = vmatprep.subr.bf16.mxu0 0
    %830 = vmatpush2.bf16.msra.mxu0 0
    %831 = vmatprep.subr.bf16.mxu0 0
    %832 = vmatpush2.bf16.msra.mxu0 0
    %833 = vmatprep.subr.bf16.mxu0 0
    %834 = vmatpush2.bf16.msra.mxu0 0
    %835 = vmatprep.subr.bf16.mxu0 0
    %836 = vmatpush2.bf16.msra.mxu0 0
    %837 = vmatprep.subr.bf16.mxu0 0
    %838 = vmatpush2.bf16.msra.mxu0 0
    %839 = vmatprep.subr.bf16.mxu0 0
    %840 = vmatpush2.bf16.msra.mxu0 0
    %841 = vmatprep.subr.bf16.mxu0 0
    %842 = vmatpush2.bf16.msra.mxu0 0
    %843 = vmatprep.subr.bf16.mxu0 0
    %844 = vmatpush2.bf16.msra.mxu0 0
    %845 = vmatprep.mubr.bf16.mxu0 0
    %846 = vmatmul.mubr.bf16.gmra.mxu0 %v811
    %v847 = vpop.f32.mrf.mxu0
    %v848 = vadd.f32 0.0, %v847
    %v849 = vpop.f32.mrf.mxu0
    %v850 = vpop.f32.mrf.mxu0
    %v851 = vadd.f32 0.0, %v850
    %v852 = vpop.f32.mrf.mxu0
    %853 = vdwg.mxu0
    %v854 = vrcp.pop %v802
    %v855 = vrcp.pop %v805
    %v856 = vmul.f32 %v848, %v854
    %v857 = vmul.f32 %v851, %v855
    %v858 = vpack.c.bf16 %v857, %v856
    %859 = vrot.lane.b32.xlu0 %v489, 32
    %v860 = vpop.permute.xlu0 %859
    %861 = vrot.lane.b32.xlu0 %v490, 32
    %v862 = vpop.permute.xlu0 %861
    %v864 = vsel %vm495, %v860, 0
    %v867 = vsel %vm495, %v862, 0
    %869 = vmatprep.subr.bf16.mxu0 0
    %870 = vmatpush1.bf16.xpose.msra.mxu0 0
    %871 = vmatprep.subr.bf16.mxu0 0
    %872 = vmatpush1.bf16.xpose.msra.mxu0 0
    %873 = vmatprep.subr.bf16.mxu0 0
    %874 = vmatpush1.bf16.xpose.msra.mxu0 0
    %875 = vmatprep.subr.bf16.mxu0 0
    %876 = vmatpush1.bf16.xpose.msra.mxu0 0
    %877 = vmatprep.subr.bf16.mxu0 0
    %878 = vmatpush1.bf16.xpose.msra.mxu0 0
    %879 = vmatprep.subr.bf16.mxu0 0
    %880 = vmatpush1.bf16.xpose.msra.mxu0 0
    %881 = vmatprep.subr.bf16.mxu0 0
    %882 = vmatpush1.bf16.xpose.msra.mxu0 0
    %883 = vmatprep.subr.bf16.mxu0 0
    %884 = vmatpush1.bf16.xpose.msra.mxu0 %v867
    %885 = vmatprep.subr.bf16.mxu0 0
    %886 = vmatpush2.bf16.xpose.msra.mxu0 0
    %887 = vmatprep.subr.bf16.mxu0 0
    %888 = vmatpush2.bf16.xpose.msra.mxu0 0
    %889 = vmatprep.subr.bf16.mxu0 0
    %890 = vmatpush2.bf16.xpose.msra.mxu0 0
    %891 = vmatprep.subr.bf16.mxu0 0
    %892 = vmatpush2.bf16.xpose.msra.mxu0 0
    %893 = vmatprep.subr.bf16.mxu0 0
    %894 = vmatpush2.bf16.xpose.msra.mxu0 0
    %895 = vmatprep.subr.bf16.mxu0 0
    %896 = vmatpush2.bf16.xpose.msra.mxu0 0
    %897 = vmatprep.subr.bf16.mxu0 0
    %898 = vmatpush2.bf16.xpose.msra.mxu0 0
    %899 = vmatprep.subr.bf16.mxu0 0
    %900 = vmatpush2.bf16.xpose.msra.mxu0 0
    %901 = vmatprep.mubr.bf16.mxu0 0
    %902 = vmatmul.mubr.bf16.gmra.mxu0 %v864
    %v903 = vpop.f32.mrf.mxu0
    %v904 = vadd.f32 0.0, %v903
    %v905 = vpop.f32.mrf.mxu0
    %v906 = vpop.f32.mrf.mxu0
    %v907 = vadd.f32 0.0, %v906
    %v908 = vpop.f32.mrf.mxu0
    %909 = vdwg.mxu0
    %v910 = vsel %vm543, %v904, -inf
    %911 = vmax.xlane.f32.xlu0 %v910
    %v912 = vpop.xlane.xlu0 %911
    %v913 = vsel %vm543, %v907, -inf
    %914 = vmax.xlane.f32.xlu0 %v913
    %v915 = vpop.xlane.xlu0 %914
    %v916 = vsub.f32 %v904, %v912
    %v917 = vsub.f32 %v907, %v915
    %v918 = vmul.f32 %v916, 1.442695
    %v919 = vpow.pop %v918
    %v920 = vmul.f32 %v917, 1.442695
    %v921 = vpow.pop %v920
    %v922 = vsel %vm543, %v919, 0.0
    %923 = vadd.xlane.f32.xlu0 %v922
    %v924 = vpop.xlane.xlu0 %923
    %v925 = vsel %vm543, %v921, 0.0
    %926 = vadd.xlane.f32.xlu0 %v925
    %v927 = vpop.xlane.xlu0 %926
    %v928 = vpack.c.bf16 %v921, %v919
    %929 = vrot.lane.b32.xlu0 %v491, 32
    %v930 = vpop.permute.xlu0 %929
    %v933 = vsel %vm543, %v928, 0
    %935 = vmatprep.subr.bf16.mxu0 0
    %936 = vmatpush1.bf16.msra.mxu0 0
    %937 = vmatprep.subr.bf16.mxu0 0
    %938 = vmatpush1.bf16.msra.mxu0 0
    %939 = vmatprep.subr.bf16.mxu0 0
    %940 = vmatpush1.bf16.msra.mxu0 0
    %941 = vmatprep.subr.bf16.mxu0 0
    %942 = vmatpush1.bf16.msra.mxu0 0
    %943 = vmatprep.subr.bf16.mxu0 0
    %944 = vmatpush1.bf16.msra.mxu0 0
    %945 = vmatprep.subr.bf16.mxu0 0
    %946 = vmatpush1.bf16.msra.mxu0 0
    %947 = vmatprep.subr.bf16.mxu0 0
    %948 = vmatpush1.bf16.msra.mxu0 0
    %949 = vmatprep.subr.bf16.mxu0 0
    %950 = vmatpush1.bf16.msra.mxu0 %v930
    %951 = vmatprep.subr.bf16.mxu0 0
    %952 = vmatpush2.bf16.msra.mxu0 0
    %953 = vmatprep.subr.bf16.mxu0 0
    %954 = vmatpush2.bf16.msra.mxu0 0
    %955 = vmatprep.subr.bf16.mxu0 0
    %956 = vmatpush2.bf16.msra.mxu0 0
    %957 = vmatprep.subr.bf16.mxu0 0
    %958 = vmatpush2.bf16.msra.mxu0 0
    %959 = vmatprep.subr.bf16.mxu0 0
    %960 = vmatpush2.bf16.msra.mxu0 0
    %961 = vmatprep.subr.bf16.mxu0 0
    %962 = vmatpush2.bf16.msra.mxu0 0
    %963 = vmatprep.subr.bf16.mxu0 0
    %964 = vmatpush2.bf16.msra.mxu0 0
    %965 = vmatprep.subr.bf16.mxu0 0
    %966 = vmatpush2.bf16.msra.mxu0 0
    %967 = vmatprep.mubr.bf16.mxu0 0
    %968 = vmatmul.mubr.bf16.gmra.mxu0 %v933
    %v969 = vpop.f32.mrf.mxu0
    %v970 = vadd.f32 0.0, %v969
    %v971 = vpop.f32.mrf.mxu0
    %v972 = vpop.f32.mrf.mxu0
    %v973 = vadd.f32 0.0, %v972
    %v974 = vpop.f32.mrf.mxu0
    %975 = vdwg.mxu0
    %v976 = vrcp.pop %v924
    %v977 = vrcp.pop %v927
    %v978 = vmul.f32 %v970, %v976
    %v979 = vmul.f32 %v973, %v977
    %v980 = vpack.c.bf16 %v979, %v978
    %982 = vrot.lane.b32.xlu0 %v736, 32
    %v983 = vpop.permute.xlu0 %982
    %985 = vrot.lane.b32.xlu0 %v858, 64
    %v986 = vpop.permute.xlu0 %985
    %988 = vrot.lane.b32.xlu0 %v980, 96
    %v989 = vpop.permute.xlu0 %988
    %v992 = vsel %vm495, %v611, %v983
    %vm993 = vcmask 523264
    %v995 = vsel %vm993, %v992, %v986
    %vm996 = vcmask 785408
    %v998 = vsel %vm996, %v995, %v989
    %v1001 = vsel %vm495, %v492, 0
    %v1004 = vsel %vm495, %v493, 0
    %1006 = vmatprep.subr.bf16.mxu0 0
    %1007 = vmatpush1.bf16.xpose.msra.mxu0 0
    %1008 = vmatprep.subr.bf16.mxu0 0
    %1009 = vmatpush1.bf16.xpose.msra.mxu0 0
    %1010 = vmatprep.subr.bf16.mxu0 0
    %1011 = vmatpush1.bf16.xpose.msra.mxu0 0
    %1012 = vmatprep.subr.bf16.mxu0 0
    %1013 = vmatpush1.bf16.xpose.msra.mxu0 0
    %1014 = vmatprep.subr.bf16.mxu0 0
    %1015 = vmatpush1.bf16.xpose.msra.mxu0 0
    %1016 = vmatprep.subr.bf16.mxu0 0
    %1017 = vmatpush1.bf16.xpose.msra.mxu0 0
    %1018 = vmatprep.subr.bf16.mxu0 0
    %1019 = vmatpush1.bf16.xpose.msra.mxu0 0
    %1020 = vmatprep.subr.bf16.mxu0 0
    %1021 = vmatpush1.bf16.xpose.msra.mxu0 %v1004
    %1022 = vmatprep.subr.bf16.mxu0 0
    %1023 = vmatpush2.bf16.xpose.msra.mxu0 0
    %1024 = vmatprep.subr.bf16.mxu0 0
    %1025 = vmatpush2.bf16.xpose.msra.mxu0 0
    %1026 = vmatprep.subr.bf16.mxu0 0
    %1027 = vmatpush2.bf16.xpose.msra.mxu0 0
    %1028 = vmatprep.subr.bf16.mxu0 0
    %1029 = vmatpush2.bf16.xpose.msra.mxu0 0
    %1030 = vmatprep.subr.bf16.mxu0 0
    %1031 = vmatpush2.bf16.xpose.msra.mxu0 0
    %1032 = vmatprep.subr.bf16.mxu0 0
    %1033 = vmatpush2.bf16.xpose.msra.mxu0 0
    %1034 = vmatprep.subr.bf16.mxu0 0
    %1035 = vmatpush2.bf16.xpose.msra.mxu0 0
    %1036 = vmatprep.subr.bf16.mxu0 0
    %1037 = vmatpush2.bf16.xpose.msra.mxu0 0
    %1038 = vmatprep.mubr.bf16.mxu0 0
    %1039 = vmatmul.mubr.bf16.gmra.mxu0 %v1001
    %v1040 = vpop.f32.mrf.mxu0
    %v1041 = vadd.f32 0.0, %v1040
    %v1042 = vpop.f32.mrf.mxu0
    %v1043 = vpop.f32.mrf.mxu0
    %v1044 = vadd.f32 0.0, %v1043
    %v1045 = vpop.f32.mrf.mxu0
    %1046 = vdwg.mxu0
    %v1047 = vsel %vm543, %v1041, -inf
    %1048 = vmax.xlane.f32.xlu0 %v1047
    %v1049 = vpop.xlane.xlu0 %1048
    %v1050 = vsel %vm543, %v1044, -inf
    %1051 = vmax.xlane.f32.xlu0 %v1050
    %v1052 = vpop.xlane.xlu0 %1051
    %v1053 = vsub.f32 %v1041, %v1049
    %v1054 = vsub.f32 %v1044, %v1052
    %v1055 = vmul.f32 %v1053, 1.442695
    %v1056 = vpow.pop %v1055
    %v1057 = vmul.f32 %v1054, 1.442695
    %v1058 = vpow.pop %v1057
    %v1059 = vsel %vm543, %v1056, 0.0
    %1060 = vadd.xlane.f32.xlu0 %v1059
    %v1061 = vpop.xlane.xlu0 %1060
    %v1062 = vsel %vm543, %v1058, 0.0
    %1063 = vadd.xlane.f32.xlu0 %v1062
    %v1064 = vpop.xlane.xlu0 %1063
    %v1065 = vpack.c.bf16 %v1058, %v1056
    %v1067 = vsel %vm543, %v1065, 0
    %1069 = vmatprep.subr.bf16.mxu0 0
    %1070 = vmatpush1.bf16.msra.mxu0 0
    %1071 = vmatprep.subr.bf16.mxu0 0
    %1072 = vmatpush1.bf16.msra.mxu0 0
    %1073 = vmatprep.subr.bf16.mxu0 0
    %1074 = vmatpush1.bf16.msra.mxu0 0
    %1075 = vmatprep.subr.bf16.mxu0 0
    %1076 = vmatpush1.bf16.msra.mxu0 0
    %1077 = vmatprep.subr.bf16.mxu0 0
    %1078 = vmatpush1.bf16.msra.mxu0 0
    %1079 = vmatprep.subr.bf16.mxu0 0
    %1080 = vmatpush1.bf16.msra.mxu0 0
    %1081 = vmatprep.subr.bf16.mxu0 0
    %1082 = vmatpush1.bf16.msra.mxu0 0
    %1083 = vmatprep.subr.bf16.mxu0 0
    %1084 = vmatpush1.bf16.msra.mxu0 %v494
    %1085 = vmatprep.subr.bf16.mxu0 0
    %1086 = vmatpush2.bf16.msra.mxu0 0
    %1087 = vmatprep.subr.bf16.mxu0 0
    %1088 = vmatpush2.bf16.msra.mxu0 0
    %1089 = vmatprep.subr.bf16.mxu0 0
    %1090 = vmatpush2.bf16.msra.mxu0 0
    %1091 = vmatprep.subr.bf16.mxu0 0
    %1092 = vmatpush2.bf16.msra.mxu0 0
    %1093 = vmatprep.subr.bf16.mxu0 0
    %1094 = vmatpush2.bf16.msra.mxu0 0
    %1095 = vmatprep.subr.bf16.mxu0 0
    %1096 = vmatpush2.bf16.msra.mxu0 0
    %1097 = vmatprep.subr.bf16.mxu0 0
    %1098 = vmatpush2.bf16.msra.mxu0 0
    %1099 = vmatprep.subr.bf16.mxu0 0
    %1100 = vmatpush2.bf16.msra.mxu0 0
    %1101 = vmatprep.mubr.bf16.mxu0 0
    %1102 = vmatmul.mubr.bf16.gmra.mxu0 %v1067
    %v1103 = vpop.f32.mrf.mxu0
    %v1104 = vadd.f32 0.0, %v1103
    %v1105 = vpop.f32.mrf.mxu0
    %v1106 = vpop.f32.mrf.mxu0
    %v1107 = vadd.f32 0.0, %v1106
    %v1108 = vpop.f32.mrf.mxu0
    %1109 = vdwg.mxu0
    %v1110 = vrcp.pop %v1061
    %v1111 = vrcp.pop %v1064
    %v1112 = vmul.f32 %v1104, %v1110
    %v1113 = vmul.f32 %v1107, %v1111
    %v1114 = vpack.c.bf16 %v1113, %v1112
    %1116 = vrot.lane.b32.xlu0 %v492, 96
    %v1117 = vpop.permute.xlu0 %1116
    %1119 = vrot.lane.b32.xlu0 %v493, 96
    %v1120 = vpop.permute.xlu0 %1119
    %v1122 = vsel %vm495, %v1117, 0
    %v1125 = vsel %vm495, %v1120, 0
    %1127 = vmatprep.subr.bf16.mxu0 0
    %1128 = vmatpush1.bf16.xpose.msra.mxu0 0
    %1129 = vmatprep.subr.bf16.mxu0 0
    %1130 = vmatpush1.bf16.xpose.msra.mxu0 0
    %1131 = vmatprep.subr.bf16.mxu0 0
    %1132 = vmatpush1.bf16.xpose.msra.mxu0 0
    %1133 = vmatprep.subr.bf16.mxu0 0
    %1134 = vmatpush1.bf16.xpose.msra.mxu0 0
    %1135 = vmatprep.subr.bf16.mxu0 0
    %1136 = vmatpush1.bf16.xpose.msra.mxu0 0
    %1137 = vmatprep.subr.bf16.mxu0 0
    %1138 = vmatpush1.bf16.xpose.msra.mxu0 0
    %1139 = vmatprep.subr.bf16.mxu0 0
    %1140 = vmatpush1.bf16.xpose.msra.mxu0 0
    %1141 = vmatprep.subr.bf16.mxu0 0
    %1142 = vmatpush1.bf16.xpose.msra.mxu0 %v1125
    %1143 = vmatprep.subr.bf16.mxu0 0
    %1144 = vmatpush2.bf16.xpose.msra.mxu0 0
    %1145 = vmatprep.subr.bf16.mxu0 0
    %1146 = vmatpush2.bf16.xpose.msra.mxu0 0
    %1147 = vmatprep.subr.bf16.mxu0 0
    %1148 = vmatpush2.bf16.xpose.msra.mxu0 0
    %1149 = vmatprep.subr.bf16.mxu0 0
    %1150 = vmatpush2.bf16.xpose.msra.mxu0 0
    %1151 = vmatprep.subr.bf16.mxu0 0
    %1152 = vmatpush2.bf16.xpose.msra.mxu0 0
    %1153 = vmatprep.subr.bf16.mxu0 0
    %1154 = vmatpush2.bf16.xpose.msra.mxu0 0
    %1155 = vmatprep.subr.bf16.mxu0 0
    %1156 = vmatpush2.bf16.xpose.msra.mxu0 0
    %1157 = vmatprep.subr.bf16.mxu0 0
    %1158 = vmatpush2.bf16.xpose.msra.mxu0 0
    %1159 = vmatprep.mubr.bf16.mxu0 0
    %1160 = vmatmul.mubr.bf16.gmra.mxu0 %v1122
    %v1161 = vpop.f32.mrf.mxu0
    %v1162 = vadd.f32 0.0, %v1161
    %v1163 = vpop.f32.mrf.mxu0
    %v1164 = vpop.f32.mrf.mxu0
    %v1165 = vadd.f32 0.0, %v1164
    %v1166 = vpop.f32.mrf.mxu0
    %1167 = vdwg.mxu0
    %v1168 = vsel %vm543, %v1162, -inf
    %1169 = vmax.xlane.f32.xlu0 %v1168
    %v1170 = vpop.xlane.xlu0 %1169
    %v1171 = vsel %vm543, %v1165, -inf
    %1172 = vmax.xlane.f32.xlu0 %v1171
    %v1173 = vpop.xlane.xlu0 %1172
    %v1174 = vsub.f32 %v1162, %v1170
    %v1175 = vsub.f32 %v1165, %v1173
    %v1176 = vmul.f32 %v1174, 1.442695
    %v1177 = vpow.pop %v1176
    %v1178 = vmul.f32 %v1175, 1.442695
    %v1179 = vpow.pop %v1178
    %v1180 = vsel %vm543, %v1177, 0.0
    %1181 = vadd.xlane.f32.xlu0 %v1180
    %v1182 = vpop.xlane.xlu0 %1181
    %v1183 = vsel %vm543, %v1179, 0.0
    %1184 = vadd.xlane.f32.xlu0 %v1183
    %v1185 = vpop.xlane.xlu0 %1184
    %v1186 = vpack.c.bf16 %v1179, %v1177
    %1188 = vrot.lane.b32.xlu0 %v494, 96
    %v1189 = vpop.permute.xlu0 %1188
    %v1192 = vsel %vm543, %v1186, 0
    %1194 = vmatprep.subr.bf16.mxu0 0
    %1195 = vmatpush1.bf16.msra.mxu0 0
    %1196 = vmatprep.subr.bf16.mxu0 0
    %1197 = vmatpush1.bf16.msra.mxu0 0
    %1198 = vmatprep.subr.bf16.mxu0 0
    %1199 = vmatpush1.bf16.msra.mxu0 0
    %1200 = vmatprep.subr.bf16.mxu0 0
    %1201 = vmatpush1.bf16.msra.mxu0 0
    %1202 = vmatprep.subr.bf16.mxu0 0
    %1203 = vmatpush1.bf16.msra.mxu0 0
    %1204 = vmatprep.subr.bf16.mxu0 0
    %1205 = vmatpush1.bf16.msra.mxu0 0
    %1206 = vmatprep.subr.bf16.mxu0 0
    %1207 = vmatpush1.bf16.msra.mxu0 0
    %1208 = vmatprep.subr.bf16.mxu0 0
    %1209 = vmatpush1.bf16.msra.mxu0 %v1189
    %1210 = vmatprep.subr.bf16.mxu0 0
    %1211 = vmatpush2.bf16.msra.mxu0 0
    %1212 = vmatprep.subr.bf16.mxu0 0
    %1213 = vmatpush2.bf16.msra.mxu0 0
    %1214 = vmatprep.subr.bf16.mxu0 0
    %1215 = vmatpush2.bf16.msra.mxu0 0
    %1216 = vmatprep.subr.bf16.mxu0 0
    %1217 = vmatpush2.bf16.msra.mxu0 0
    %1218 = vmatprep.subr.bf16.mxu0 0
    %1219 = vmatpush2.bf16.msra.mxu0 0
    %1220 = vmatprep.subr.bf16.mxu0 0
    %1221 = vmatpush2.bf16.msra.mxu0 0
    %1222 = vmatprep.subr.bf16.mxu0 0
    %1223 = vmatpush2.bf16.msra.mxu0 0
    %1224 = vmatprep.subr.bf16.mxu0 0
    %1225 = vmatpush2.bf16.msra.mxu0 0
    %1226 = vmatprep.mubr.bf16.mxu0 0
    %1227 = vmatmul.mubr.bf16.gmra.mxu0 %v1192
    %v1228 = vpop.f32.mrf.mxu0
    %v1229 = vadd.f32 0.0, %v1228
    %v1230 = vpop.f32.mrf.mxu0
    %v1231 = vpop.f32.mrf.mxu0
    %v1232 = vadd.f32 0.0, %v1231
    %v1233 = vpop.f32.mrf.mxu0
    %1234 = vdwg.mxu0
    %v1235 = vrcp.pop %v1182
    %v1236 = vrcp.pop %v1185
    %v1237 = vmul.f32 %v1229, %v1235
    %v1238 = vmul.f32 %v1232, %v1236
    %v1239 = vpack.c.bf16 %v1238, %v1237
    %1240 = vrot.lane.b32.xlu0 %v492, 64
    %v1241 = vpop.permute.xlu0 %1240
    %1242 = vrot.lane.b32.xlu0 %v493, 64
    %v1243 = vpop.permute.xlu0 %1242
    %v1245 = vsel %vm495, %v1241, 0
    %v1248 = vsel %vm495, %v1243, 0
    %1250 = vmatprep.subr.bf16.mxu0 0
    %1251 = vmatpush1.bf16.xpose.msra.mxu0 0
    %1252 = vmatprep.subr.bf16.mxu0 0
    %1253 = vmatpush1.bf16.xpose.msra.mxu0 0
    %1254 = vmatprep.subr.bf16.mxu0 0
    %1255 = vmatpush1.bf16.xpose.msra.mxu0 0
    %1256 = vmatprep.subr.bf16.mxu0 0
    %1257 = vmatpush1.bf16.xpose.msra.mxu0 0
    %1258 = vmatprep.subr.bf16.mxu0 0
    %1259 = vmatpush1.bf16.xpose.msra.mxu0 0
    %1260 = vmatprep.subr.bf16.mxu0 0
    %1261 = vmatpush1.bf16.xpose.msra.mxu0 0
    %1262 = vmatprep.subr.bf16.mxu0 0
    %1263 = vmatpush1.bf16.xpose.msra.mxu0 0
    %1264 = vmatprep.subr.bf16.mxu0 0
    %1265 = vmatpush1.bf16.xpose.msra.mxu0 %v1248
    %1266 = vmatprep.subr.bf16.mxu0 0
    %1267 = vmatpush2.bf16.xpose.msra.mxu0 0
    %1268 = vmatprep.subr.bf16.mxu0 0
    %1269 = vmatpush2.bf16.xpose.msra.mxu0 0
    %1270 = vmatprep.subr.bf16.mxu0 0
    %1271 = vmatpush2.bf16.xpose.msra.mxu0 0
    %1272 = vmatprep.subr.bf16.mxu0 0
    %1273 = vmatpush2.bf16.xpose.msra.mxu0 0
    %1274 = vmatprep.subr.bf16.mxu0 0
    %1275 = vmatpush2.bf16.xpose.msra.mxu0 0
    %1276 = vmatprep.subr.bf16.mxu0 0
    %1277 = vmatpush2.bf16.xpose.msra.mxu0 0
    %1278 = vmatprep.subr.bf16.mxu0 0
    %1279 = vmatpush2.bf16.xpose.msra.mxu0 0
    %1280 = vmatprep.subr.bf16.mxu0 0
    %1281 = vmatpush2.bf16.xpose.msra.mxu0 0
    %1282 = vmatprep.mubr.bf16.mxu0 0
    %1283 = vmatmul.mubr.bf16.gmra.mxu0 %v1245
    %v1284 = vpop.f32.mrf.mxu0
    %v1285 = vadd.f32 0.0, %v1284
    %v1286 = vpop.f32.mrf.mxu0
    %v1287 = vpop.f32.mrf.mxu0
    %v1288 = vadd.f32 0.0, %v1287
    %v1289 = vpop.f32.mrf.mxu0
    %1290 = vdwg.mxu0
    %v1291 = vsel %vm543, %v1285, -inf
    %1292 = vmax.xlane.f32.xlu0 %v1291
    %v1293 = vpop.xlane.xlu0 %1292
    %v1294 = vsel %vm543, %v1288, -inf
    %1295 = vmax.xlane.f32.xlu0 %v1294
    %v1296 = vpop.xlane.xlu0 %1295
    %v1297 = vsub.f32 %v1285, %v1293
    %v1298 = vsub.f32 %v1288, %v1296
    %v1299 = vmul.f32 %v1297, 1.442695
    %v1300 = vpow.pop %v1299
    %v1301 = vmul.f32 %v1298, 1.442695
    %v1302 = vpow.pop %v1301
    %v1303 = vsel %vm543, %v1300, 0.0
    %1304 = vadd.xlane.f32.xlu0 %v1303
    %v1305 = vpop.xlane.xlu0 %1304
    %v1306 = vsel %vm543, %v1302, 0.0
    %1307 = vadd.xlane.f32.xlu0 %v1306
    %v1308 = vpop.xlane.xlu0 %1307
    %v1309 = vpack.c.bf16 %v1302, %v1300
    %1310 = vrot.lane.b32.xlu0 %v494, 64
    %v1311 = vpop.permute.xlu0 %1310
    %v1314 = vsel %vm543, %v1309, 0
    %1316 = vmatprep.subr.bf16.mxu0 0
    %1317 = vmatpush1.bf16.msra.mxu0 0
    %1318 = vmatprep.subr.bf16.mxu0 0
    %1319 = vmatpush1.bf16.msra.mxu0 0
    %1320 = vmatprep.subr.bf16.mxu0 0
    %1321 = vmatpush1.bf16.msra.mxu0 0
    %1322 = vmatprep.subr.bf16.mxu0 0
    %1323 = vmatpush1.bf16.msra.mxu0 0
    %1324 = vmatprep.subr.bf16.mxu0 0
    %1325 = vmatpush1.bf16.msra.mxu0 0
    %1326 = vmatprep.subr.bf16.mxu0 0
    %1327 = vmatpush1.bf16.msra.mxu0 0
    %1328 = vmatprep.subr.bf16.mxu0 0
    %1329 = vmatpush1.bf16.msra.mxu0 0
    %1330 = vmatprep.subr.bf16.mxu0 0
    %1331 = vmatpush1.bf16.msra.mxu0 %v1311
    %1332 = vmatprep.subr.bf16.mxu0 0
    %1333 = vmatpush2.bf16.msra.mxu0 0
    %1334 = vmatprep.subr.bf16.mxu0 0
    %1335 = vmatpush2.bf16.msra.mxu0 0
    %1336 = vmatprep.subr.bf16.mxu0 0
    %1337 = vmatpush2.bf16.msra.mxu0 0
    %1338 = vmatprep.subr.bf16.mxu0 0
    %1339 = vmatpush2.bf16.msra.mxu0 0
    %1340 = vmatprep.subr.bf16.mxu0 0
    %1341 = vmatpush2.bf16.msra.mxu0 0
    %1342 = vmatprep.subr.bf16.mxu0 0
    %1343 = vmatpush2.bf16.msra.mxu0 0
    %1344 = vmatprep.subr.bf16.mxu0 0
    %1345 = vmatpush2.bf16.msra.mxu0 0
    %1346 = vmatprep.subr.bf16.mxu0 0
    %1347 = vmatpush2.bf16.msra.mxu0 0
    %1348 = vmatprep.mubr.bf16.mxu0 0
    %1349 = vmatmul.mubr.bf16.gmra.mxu0 %v1314
    %v1350 = vpop.f32.mrf.mxu0
    %v1351 = vadd.f32 0.0, %v1350
    %v1352 = vpop.f32.mrf.mxu0
    %v1353 = vpop.f32.mrf.mxu0
    %v1354 = vadd.f32 0.0, %v1353
    %v1355 = vpop.f32.mrf.mxu0
    %1356 = vdwg.mxu0
    %v1357 = vrcp.pop %v1305
    %v1358 = vrcp.pop %v1308
    %v1359 = vmul.f32 %v1351, %v1357
    %v1360 = vmul.f32 %v1354, %v1358
    %v1361 = vpack.c.bf16 %v1360, %v1359
    %1362 = vrot.lane.b32.xlu0 %v492, 32
    %v1363 = vpop.permute.xlu0 %1362
    %1364 = vrot.lane.b32.xlu0 %v493, 32
    %v1365 = vpop.permute.xlu0 %1364
    %v1367 = vsel %vm495, %v1363, 0
    %v1370 = vsel %vm495, %v1365, 0
    %1372 = vmatprep.subr.bf16.mxu0 0
    %1373 = vmatpush1.bf16.xpose.msra.mxu0 0
    %1374 = vmatprep.subr.bf16.mxu0 0
    %1375 = vmatpush1.bf16.xpose.msra.mxu0 0
    %1376 = vmatprep.subr.bf16.mxu0 0
    %1377 = vmatpush1.bf16.xpose.msra.mxu0 0
    %1378 = vmatprep.subr.bf16.mxu0 0
    %1379 = vmatpush1.bf16.xpose.msra.mxu0 0
    %1380 = vmatprep.subr.bf16.mxu0 0
    %1381 = vmatpush1.bf16.xpose.msra.mxu0 0
    %1382 = vmatprep.subr.bf16.mxu0 0
    %1383 = vmatpush1.bf16.xpose.msra.mxu0 0
    %1384 = vmatprep.subr.bf16.mxu0 0
    %1385 = vmatpush1.bf16.xpose.msra.mxu0 0
    %1386 = vmatprep.subr.bf16.mxu0 0
    %1387 = vmatpush1.bf16.xpose.msra.mxu0 %v1370
    %1388 = vmatprep.subr.bf16.mxu0 0
    %1389 = vmatpush2.bf16.xpose.msra.mxu0 0
    %1390 = vmatprep.subr.bf16.mxu0 0
    %1391 = vmatpush2.bf16.xpose.msra.mxu0 0
    %1392 = vmatprep.subr.bf16.mxu0 0
    %1393 = vmatpush2.bf16.xpose.msra.mxu0 0
    %1394 = vmatprep.subr.bf16.mxu0 0
    %1395 = vmatpush2.bf16.xpose.msra.mxu0 0
    %1396 = vmatprep.subr.bf16.mxu0 0
    %1397 = vmatpush2.bf16.xpose.msra.mxu0 0
    %1398 = vmatprep.subr.bf16.mxu0 0
    %1399 = vmatpush2.bf16.xpose.msra.mxu0 0
    %1400 = vmatprep.subr.bf16.mxu0 0
    %1401 = vmatpush2.bf16.xpose.msra.mxu0 0
    %1402 = vmatprep.subr.bf16.mxu0 0
    %1403 = vmatpush2.bf16.xpose.msra.mxu0 0
    %1404 = vmatprep.mubr.bf16.mxu0 0
    %1405 = vmatmul.mubr.bf16.gmra.mxu0 %v1367
    %v1406 = vpop.f32.mrf.mxu0
    %v1407 = vadd.f32 0.0, %v1406
    %v1408 = vpop.f32.mrf.mxu0
    %v1409 = vpop.f32.mrf.mxu0
    %v1410 = vadd.f32 0.0, %v1409
    %v1411 = vpop.f32.mrf.mxu0
    %1412 = vdwg.mxu0
    %v1413 = vsel %vm543, %v1407, -inf
    %1414 = vmax.xlane.f32.xlu0 %v1413
    %v1415 = vpop.xlane.xlu0 %1414
    %v1416 = vsel %vm543, %v1410, -inf
    %1417 = vmax.xlane.f32.xlu0 %v1416
    %v1418 = vpop.xlane.xlu0 %1417
    %v1419 = vsub.f32 %v1407, %v1415
    %v1420 = vsub.f32 %v1410, %v1418
    %v1421 = vmul.f32 %v1419, 1.442695
    %v1422 = vpow.pop %v1421
    %v1423 = vmul.f32 %v1420, 1.442695
    %v1424 = vpow.pop %v1423
    %v1425 = vsel %vm543, %v1422, 0.0
    %1426 = vadd.xlane.f32.xlu0 %v1425
    %v1427 = vpop.xlane.xlu0 %1426
    %v1428 = vsel %vm543, %v1424, 0.0
    %1429 = vadd.xlane.f32.xlu0 %v1428
    %v1430 = vpop.xlane.xlu0 %1429
    %v1431 = vpack.c.bf16 %v1424, %v1422
    %1432 = vrot.lane.b32.xlu0 %v494, 32
    %v1433 = vpop.permute.xlu0 %1432
    %v1436 = vsel %vm543, %v1431, 0
    %1438 = vmatprep.subr.bf16.mxu0 0
    %1439 = vmatpush1.bf16.msra.mxu0 0
    %1440 = vmatprep.subr.bf16.mxu0 0
    %1441 = vmatpush1.bf16.msra.mxu0 0
    %1442 = vmatprep.subr.bf16.mxu0 0
    %1443 = vmatpush1.bf16.msra.mxu0 0
    %1444 = vmatprep.subr.bf16.mxu0 0
    %1445 = vmatpush1.bf16.msra.mxu0 0
    %1446 = vmatprep.subr.bf16.mxu0 0
    %1447 = vmatpush1.bf16.msra.mxu0 0
    %1448 = vmatprep.subr.bf16.mxu0 0
    %1449 = vmatpush1.bf16.msra.mxu0 0
    %1450 = vmatprep.subr.bf16.mxu0 0
    %1451 = vmatpush1.bf16.msra.mxu0 0
    %1452 = vmatprep.subr.bf16.mxu0 0
    %1453 = vmatpush1.bf16.msra.mxu0 %v1433
    %1454 = vmatprep.subr.bf16.mxu0 0
    %1455 = vmatpush2.bf16.msra.mxu0 0
    %1456 = vmatprep.subr.bf16.mxu0 0
    %1457 = vmatpush2.bf16.msra.mxu0 0
    %1458 = vmatprep.subr.bf16.mxu0 0
    %1459 = vmatpush2.bf16.msra.mxu0 0
    %1460 = vmatprep.subr.bf16.mxu0 0
    %1461 = vmatpush2.bf16.msra.mxu0 0
    %1462 = vmatprep.subr.bf16.mxu0 0
    %1463 = vmatpush2.bf16.msra.mxu0 0
    %1464 = vmatprep.subr.bf16.mxu0 0
    %1465 = vmatpush2.bf16.msra.mxu0 0
    %1466 = vmatprep.subr.bf16.mxu0 0
    %1467 = vmatpush2.bf16.msra.mxu0 0
    %1468 = vmatprep.subr.bf16.mxu0 0
    %1469 = vmatpush2.bf16.msra.mxu0 0
    %1470 = vmatprep.mubr.bf16.mxu0 0
    %1471 = vmatmul.mubr.bf16.gmra.mxu0 %v1436
    %v1472 = vpop.f32.mrf.mxu0
    %v1473 = vadd.f32 0.0, %v1472
    %v1474 = vpop.f32.mrf.mxu0
    %v1475 = vpop.f32.mrf.mxu0
    %v1476 = vadd.f32 0.0, %v1475
    %v1477 = vpop.f32.mrf.mxu0
    %1478 = vdwg.mxu0
    %v1479 = vrcp.pop %v1427
    %v1480 = vrcp.pop %v1430
    %v1481 = vmul.f32 %v1473, %v1479
    %v1482 = vmul.f32 %v1476, %v1480
    %v1483 = vpack.c.bf16 %v1482, %v1481
    %1485 = vrot.lane.b32.xlu0 %v1239, 32
    %v1486 = vpop.permute.xlu0 %1485
    %1488 = vrot.lane.b32.xlu0 %v1361, 64
    %v1489 = vpop.permute.xlu0 %1488
    %1491 = vrot.lane.b32.xlu0 %v1483, 96
    %v1492 = vpop.permute.xlu0 %1491
    %v1495 = vsel %vm495, %v1114, %v1486
    %v1497 = vsel %vm993, %v1495, %v1489
    %v1499 = vsel %vm996, %v1497, %v1492
    %v1501 = vld [vmem:[#allocation10] sm:$0xf]
    %v1502 = vld [vmem:[#allocation10 + $0x4] sm:$0xf]
    %v1503 = vld [vmem:[#allocation10 + $0x8] sm:$0xf]
    %v1504 = vld [vmem:[#allocation10 + $0xc] sm:$0xf]
    %v1505 = vld [vmem:[#allocation10 + $0x10] sm:$0xf]
    %v1506 = vld [vmem:[#allocation10 + $0x14] sm:$0xf]
    %v1507 = vld [vmem:[#allocation10 + $0x18] sm:$0xf]
    %v1508 = vld [vmem:[#allocation10 + $0x1c] sm:$0xf]
    %v1509 = vld [vmem:[#allocation10 + $0x20] sm:$0xf]
    %v1510 = vld [vmem:[#allocation10 + $0x24] sm:$0xf]
    %v1511 = vld [vmem:[#allocation10 + $0x28] sm:$0xf]
    %v1512 = vld [vmem:[#allocation10 + $0x2c] sm:$0xf]
    %v1513 = vld [vmem:[#allocation10 + $0x30] sm:$0xf]
    %v1514 = vld [vmem:[#allocation10 + $0x34] sm:$0xf]
    %v1515 = vld [vmem:[#allocation10 + $0x38] sm:$0xf]
    %v1516 = vld [vmem:[#allocation10 + $0x3c] sm:$0xf]
    %v1517 = vld [vmem:[%s6] sm:$0x1]
    %v1519 = vlaneseq
    %v1520 = vshrl.u32 %v1519, 7
    %v1521 = vsub.s32 0, %v1520
    %v1522 = vrot.slane %v1517, %v1521
    %v1540 = vunpack.c.l.b16 %v1501
    %v1541 = vunpack.c.l.b16 %v1502
    %v1542 = vunpack.c.l.b16 %v1503
    %v1543 = vunpack.c.l.b16 %v1504
    %v1544 = vunpack.c.l.b16 %v1505
    %v1545 = vunpack.c.l.b16 %v1506
    %v1546 = vunpack.c.l.b16 %v1507
    %v1547 = vunpack.c.l.b16 %v1508
    %v1548 = vunpack.c.l.b16 %v1509
    %v1549 = vunpack.c.l.b16 %v1510
    %v1550 = vunpack.c.l.b16 %v1511
    %v1551 = vunpack.c.l.b16 %v1512
    %v1552 = vunpack.c.l.b16 %v1513
    %v1553 = vunpack.c.l.b16 %v1514
    %v1554 = vunpack.c.l.b16 %v1515
    %v1555 = vunpack.c.l.b16 %v1516
    %v1556 = vpack.c.b16 %v1541, %v1540
    %v1557 = vpack.c.b16 %v1543, %v1542
    %v1558 = vpack.c.b16 %v1545, %v1544
    %v1559 = vpack.c.b16 %v1547, %v1546
    %v1560 = vpack.c.b16 %v1549, %v1548
    %v1561 = vpack.c.b16 %v1551, %v1550
    %v1562 = vpack.c.b16 %v1553, %v1552
    %v1563 = vpack.c.b16 %v1555, %v1554
    %1572 = vmatprep.subr.bf16.mxu0 0
    %1573 = vmatpush1.bf16.msra.mxu0 %v1563
    %1574 = vmatprep.subr.bf16.mxu0 0
    %1575 = vmatpush1.bf16.msra.mxu0 %v1562
    %1576 = vmatprep.subr.bf16.mxu0 0
    %1577 = vmatpush1.bf16.msra.mxu0 %v1561
    %1578 = vmatprep.subr.bf16.mxu0 0
    %1579 = vmatpush1.bf16.msra.mxu0 %v1560
    %1580 = vmatprep.subr.bf16.mxu0 0
    %1581 = vmatpush1.bf16.msra.mxu0 %v1559
    %1582 = vmatprep.subr.bf16.mxu0 0
    %1583 = vmatpush1.bf16.msra.mxu0 %v1558
    %1584 = vmatprep.subr.bf16.mxu0 0
    %1585 = vmatpush1.bf16.msra.mxu0 %v1557
    %1586 = vmatprep.subr.bf16.mxu0 0
    %1587 = vmatpush1.bf16.msra.mxu0 %v1556
    %1588 = vmatprep.subr.bf16.mxu0 0
    %1589 = vmatpush2.bf16.msra.mxu0 0
    %1590 = vmatprep.subr.bf16.mxu0 0
    %1591 = vmatpush2.bf16.msra.mxu0 0
    %1592 = vmatprep.subr.bf16.mxu0 0
    %1593 = vmatpush2.bf16.msra.mxu0 0
    %1594 = vmatprep.subr.bf16.mxu0 0
    %1595 = vmatpush2.bf16.msra.mxu0 0
    %1596 = vmatprep.subr.bf16.mxu0 0
    %1597 = vmatpush2.bf16.msra.mxu0 0
    %1598 = vmatprep.subr.bf16.mxu0 0
    %1599 = vmatpush2.bf16.msra.mxu0 0
    %1600 = vmatprep.subr.bf16.mxu0 0
    %1601 = vmatpush2.bf16.msra.mxu0 0
    %1602 = vmatprep.subr.bf16.mxu0 0
    %1603 = vmatpush2.bf16.msra.mxu0 0
    %1604 = vmatprep.mubr.bf16.mxu0 0
    %1605 = vmatmul.mubr.bf16.gmra.mxu0 %v998
    %v1606 = vpop.f32.mrf.mxu0
    %v1607 = vadd.f32 %v1522, %v1606
    %v1608 = vpop.f32.mrf.mxu0
    %v1609 = vpop.f32.mrf.mxu0
    %v1610 = vadd.f32 %v1522, %v1609
    %v1611 = vpop.f32.mrf.mxu0
    %1612 = vmatprep.mubr.bf16.mxu0 0
    %1613 = vmatmul.mubr.bf16.gmra.mxu0 %v1499
    %v1614 = vpop.f32.mrf.mxu0
    %v1615 = vadd.f32 %v1522, %v1614
    %v1616 = vpop.f32.mrf.mxu0
    %v1617 = vpop.f32.mrf.mxu0
    %v1618 = vadd.f32 %v1522, %v1617
    %v1619 = vpop.f32.mrf.mxu0
    %1620 = vdwg.mxu0
    %v1621 = vadd.f32 %v137, %v1607
    %v1622 = vadd.f32 %v138, %v1610
    %v1623 = vadd.f32 %v139, %v1615
    %v1624 = vadd.f32 %v140, %v1618
    %v1625 = vld [vmem:[%s7] sm:$0x1]
    %v1626 = vld [vmem:[%s8] sm:$0x1]
    %1627 = vadd.xlane.f32.xlu0 %v1621
    %v1628 = vpop.xlane.xlu0 %1627
    %1629 = vadd.xlane.f32.xlu0 %v1622
    %v1630 = vpop.xlane.xlu0 %1629
    %1631 = vadd.xlane.f32.xlu0 %v1623
    %v1632 = vpop.xlane.xlu0 %1631
    %1633 = vadd.xlane.f32.xlu0 %v1624
    %v1634 = vpop.xlane.xlu0 %1633
    %v1635 = vmul.f32 %v1628, %v151
    %v1636 = vmul.f32 %v1630, %v151
    %v1637 = vmul.f32 %v1632, %v151
    %v1638 = vmul.f32 %v1634, %v151
    %v1639 = vsub.f32 %v1621, %v1635
    %v1640 = vsub.f32 %v1622, %v1636
    %v1641 = vsub.f32 %v1623, %v1637
    %v1642 = vsub.f32 %v1624, %v1638
    %v1643 = vmul.f32 %v1639, %v1639
    %v1644 = vmul.f32 %v1640, %v1640
    %v1645 = vmul.f32 %v1641, %v1641
    %v1646 = vmul.f32 %v1642, %v1642
    %1647 = vadd.xlane.f32.xlu0 %v1643
    %v1648 = vpop.xlane.xlu0 %1647
    %1649 = vadd.xlane.f32.xlu0 %v1644
    %v1650 = vpop.xlane.xlu0 %1649
    %1651 = vadd.xlane.f32.xlu0 %v1645
    %v1652 = vpop.xlane.xlu0 %1651
    %1653 = vadd.xlane.f32.xlu0 %v1646
    %v1654 = vpop.xlane.xlu0 %1653
    %v1655 = vmul.f32 %v1648, %v151
    %v1656 = vmul.f32 %v1650, %v151
    %v1657 = vmul.f32 %v1652, %v151
    %v1658 = vmul.f32 %v1654, %v151
    %v1659 = vadd.f32 %v1655, 1e-05
    %v1660 = vadd.f32 %v1656, 1e-05
    %v1661 = vadd.f32 %v1657, 1e-05
    %v1662 = vadd.f32 %v1658, 1e-05
    %v1663 = vrsqrt.pop %v1659
    %v1664 = vrsqrt.pop %v1660
    %v1665 = vrsqrt.pop %v1661
    %v1666 = vrsqrt.pop %v1662
    %v1667 = vmul.f32 %v1639, %v1663
    %v1668 = vmul.f32 %v1640, %v1664
    %v1669 = vmul.f32 %v1641, %v1665
    %v1670 = vmul.f32 %v1642, %v1666
    %v1672 = vlaneseq
    %v1673 = vshrl.u32 %v1672, 7
    %v1674 = vsub.s32 0, %v1673
    %v1675 = vrot.slane %v1625, %v1674
    %v1677 = vmul.f32 %v1667, %v1675
    %v1678 = vmul.f32 %v1668, %v1675
    %v1679 = vmul.f32 %v1669, %v1675
    %v1680 = vmul.f32 %v1670, %v1675
    %v1682 = vlaneseq
    %v1683 = vshrl.u32 %v1682, 7
    %v1684 = vsub.s32 0, %v1683
    %v1685 = vrot.slane %v1626, %v1684
    %v1687 = vadd.f32 %v1677, %v1685
    %v1688 = vadd.f32 %v1678, %v1685
    %v1689 = vadd.f32 %v1679, %v1685
    %v1690 = vadd.f32 %v1680, %v1685
    %v1691 = vpack.c.bf16 %v1688, %v1687
    %v1692 = vpack.c.bf16 %v1690, %v1689
    %v1693 = vld [vmem:[#allocation11] sm:$0xff]
    %v1694 = vld [vmem:[#allocation11 + $0x8] sm:$0xff]
    %v1695 = vld [vmem:[#allocation11 + $0x10] sm:$0xff]
    %v1696 = vld [vmem:[#allocation11 + $0x18] sm:$0xff]
    %v1697 = vld [vmem:[#allocation11 + $0x20] sm:$0xff]
    %v1698 = vld [vmem:[#allocation11 + $0x28] sm:$0xff]
    %v1699 = vld [vmem:[#allocation11 + $0x30] sm:$0xff]
    %v1700 = vld [vmem:[#allocation11 + $0x38] sm:$0xff]
    %v1701 = vld [vmem:[#allocation11 + $0x40] sm:$0xff]
    %v1702 = vld [vmem:[#allocation11 + $0x48] sm:$0xff]
    %v1703 = vld [vmem:[#allocation11 + $0x50] sm:$0xff]
    %v1704 = vld [vmem:[#allocation11 + $0x58] sm:$0xff]
    %v1705 = vld [vmem:[#allocation11 + $0x60] sm:$0xff]
    %v1706 = vld [vmem:[#allocation11 + $0x68] sm:$0xff]
    %v1707 = vld [vmem:[#allocation11 + $0x70] sm:$0xff]
    %v1708 = vld [vmem:[#allocation11 + $0x78] sm:$0xff]
    %v1709 = vld [vmem:[%s10] sm:$0x3]
    %v1711 = vlaneseq
    %v1712 = vshrl.u32 %v1711, 7
    %v1713 = vsub.s32 0, %v1712
    %v1714 = vrot.slane %v1709, %v1713
    %v1715 = vlaneseq
    %v1716 = vshrl.u32 %v1715, 7
    %v1717 = vsub.s32 1, %v1716
    %v1718 = vrot.slane %v1709, %v1717
    %v1737 = vunpack.c.l.b16 %v1693
    %v1738 = vunpack.c.h.b16 %v1693
    %v1739 = vunpack.c.l.b16 %v1694
    %v1740 = vunpack.c.h.b16 %v1694
    %v1741 = vunpack.c.l.b16 %v1695
    %v1742 = vunpack.c.h.b16 %v1695
    %v1743 = vunpack.c.l.b16 %v1696
    %v1744 = vunpack.c.h.b16 %v1696
    %v1745 = vunpack.c.l.b16 %v1697
    %v1746 = vunpack.c.h.b16 %v1697
    %v1747 = vunpack.c.l.b16 %v1698
    %v1748 = vunpack.c.h.b16 %v1698
    %v1749 = vunpack.c.l.b16 %v1699
    %v1750 = vunpack.c.h.b16 %v1699
    %v1751 = vunpack.c.l.b16 %v1700
    %v1752 = vunpack.c.h.b16 %v1700
    %v1753 = vunpack.c.l.b16 %v1701
    %v1754 = vunpack.c.h.b16 %v1701
    %v1755 = vunpack.c.l.b16 %v1702
    %v1756 = vunpack.c.h.b16 %v1702
    %v1757 = vunpack.c.l.b16 %v1703
    %v1758 = vunpack.c.h.b16 %v1703
    %v1759 = vunpack.c.l.b16 %v1704
    %v1760 = vunpack.c.h.b16 %v1704
    %v1761 = vunpack.c.l.b16 %v1705
    %v1762 = vunpack.c.h.b16 %v1705
    %v1763 = vunpack.c.l.b16 %v1706
    %v1764 = vunpack.c.h.b16 %v1706
    %v1765 = vunpack.c.l.b16 %v1707
    %v1766 = vunpack.c.h.b16 %v1707
    %v1767 = vunpack.c.l.b16 %v1708
    %v1768 = vunpack.c.h.b16 %v1708
    %v1769 = vpack.c.b16 %v1739, %v1737
    %v1770 = vpack.c.b16 %v1740, %v1738
    %v1771 = vpack.c.b16 %v1743, %v1741
    %v1772 = vpack.c.b16 %v1744, %v1742
    %v1773 = vpack.c.b16 %v1747, %v1745
    %v1774 = vpack.c.b16 %v1748, %v1746
    %v1775 = vpack.c.b16 %v1751, %v1749
    %v1776 = vpack.c.b16 %v1752, %v1750
    %v1777 = vpack.c.b16 %v1755, %v1753
    %v1778 = vpack.c.b16 %v1756, %v1754
    %v1779 = vpack.c.b16 %v1759, %v1757
    %v1780 = vpack.c.b16 %v1760, %v1758
    %v1781 = vpack.c.b16 %v1763, %v1761
    %v1782 = vpack.c.b16 %v1764, %v1762
    %v1783 = vpack.c.b16 %v1767, %v1765
    %v1784 = vpack.c.b16 %v1768, %v1766
    %1801 = vmatprep.subr.bf16.mxu0 %v1784
    %1802 = vmatpush1.bf16.msra.mxu0 %v1783
    %1803 = vmatprep.subr.bf16.mxu0 %v1782
    %1804 = vmatpush1.bf16.msra.mxu0 %v1781
    %1805 = vmatprep.subr.bf16.mxu0 %v1780
    %1806 = vmatpush1.bf16.msra.mxu0 %v1779
    %1807 = vmatprep.subr.bf16.mxu0 %v1778
    %1808 = vmatpush1.bf16.msra.mxu0 %v1777
    %1809 = vmatprep.subr.bf16.mxu0 %v1776
    %1810 = vmatpush1.bf16.msra.mxu0 %v1775
    %1811 = vmatprep.subr.bf16.mxu0 %v1774
    %1812 = vmatpush1.bf16.msra.mxu0 %v1773
    %1813 = vmatprep.subr.bf16.mxu0 %v1772
    %1814 = vmatpush1.bf16.msra.mxu0 %v1771
    %1815 = vmatprep.subr.bf16.mxu0 %v1770
    %1816 = vmatpush1.bf16.msra.mxu0 %v1769
    %1817 = vmatprep.subr.bf16.mxu0 0
    %1818 = vmatpush2.bf16.msra.mxu0 0
    %1819 = vmatprep.subr.bf16.mxu0 0
    %1820 = vmatpush2.bf16.msra.mxu0 0
    %1821 = vmatprep.subr.bf16.mxu0 0
    %1822 = vmatpush2.bf16.msra.mxu0 0
    %1823 = vmatprep.subr.bf16.mxu0 0
    %1824 = vmatpush2.bf16.msra.mxu0 0
    %1825 = vmatprep.subr.bf16.mxu0 0
    %1826 = vmatpush2.bf16.msra.mxu0 0
    %1827 = vmatprep.subr.bf16.mxu0 0
    %1828 = vmatpush2.bf16.msra.mxu0 0
    %1829 = vmatprep.subr.bf16.mxu0 0
    %1830 = vmatpush2.bf16.msra.mxu0 0
    %1831 = vmatprep.subr.bf16.mxu0 0
    %1832 = vmatpush2.bf16.msra.mxu0 0
    %1833 = vmatprep.mubr.bf16.mxu0 0
    %1834 = vmatmul.mubr.bf16.gmra.mxu0 %v1691
    %v1835 = vpop.f32.mrf.mxu0
    %v1836 = vadd.f32 %v1714, %v1835
    %v1837 = vpop.f32.mrf.mxu0
    %v1838 = vadd.f32 %v1718, %v1837
    %v1839 = vpop.f32.mrf.mxu0
    %v1840 = vadd.f32 %v1714, %v1839
    %v1841 = vpop.f32.mrf.mxu0
    %v1842 = vadd.f32 %v1718, %v1841
    %1843 = vmatprep.mubr.bf16.mxu0 0
    %1844 = vmatmul.mubr.bf16.gmra.mxu0 %v1692
    %v1845 = vpop.f32.mrf.mxu0
    %v1846 = vadd.f32 %v1714, %v1845
    %v1847 = vpop.f32.mrf.mxu0
    %v1848 = vadd.f32 %v1718, %v1847
    %v1849 = vpop.f32.mrf.mxu0
    %v1850 = vadd.f32 %v1714, %v1849
    %v1851 = vpop.f32.mrf.mxu0
    %v1852 = vadd.f32 %v1718, %v1851
    %1853 = vdwg.mxu0
    %v1854 = vmul.f32 %v1836, 0.5
    %v1855 = vmul.f32 %v1838, 0.5
    %v1856 = vmul.f32 %v1840, 0.5
    %v1857 = vmul.f32 %v1842, 0.5
    %v1858 = vmul.f32 %v1846, 0.5
    %v1859 = vmul.f32 %v1848, 0.5
    %v1860 = vmul.f32 %v1850, 0.5
    %v1861 = vmul.f32 %v1852, 0.5
    %v1862 = vmul.f32 %v1836, 0.70710677
    %v1863 = vmul.f32 %v1838, 0.70710677
    %v1864 = vmul.f32 %v1840, 0.70710677
    %v1865 = vmul.f32 %v1842, 0.70710677
    %v1866 = vmul.f32 %v1846, 0.70710677
    %v1867 = vmul.f32 %v1848, 0.70710677
    %v1868 = vmul.f32 %v1850, 0.70710677
    %v1869 = vmul.f32 %v1852, 0.70710677
    %v1870 = verf.f32.pop %v1862
    %v1871 = verf.f32.pop %v1863
    %v1872 = verf.f32.pop %v1864
    %v1873 = verf.f32.pop %v1865
    %v1874 = verf.f32.pop %v1866
    %v1875 = verf.f32.pop %v1867
    %v1876 = verf.f32.pop %v1868
    %v1877 = verf.f32.pop %v1869
    %v1878 = vadd.f32 %v1870, 1.0
    %v1879 = vadd.f32 %v1871, 1.0
    %v1880 = vadd.f32 %v1872, 1.0
    %v1881 = vadd.f32 %v1873, 1.0
    %v1882 = vadd.f32 %v1874, 1.0
    %v1883 = vadd.f32 %v1875, 1.0
    %v1884 = vadd.f32 %v1876, 1.0
    %v1885 = vadd.f32 %v1877, 1.0
    %v1886 = vmul.f32 %v1854, %v1878
    %v1887 = vmul.f32 %v1855, %v1879
    %v1888 = vmul.f32 %v1856, %v1880
    %v1889 = vmul.f32 %v1857, %v1881
    %v1890 = vmul.f32 %v1858, %v1882
    %v1891 = vmul.f32 %v1859, %v1883
    %v1892 = vmul.f32 %v1860, %v1884
    %v1893 = vmul.f32 %v1861, %v1885
    %v1894 = vpack.c.bf16 %v1888, %v1886
    %v1895 = vpack.c.bf16 %v1889, %v1887
    %v1896 = vpack.c.bf16 %v1892, %v1890
    %v1897 = vpack.c.bf16 %v1893, %v1891
    %v1898 = vld [vmem:[#allocation13] sm:$0xf]
    %v1899 = vld [vmem:[#allocation13 + $0x4] sm:$0xf]
    %v1900 = vld [vmem:[#allocation13 + $0x8] sm:$0xf]
    %v1901 = vld [vmem:[#allocation13 + $0xc] sm:$0xf]
    %v1902 = vld [vmem:[#allocation13 + $0x10] sm:$0xf]
    %v1903 = vld [vmem:[#allocation13 + $0x14] sm:$0xf]
    %v1904 = vld [vmem:[#allocation13 + $0x18] sm:$0xf]
    %v1905 = vld [vmem:[#allocation13 + $0x1c] sm:$0xf]
    %v1906 = vld [vmem:[#allocation13 + $0x20] sm:$0xf]
    %v1907 = vld [vmem:[#allocation13 + $0x24] sm:$0xf]
    %v1908 = vld [vmem:[#allocation13 + $0x28] sm:$0xf]
    %v1909 = vld [vmem:[#allocation13 + $0x2c] sm:$0xf]
    %v1910 = vld [vmem:[#allocation13 + $0x30] sm:$0xf]
    %v1911 = vld [vmem:[#allocation13 + $0x34] sm:$0xf]
    %v1912 = vld [vmem:[#allocation13 + $0x38] sm:$0xf]
    %v1913 = vld [vmem:[#allocation13 + $0x3c] sm:$0xf]
    %v1914 = vld [vmem:[#allocation13 + $0x40] sm:$0xf]
    %v1915 = vld [vmem:[#allocation13 + $0x44] sm:$0xf]
    %v1916 = vld [vmem:[#allocation13 + $0x48] sm:$0xf]
    %v1917 = vld [vmem:[#allocation13 + $0x4c] sm:$0xf]
    %v1918 = vld [vmem:[#allocation13 + $0x50] sm:$0xf]
    %v1919 = vld [vmem:[#allocation13 + $0x54] sm:$0xf]
    %v1920 = vld [vmem:[#allocation13 + $0x58] sm:$0xf]
    %v1921 = vld [vmem:[#allocation13 + $0x5c] sm:$0xf]
    %v1922 = vld [vmem:[#allocation13 + $0x60] sm:$0xf]
    %v1923 = vld [vmem:[#allocation13 + $0x64] sm:$0xf]
    %v1924 = vld [vmem:[#allocation13 + $0x68] sm:$0xf]
    %v1925 = vld [vmem:[#allocation13 + $0x6c] sm:$0xf]
    %v1926 = vld [vmem:[#allocation13 + $0x70] sm:$0xf]
    %v1927 = vld [vmem:[#allocation13 + $0x74] sm:$0xf]
    %v1928 = vld [vmem:[#allocation13 + $0x78] sm:$0xf]
    %v1929 = vld [vmem:[#allocation13 + $0x7c] sm:$0xf]
    %v1930 = vld [vmem:[%s12] sm:$0x1]
    %v1932 = vlaneseq
    %v1933 = vshrl.u32 %v1932, 7
    %v1934 = vsub.s32 0, %v1933
    %v1935 = vrot.slane %v1930, %v1934
    %v1969 = vunpack.c.l.b16 %v1898
    %v1970 = vunpack.c.l.b16 %v1899
    %v1971 = vunpack.c.l.b16 %v1900
    %v1972 = vunpack.c.l.b16 %v1901
    %v1973 = vunpack.c.l.b16 %v1902
    %v1974 = vunpack.c.l.b16 %v1903
    %v1975 = vunpack.c.l.b16 %v1904
    %v1976 = vunpack.c.l.b16 %v1905
    %v1977 = vunpack.c.l.b16 %v1906
    %v1978 = vunpack.c.l.b16 %v1907
    %v1979 = vunpack.c.l.b16 %v1908
    %v1980 = vunpack.c.l.b16 %v1909
    %v1981 = vunpack.c.l.b16 %v1910
    %v1982 = vunpack.c.l.b16 %v1911
    %v1983 = vunpack.c.l.b16 %v1912
    %v1984 = vunpack.c.l.b16 %v1913
    %v1985 = vunpack.c.l.b16 %v1914
    %v1986 = vunpack.c.l.b16 %v1915
    %v1987 = vunpack.c.l.b16 %v1916
    %v1988 = vunpack.c.l.b16 %v1917
    %v1989 = vunpack.c.l.b16 %v1918
    %v1990 = vunpack.c.l.b16 %v1919
    %v1991 = vunpack.c.l.b16 %v1920
    %v1992 = vunpack.c.l.b16 %v1921
    %v1993 = vunpack.c.l.b16 %v1922
    %v1994 = vunpack.c.l.b16 %v1923
    %v1995 = vunpack.c.l.b16 %v1924
    %v1996 = vunpack.c.l.b16 %v1925
    %v1997 = vunpack.c.l.b16 %v1926
    %v1998 = vunpack.c.l.b16 %v1927
    %v1999 = vunpack.c.l.b16 %v1928
    %v2000 = vunpack.c.l.b16 %v1929
    %v2001 = vpack.c.b16 %v1970, %v1969
    %v2002 = vpack.c.b16 %v1972, %v1971
    %v2003 = vpack.c.b16 %v1974, %v1973
    %v2004 = vpack.c.b16 %v1976, %v1975
    %v2005 = vpack.c.b16 %v1978, %v1977
    %v2006 = vpack.c.b16 %v1980, %v1979
    %v2007 = vpack.c.b16 %v1982, %v1981
    %v2008 = vpack.c.b16 %v1984, %v1983
    %v2009 = vpack.c.b16 %v1986, %v1985
    %v2010 = vpack.c.b16 %v1988, %v1987
    %v2011 = vpack.c.b16 %v1990, %v1989
    %v2012 = vpack.c.b16 %v1992, %v1991
    %v2013 = vpack.c.b16 %v1994, %v1993
    %v2014 = vpack.c.b16 %v1996, %v1995
    %v2015 = vpack.c.b16 %v1998, %v1997
    %v2016 = vpack.c.b16 %v2000, %v1999
    %2033 = vmatprep.subr.bf16.mxu0 0
    %2034 = vmatpush1.bf16.msra.mxu0 %v2008
    %2035 = vmatprep.subr.bf16.mxu0 0
    %2036 = vmatpush1.bf16.msra.mxu0 %v2007
    %2037 = vmatprep.subr.bf16.mxu0 0
    %2038 = vmatpush1.bf16.msra.mxu0 %v2006
    %2039 = vmatprep.subr.bf16.mxu0 0
    %2040 = vmatpush1.bf16.msra.mxu0 %v2005
    %2041 = vmatprep.subr.bf16.mxu0 0
    %2042 = vmatpush1.bf16.msra.mxu0 %v2004
    %2043 = vmatprep.subr.bf16.mxu0 0
    %2044 = vmatpush1.bf16.msra.mxu0 %v2003
    %2045 = vmatprep.subr.bf16.mxu0 0
    %2046 = vmatpush1.bf16.msra.mxu0 %v2002
    %2047 = vmatprep.subr.bf16.mxu0 0
    %2048 = vmatpush1.bf16.msra.mxu0 %v2001
    %2049 = vmatprep.subr.bf16.mxu0 0
    %2050 = vmatpush2.bf16.msra.mxu0 %v2016
    %2051 = vmatprep.subr.bf16.mxu0 0
    %2052 = vmatpush2.bf16.msra.mxu0 %v2015
    %2053 = vmatprep.subr.bf16.mxu0 0
    %2054 = vmatpush2.bf16.msra.mxu0 %v2014
    %2055 = vmatprep.subr.bf16.mxu0 0
    %2056 = vmatpush2.bf16.msra.mxu0 %v2013
    %2057 = vmatprep.subr.bf16.mxu0 0
    %2058 = vmatpush2.bf16.msra.mxu0 %v2012
    %2059 = vmatprep.subr.bf16.mxu0 0
    %2060 = vmatpush2.bf16.msra.mxu0 %v2011
    %2061 = vmatprep.subr.bf16.mxu0 0
    %2062 = vmatpush2.bf16.msra.mxu0 %v2010
    %2063 = vmatprep.subr.bf16.mxu0 0
    %2064 = vmatpush2.bf16.msra.mxu0 %v2009
    %2065 = vmatprep.mubr.bf16.mxu0 %v1895
    %2066 = vmatmul.mubr.bf16.gmra.mxu0 %v1894
    %v2067 = vpop.f32.mrf.mxu0
    %v2068 = vadd.f32 %v1935, %v2067
    %v2069 = vpop.f32.mrf.mxu0
    %v2070 = vpop.f32.mrf.mxu0
    %v2071 = vadd.f32 %v1935, %v2070
    %v2072 = vpop.f32.mrf.mxu0
    %2073 = vmatprep.mubr.bf16.mxu0 %v1897
    %2074 = vmatmul.mubr.bf16.gmra.mxu0 %v1896
    %v2075 = vpop.f32.mrf.mxu0
    %v2076 = vadd.f32 %v1935, %v2075
    %v2077 = vpop.f32.mrf.mxu0
    %v2078 = vpop.f32.mrf.mxu0
    %v2079 = vadd.f32 %v1935, %v2078
    %v2080 = vpop.f32.mrf.mxu0
    %2081 = vdwg.mxu0
    %v2082 = vadd.f32 %v1621, %v2068
    %v2083 = vadd.f32 %v1622, %v2071
    %v2084 = vadd.f32 %v1623, %v2076
    %v2085 = vadd.f32 %v1624, %v2079
    %2086 = vst [vmem:[#allocation14] sm:$0xff] %v2082
    %2087 = vst [vmem:[#allocation14 + $0x8] sm:$0xff] %v2083
    %2088 = vst [vmem:[#allocation14 + $0x10] sm:$0xff] %v2084
    %2089 = vst [vmem:[#allocation14 + $0x18] sm:$0xff] %v2085
    // Predicated region
    $region82: #{tpu_custom_call.1} parent=1 // pred_check
      _
    $region83: #{tpu_custom_call.1} parent=1 // pred_check_branch
      %2091 = sbr.rel (0) target = $region85
    $region84: #{tpu_custom_call.1} parent=1 // pred_region
      %s2093 = ssub.s32 512, 512
      %2094 = vsyncadd [#allocation4], %s2093
      %s2095 = sshll.u32 [#allocation14], 4
      %s2096 = int_to_ptr.vmem [resolvable:$true] %s2095
      %2101 = dma.vmem_to_hbm [thread:$0]  %s2096, 512, %s13, [#allocation4], 128, 128, 8
    $region85: #{tpu_custom_call.1} parent=1 // pred_fallthru
      _
    // Predicated region
    $region86: #{tpu_custom_call.1} parent=1 // pred_check
      _
    $region87: #{tpu_custom_call.1} parent=1 // pred_check_branch
      %2103 = sbr.rel (0) target = $region89
    $region88: #{tpu_custom_call.1} parent=1 // pred_region
      %2104 = dma.done [#allocation4], 512
    $region89: #{tpu_custom_call.1} parent=1 // pred_fallthru
      _
    %2105 = vsyncpa [#allocation3], 1
    %2106 = vsyncpa [#allocation6], 1
    %2107 = vsyncpa [#allocation9], 1
    %2108 = vsyncpa [#allocation12], 1
    %2109 = vsyncpa [#allocation4], 1

</llo_original>
